<compile_context>
chip_gen: v5e
topology: v5e:2x2
jax: 0.10.0
libtpu: 0.0.40
codegen_flags: <defaults>
</compile_context>

<pallas_src>
import jax
import jax.numpy as jnp
from jax.experimental import pallas as pl
from jax.experimental.pallas import tpu as pltpu

VMEM_SPEC = pl.BlockSpec(memory_space=pltpu.MemorySpace.VMEM)
F32 = jnp.float32


# ----------------------------- math helpers --------------------------------
def _erf(x):
    # Abramowitz & Stegun 7.1.26 polynomial erf (|err| <= 1.5e-7); built only
    # from ops that lower cleanly on Mosaic (exp, mul, add, select).
    a1, a2, a3, a4, a5 = 0.254829592, -0.284496736, 1.421413741, -1.453152027, 1.061405429
    p = 0.3275911
    ax = jnp.abs(x)
    t = 1.0 / (1.0 + p * ax)
    poly = ((((a5 * t + a4) * t + a3) * t + a2) * t + a1) * t
    y = 1.0 - poly * jnp.exp(-ax * ax)
    return jnp.where(x < 0.0, -y, y)


def _gelu(x):
    # erf-based GELU, matching torch.nn.GELU() default (to ~1.5e-7)
    return 0.5 * x * (1.0 + _erf(x * 0.7071067811865476))


# ------------------------------- fused kernel --------------------------------
def make_fused_kernel(T, Bp, H, num_layers):
    L = num_layers

    def kernel(xt_ref, x2_ref, whhp_ref, *refs):
        # refs = [(wih_l, b_l) x L] [attn 4] [ffnn 6] [clf 7] [out]
        lstm_refs = refs[0:2 * L]
        aw1_ref, ab1_ref, aw2r_ref, ab2_ref = refs[2 * L:2 * L + 4]
        fw1_ref, fb1_ref, fw2_ref, fb2_ref, fw3_ref, fb3_ref = refs[2 * L + 4:2 * L + 10]
        (cw1a_ref, cw1b_ref, cb1_ref, cw2_ref, cb2_ref,
         cw3r_ref, cb3_ref) = refs[2 * L + 10:2 * L + 17]
        out_ref = refs[2 * L + 17]

        whh_p = whhp_ref[...]                                # (H, L*4H) packed recurrent RHS
        wih = [lstm_refs[2 * l][...] for l in range(L)]      # (Din_l, 4H)
        bias = [lstm_refs[2 * l + 1][...] for l in range(L)] # (1, 4H)
        aw1 = aw1_ref[...]; ab1 = ab1_ref[...]
        aw2r = aw2r_ref[...]; ab2 = ab2_ref[...]

        # Hoisted layer-0 input projection: one well-shaped matmul for all T steps.
        gin0 = jnp.dot(xt_ref[...], wih[0], preferred_element_type=F32) + bias[0]  # (T*Bp, 4H)

        h = [jnp.zeros((Bp, H), F32) for _ in range(L)]
        c = [jnp.zeros((Bp, H), F32) for _ in range(L)]

        def cell(g, c_prev):
            # PyTorch gate order: input, forget, cell(g), output
            i_g = jax.nn.sigmoid(g[:, 0 * H:1 * H])
            f_g = jax.nn.sigmoid(g[:, 1 * H:2 * H])
            g_g = jnp.tanh(g[:, 2 * H:3 * H])
            o_g = jax.nn.sigmoid(g[:, 3 * H:4 * H])
            c_new = f_g * c_prev + i_g * g_g
            h_new = o_g * jnp.tanh(c_new)
            return h_new, c_new

        s_list = []   # per-step attention logits (Bp, 1)
        h_last = []   # per-step last-layer hidden state (Bp, H)

        for t in range(T):                                   # fully unrolled wavefront
            # One packed recurrent matmul for ALL layers (uses step t-1 states,
            # all available at the start of the step): (L*Bp, H) x (H, L*4H).
            hcat = jnp.concatenate(h, axis=0)                # (L*Bp, H), sublane concat
            r = jnp.dot(hcat, whh_p, preferred_element_type=F32)   # (L*Bp, L*4H)

            x_in = gin0[t * Bp:(t + 1) * Bp, :]              # (Bp, 4H), bias already added
            for l in range(L):
                # tile-aligned (Bp, 4H) diagonal block: h_l_{t-1} @ W_hh_l
                g = x_in + r[l * Bp:(l + 1) * Bp, l * 4 * H:(l + 1) * 4 * H]
                h[l], c[l] = cell(g, c[l])
                if l + 1 < L:
                    # wavefront handoff stays in registers: per-step input
                    # projection for the next layer.
                    x_in = jnp.dot(h[l], wih[l + 1], preferred_element_type=F32) + bias[l + 1]

            # Attention score for this step's last-layer h; off the critical
            # recurrence chain, hidden in MXU/EUP slack.
            a_h = jnp.tanh(jnp.dot(h[L - 1], aw1, preferred_element_type=F32) + ab1)  # (Bp, 512)
            s_t = jnp.sum(a_h * aw2r, axis=-1, keepdims=True) + ab2                   # (Bp, 1)
            s_list.append(s_t)
            h_last.append(h[L - 1])

        # ---------------- softmax over time + weighted pooling ----------------
        m = s_list[0]
        for t in range(1, T):
            m = jnp.maximum(m, s_list[t])
        den = jnp.zeros((Bp, 1), F32)
        num = jnp.zeros((Bp, H), F32)
        for t in range(T):
            e_t = jnp.exp(s_list[t] - m)                     # (Bp, 1)
            den = den + e_t
            num = num + e_t * h_last[t]
        pooled = num / den                                   # (Bp, H)

        # ---------------- ffnn branch on the 2D input -------------------------
        h1 = _gelu(jnp.dot(x2_ref[...], fw1_ref[...], preferred_element_type=F32)
                   + fb1_ref[...])                                             # (Bp, 512)
        h2 = _gelu(jnp.dot(h1, fw2_ref[...], preferred_element_type=F32)
                   + fb2_ref[...])                                             # (Bp, 512)
        xf = jnp.dot(h2, fw3_ref[...], preferred_element_type=F32) + fb3_ref[...]  # (Bp, 256)

        # ---------- classifier; concat folded into a split first layer -------
        c1 = _gelu(jnp.dot(pooled, cw1a_ref[...], preferred_element_type=F32)
                   + jnp.dot(xf, cw1b_ref[...], preferred_element_type=F32)
                   + cb1_ref[...])                                             # (Bp, 512)
        c2 = _gelu(jnp.dot(c1, cw2_ref[...], preferred_element_type=F32)
                   + cb2_ref[...])                                             # (Bp, 256)
        # 256 -> 1 as VPU multiply + lane reduction (no N=1 MXU op).
        out_ref[...] = jnp.sum(c2 * cw3r_ref[...], axis=-1, keepdims=True) + cb3_ref[...]

    return kernel


# ------------------------------- wrapper --------------------------------------
def lstm_amex_forward(params, inp3D, inp2D):
    B, T, Din = inp3D.shape
    H = params["lstm"][0][1].shape[0]
    num_layers = len(params["lstm"])

    # Pad batch to a full sublane tile (multiple of 8); padded rows are dropped
    # from the output and never affect the real rows (all ops are row-local).
    Bp = ((B + 7) // 8) * 8
    pad = Bp - B
    x3 = jnp.pad(inp3D, ((0, pad), (0, 0), (0, 0)))
    x2 = jnp.pad(inp2D, ((0, pad), (0, 0)))

    # Only the tiny raw input is transposed to time-major on the host; all
    # (B,T,H) activations stay inside the kernel.
    xt2 = jnp.transpose(x3, (1, 0, 2)).reshape(T * Bp, Din)

    # Packed recurrent RHS: [W_hh_0 | W_hh_1 | ...] -> (H, L*4H), one 256-wide
    # MXU push per wavefront step for L=2 (item 3 of the review).
    whh_packed = jnp.concatenate([whh for (_, whh, _) in params["lstm"]], axis=1)

    inputs = [xt2, x2, whh_packed]
    for (wih, _, b) in params["lstm"]:
        inputs += [wih, b]
    aw1, ab1, aw2, ab2 = params["attn"]
    inputs += [aw1, ab1, jnp.transpose(aw2), ab2]            # aw2 -> (1, 512) for VPU path
    fw1, fb1, fw2, fb2, fw3, fb3 = params["ffnn"]
    inputs += [fw1, fb1, fw2, fb2, fw3, fb3]
    cw1, cb1, cw2, cb2, cw3, cb3 = params["clf"]
    inputs += [cw1[:H], cw1[H:], cb1,                        # split W1 (concat folding)
               cw2, cb2, jnp.transpose(cw3), cb3]            # cw3 -> (1, 256) for VPU path

    kernel = make_fused_kernel(T, Bp, H, num_layers)
    out = pl.pallas_call(
        kernel,
        out_shape=jax.ShapeDtypeStruct((Bp, 1), F32),
        in_specs=[VMEM_SPEC] * len(inputs),
        out_specs=VMEM_SPEC,
    )(*inputs)
    return out[:B]


# --------------------------- pure-JAX reference --------------------------------
def lstm_amex_reference(params, inp3D, inp2D):
    B, T, _ = inp3D.shape
    H = params["lstm"][0][1].shape[0]
    gelu = lambda v: jax.nn.gelu(v, approximate=False)

    x = inp3D
    for (wih, whh, b) in params["lstm"]:
        h = jnp.zeros((B, H), F32)
        c = jnp.zeros((B, H), F32)
        outs = []
        for t in range(T):
            g = x[:, t, :] @ wih + h @ whh + b
            i_g = jax.nn.sigmoid(g[:, 0 * H:1 * H])
            f_g = jax.nn.sigmoid(g[:, 1 * H:2 * H])
            g_g = jnp.tanh(g[:, 2 * H:3 * H])
            o_g = jax.nn.sigmoid(g[:, 3 * H:4 * H])
            c = f_g * c + i_g * g_g
            h = o_g * jnp.tanh(c)
            outs.append(h)
        x = jnp.stack(outs, axis=1)                           # (B, T, H)

    aw1, ab1, aw2, ab2 = params["attn"]
    scores = jnp.tanh(x @ aw1 + ab1) @ aw2 + ab2              # (B, T, 1)
    w = jax.nn.softmax(scores, axis=1)
    pooled = jnp.sum(w * x, axis=1)                           # (B, H)

    fw1, fb1, fw2, fb2, fw3, fb3 = params["ffnn"]
    x2 = gelu(inp2D @ fw1 + fb1)
    x2 = gelu(x2 @ fw2 + fb2)
    x2 = x2 @ fw3 + fb3

    cw1, cb1, cw2, cb2, cw3, cb3 = params["clf"]
    z = jnp.concatenate([pooled, x2], axis=1)
    z = gelu(z @ cw1 + cb1)
    z = gelu(z @ cw2 + cb2)
    return z @ cw3 + cb3


# ------------------------------ parameters -----------------------------------
def _uniform(key, shape, scale):
    return jax.random.uniform(key, shape, F32, minval=-scale, maxval=scale)


def _linear(key, fan_in, fan_out):
    k1, k2 = jax.random.split(key)
    s = fan_in ** -0.5
    return _uniform(k1, (fan_in, fan_out), s), _uniform(k2, (1, fan_out), s)


def init_params(key, input_size, hidden_size, num_layers, ffnn_input):
    params = {}
    # LSTM
    lstm = []
    s = hidden_size ** -0.5
    din = input_size
    for _ in range(num_layers):
        key, k1, k2, k3, k4 = jax.random.split(key, 5)
        wih = _uniform(k1, (din, 4 * hidden_size), s)          # (Din, 4H)
        whh = _uniform(k2, (hidden_size, 4 * hidden_size), s)  # (H, 4H)
        b = _uniform(k3, (1, 4 * hidden_size), s) + _uniform(k4, (1, 4 * hidden_size), s)
        lstm.append((wih, whh, b))
        din = hidden_size
    params["lstm"] = lstm

    # attention1: Linear(H, 512) -> Tanh -> Linear(512, 1) -> Softmax(dim=1)
    key, ka1, ka2 = jax.random.split(key, 3)
    aw1, ab1 = _linear(ka1, hidden_size, 512)
    aw2, ab2 = _linear(ka2, 512, 1)
    params["attn"] = (aw1, ab1, aw2, ab2)

    # ffnn: Linear(ffnn_input, 512) GELU Linear(512, 512) GELU Linear(512, 256)
    key, kf1, kf2, kf3 = jax.random.split(key, 4)
    fw1, fb1 = _linear(kf1, ffnn_input, 512)
    fw2, fb2 = _linear(kf2, 512, 512)
    fw3, fb3 = _linear(kf3, 512, 256)
    params["ffnn"] = (fw1, fb1, fw2, fb2, fw3, fb3)

    # classifier: Linear(H+256, 512) GELU Linear(512, 256) GELU Linear(256, 1)
    key, kc1, kc2, kc3 = jax.random.split(key, 4)
    cw1, cb1 = _linear(kc1, hidden_size + 256, 512)
    cw2, cb2 = _linear(kc2, 512, 256)
    cw3, cb3 = _linear(kc3, 256, 1)
    params["clf"] = (cw1, cb1, cw2, cb2, cw3, cb3)
    return params


# --------------------------------- main ---------------------------------------
if __name__ == "__main__":
    B, T = 4, 8
    input_size, hidden_size, num_layers = 16, 32, 2
    ffnn_input = 24

    key = jax.random.PRNGKey(0)
    kp, kx3, kx2 = jax.random.split(key, 3)
    params = init_params(kp, input_size, hidden_size, num_layers, ffnn_input)

    inp3D = jax.random.normal(kx3, (B, T, input_size), F32)
    inp2D = jax.random.normal(kx2, (B, ffnn_input), F32)

    fwd = jax.jit(lstm_amex_forward)
    out = jax.block_until_ready(fwd(params, inp3D, inp2D))
    assert out.shape == (B, 1), out.shape
    assert bool(jnp.all(jnp.isfinite(out)))

    # Numerical check against a pure-JAX (f32) reference of the PyTorch module.
    ref = lstm_amex_reference(params, inp3D, inp2D)
    assert bool(jnp.allclose(out, ref, rtol=2e-2, atol=2e-2)), (out, ref)

    print("KERNEL_OK")
</pallas_src>

<mosaic_0001>
module attributes {stable_mosaic.version = 11 : i64} {
  func.func @kernel(%arg0: memref<64x16xf32, #tpu.memory_space<vmem>>, %arg1: memref<8x24xf32, #tpu.memory_space<vmem>>, %arg2: memref<32x256xf32, #tpu.memory_space<vmem>>, %arg3: memref<16x128xf32, #tpu.memory_space<vmem>>, %arg4: memref<1x128xf32, #tpu.memory_space<vmem>>, %arg5: memref<32x128xf32, #tpu.memory_space<vmem>>, %arg6: memref<1x128xf32, #tpu.memory_space<vmem>>, %arg7: memref<32x512xf32, #tpu.memory_space<vmem>>, %arg8: memref<1x512xf32, #tpu.memory_space<vmem>>, %arg9: memref<1x512xf32, #tpu.memory_space<vmem>>, %arg10: memref<1x1xf32, #tpu.memory_space<vmem>>, %arg11: memref<24x512xf32, #tpu.memory_space<vmem>>, %arg12: memref<1x512xf32, #tpu.memory_space<vmem>>, %arg13: memref<512x512xf32, #tpu.memory_space<vmem>>, %arg14: memref<1x512xf32, #tpu.memory_space<vmem>>, %arg15: memref<512x256xf32, #tpu.memory_space<vmem>>, %arg16: memref<1x256xf32, #tpu.memory_space<vmem>>, %arg17: memref<32x512xf32, #tpu.memory_space<vmem>>, %arg18: memref<256x512xf32, #tpu.memory_space<vmem>>, %arg19: memref<1x512xf32, #tpu.memory_space<vmem>>, %arg20: memref<512x256xf32, #tpu.memory_space<vmem>>, %arg21: memref<1x256xf32, #tpu.memory_space<vmem>>, %arg22: memref<1x256xf32, #tpu.memory_space<vmem>>, %arg23: memref<1x1xf32, #tpu.memory_space<vmem>>, %arg24: memref<8x1xf32, #tpu.memory_space<vmem>>) attributes {dimension_semantics = [], scalar_prefetch = 0 : i64, scratch_operands = 0 : i64, tpu.core_type = #tpu.core_type<tc>} {
    %c0 = arith.constant 0 : index
    %c0_0 = arith.constant 0 : index
    %0 = vector.load %arg2[%c0, %c0_0] : memref<32x256xf32, #tpu.memory_space<vmem>>, vector<32x256xf32>
    %c0_1 = arith.constant 0 : index
    %c0_2 = arith.constant 0 : index
    %1 = vector.load %arg3[%c0_1, %c0_2] : memref<16x128xf32, #tpu.memory_space<vmem>>, vector<16x128xf32>
    %c0_3 = arith.constant 0 : index
    %c0_4 = arith.constant 0 : index
    %2 = vector.load %arg5[%c0_3, %c0_4] : memref<32x128xf32, #tpu.memory_space<vmem>>, vector<32x128xf32>
    %c0_5 = arith.constant 0 : index
    %c0_6 = arith.constant 0 : index
    %3 = vector.load %arg4[%c0_5, %c0_6] : memref<1x128xf32, #tpu.memory_space<vmem>>, vector<1x128xf32>
    %c0_7 = arith.constant 0 : index
    %c0_8 = arith.constant 0 : index
    %4 = vector.load %arg6[%c0_7, %c0_8] : memref<1x128xf32, #tpu.memory_space<vmem>>, vector<1x128xf32>
    %c0_9 = arith.constant 0 : index
    %c0_10 = arith.constant 0 : index
    %5 = vector.load %arg7[%c0_9, %c0_10] : memref<32x512xf32, #tpu.memory_space<vmem>>, vector<32x512xf32>
    %c0_11 = arith.constant 0 : index
    %c0_12 = arith.constant 0 : index
    %6 = vector.load %arg8[%c0_11, %c0_12] : memref<1x512xf32, #tpu.memory_space<vmem>>, vector<1x512xf32>
    %c0_13 = arith.constant 0 : index
    %c0_14 = arith.constant 0 : index
    %7 = vector.load %arg9[%c0_13, %c0_14] : memref<1x512xf32, #tpu.memory_space<vmem>>, vector<1x512xf32>
    %c0_15 = arith.constant 0 : index
    %c0_16 = arith.constant 0 : index
    %8 = vector.load %arg10[%c0_15, %c0_16] : memref<1x1xf32, #tpu.memory_space<vmem>>, vector<1x1xf32>
    %c0_17 = arith.constant 0 : index
    %c0_18 = arith.constant 0 : index
    %9 = vector.load %arg0[%c0_17, %c0_18] : memref<64x16xf32, #tpu.memory_space<vmem>>, vector<64x16xf32>
    %cst = arith.constant dense<0.000000e+00> : vector<64x128xf32>
    %10 = tpu.matmul %9, %1, %cst {dimension_numbers = #tpu.dot_dimension_numbers<[1], [0], [0], [1], [0, 0, 1, 1], [], []>} : vector<64x16xf32>, vector<16x128xf32>, vector<64x128xf32> -> vector<64x128xf32>
    %11 = vector.broadcast %3 : vector<1x128xf32> to vector<64x128xf32>
    %12 = arith.addf %10, %11 : vector<64x128xf32>
    %cst_19 = arith.constant 0.000000e+00 : f32
    %13 = vector.broadcast %cst_19 : f32 to vector<8x32xf32>
    %cst_20 = arith.constant 0.000000e+00 : f32
    %14 = vector.broadcast %cst_20 : f32 to vector<8x32xf32>
    %cst_21 = arith.constant 0.000000e+00 : f32
    %15 = vector.broadcast %cst_21 : f32 to vector<8x32xf32>
    %cst_22 = arith.constant 0.000000e+00 : f32
    %16 = vector.broadcast %cst_22 : f32 to vector<8x32xf32>
    %17 = tpu.concatenate %13, %14 in 0 : vector<8x32xf32>, vector<8x32xf32> -> vector<16x32xf32>
    %cst_23 = arith.constant dense<0.000000e+00> : vector<16x256xf32>
    %18 = tpu.matmul %17, %0, %cst_23 {dimension_numbers = #tpu.dot_dimension_numbers<[1], [0], [0], [1], [0, 0, 1, 1], [], []>} : vector<16x32xf32>, vector<32x256xf32>, vector<16x256xf32> -> vector<16x256xf32>
    %19 = vector.extract_strided_slice %12 {offsets = [0, 0], sizes = [8, 128], strides = [1, 1]} : vector<64x128xf32> to vector<8x128xf32>
    %20 = vector.extract_strided_slice %18 {offsets = [0, 0], sizes = [8, 128], strides = [1, 1]} : vector<16x256xf32> to vector<8x128xf32>
    %21 = arith.addf %19, %20 : vector<8x128xf32>
    %22 = vector.extract_strided_slice %21 {offsets = [0, 0], sizes = [8, 32], strides = [1, 1]} : vector<8x128xf32> to vector<8x32xf32>
    %23 = arith.negf %22 : vector<8x32xf32>
    %24 = math.exp %23 : vector<8x32xf32>
    %cst_24 = arith.constant 1.000000e+00 : f32
    %25 = vector.broadcast %cst_24 : f32 to vector<8x32xf32>
    %26 = arith.addf %25, %24 : vector<8x32xf32>
    %27 = arith.divf %25, %26 : vector<8x32xf32>
    %28 = vector.extract_strided_slice %21 {offsets = [0, 32], sizes = [8, 32], strides = [1, 1]} : vector<8x128xf32> to vector<8x32xf32>
    %29 = arith.negf %28 : vector<8x32xf32>
    %30 = math.exp %29 : vector<8x32xf32>
    %cst_25 = arith.constant 1.000000e+00 : f32
    %31 = vector.broadcast %cst_25 : f32 to vector<8x32xf32>
    %32 = arith.addf %31, %30 : vector<8x32xf32>
    %33 = arith.divf %31, %32 : vector<8x32xf32>
    %34 = vector.extract_strided_slice %21 {offsets = [0, 64], sizes = [8, 32], strides = [1, 1]} : vector<8x128xf32> to vector<8x32xf32>
    %35 = math.tanh %34 : vector<8x32xf32>
    %36 = vector.extract_strided_slice %21 {offsets = [0, 96], sizes = [8, 32], strides = [1, 1]} : vector<8x128xf32> to vector<8x32xf32>
    %37 = arith.negf %36 : vector<8x32xf32>
    %38 = math.exp %37 : vector<8x32xf32>
    %cst_26 = arith.constant 1.000000e+00 : f32
    %39 = vector.broadcast %cst_26 : f32 to vector<8x32xf32>
    %40 = arith.addf %39, %38 : vector<8x32xf32>
    %41 = arith.divf %39, %40 : vector<8x32xf32>
    %42 = arith.mulf %33, %15 : vector<8x32xf32>
    %43 = arith.mulf %27, %35 : vector<8x32xf32>
    %44 = arith.addf %42, %43 : vector<8x32xf32>
    %45 = math.tanh %44 : vector<8x32xf32>
    %46 = arith.mulf %41, %45 : vector<8x32xf32>
    %cst_27 = arith.constant dense<0.000000e+00> : vector<8x128xf32>
    %47 = tpu.matmul %46, %2, %cst_27 {dimension_numbers = #tpu.dot_dimension_numbers<[1], [0], [0], [1], [0, 0, 1, 1], [], []>} : vector<8x32xf32>, vector<32x128xf32>, vector<8x128xf32> -> vector<8x128xf32>
    %48 = vector.broadcast %4 : vector<1x128xf32> to vector<8x128xf32>
    %49 = arith.addf %47, %48 : vector<8x128xf32>
    %50 = vector.extract_strided_slice %18 {offsets = [8, 128], sizes = [8, 128], strides = [1, 1]} : vector<16x256xf32> to vector<8x128xf32>
    %51 = arith.addf %49, %50 : vector<8x128xf32>
    %52 = vector.extract_strided_slice %51 {offsets = [0, 0], sizes = [8, 32], strides = [1, 1]} : vector<8x128xf32> to vector<8x32xf32>
    %53 = arith.negf %52 : vector<8x32xf32>
    %54 = math.exp %53 : vector<8x32xf32>
    %cst_28 = arith.constant 1.000000e+00 : f32
    %55 = vector.broadcast %cst_28 : f32 to vector<8x32xf32>
    %56 = arith.addf %55, %54 : vector<8x32xf32>
    %57 = arith.divf %55, %56 : vector<8x32xf32>
    %58 = vector.extract_strided_slice %51 {offsets = [0, 32], sizes = [8, 32], strides = [1, 1]} : vector<8x128xf32> to vector<8x32xf32>
    %59 = arith.negf %58 : vector<8x32xf32>
    %60 = math.exp %59 : vector<8x32xf32>
    %cst_29 = arith.constant 1.000000e+00 : f32
    %61 = vector.broadcast %cst_29 : f32 to vector<8x32xf32>
    %62 = arith.addf %61, %60 : vector<8x32xf32>
    %63 = arith.divf %61, %62 : vector<8x32xf32>
    %64 = vector.extract_strided_slice %51 {offsets = [0, 64], sizes = [8, 32], strides = [1, 1]} : vector<8x128xf32> to vector<8x32xf32>
    %65 = math.tanh %64 : vector<8x32xf32>
    %66 = vector.extract_strided_slice %51 {offsets = [0, 96], sizes = [8, 32], strides = [1, 1]} : vector<8x128xf32> to vector<8x32xf32>
    %67 = arith.negf %66 : vector<8x32xf32>
    %68 = math.exp %67 : vector<8x32xf32>
    %cst_30 = arith.constant 1.000000e+00 : f32
    %69 = vector.broadcast %cst_30 : f32 to vector<8x32xf32>
    %70 = arith.addf %69, %68 : vector<8x32xf32>
    %71 = arith.divf %69, %70 : vector<8x32xf32>
    %72 = arith.mulf %63, %16 : vector<8x32xf32>
    %73 = arith.mulf %57, %65 : vector<8x32xf32>
    %74 = arith.addf %72, %73 : vector<8x32xf32>
    %75 = math.tanh %74 : vector<8x32xf32>
    %76 = arith.mulf %71, %75 : vector<8x32xf32>
    %cst_31 = arith.constant dense<0.000000e+00> : vector<8x512xf32>
    %77 = tpu.matmul %76, %5, %cst_31 {dimension_numbers = #tpu.dot_dimension_numbers<[1], [0], [0], [1], [0, 0, 1, 1], [], []>} : vector<8x32xf32>, vector<32x512xf32>, vector<8x512xf32> -> vector<8x512xf32>
    %78 = vector.broadcast %6 : vector<1x512xf32> to vector<8x512xf32>
    %79 = arith.addf %77, %78 : vector<8x512xf32>
    %80 = math.tanh %79 : vector<8x512xf32>
    %81 = vector.broadcast %7 : vector<1x512xf32> to vector<8x512xf32>
    %82 = arith.mulf %80, %81 : vector<8x512xf32>
    %cst_32 = arith.constant dense<0.000000e+00> : vector<8xf32>
    %83 = vector.multi_reduction <add>, %82, %cst_32 [1] : vector<8x512xf32> to vector<8xf32>
    %84 = vector.shape_cast %83 : vector<8xf32> to vector<8x1xf32>
    %85 = vector.broadcast %8 : vector<1x1xf32> to vector<8x1xf32>
    %86 = arith.addf %84, %85 : vector<8x1xf32>
    %87 = tpu.concatenate %46, %76 in 0 : vector<8x32xf32>, vector<8x32xf32> -> vector<16x32xf32>
    %cst_33 = arith.constant dense<0.000000e+00> : vector<16x256xf32>
    %88 = tpu.matmul %87, %0, %cst_33 {dimension_numbers = #tpu.dot_dimension_numbers<[1], [0], [0], [1], [0, 0, 1, 1], [], []>} : vector<16x32xf32>, vector<32x256xf32>, vector<16x256xf32> -> vector<16x256xf32>
    %89 = vector.extract_strided_slice %12 {offsets = [8, 0], sizes = [8, 128], strides = [1, 1]} : vector<64x128xf32> to vector<8x128xf32>
    %90 = vector.extract_strided_slice %88 {offsets = [0, 0], sizes = [8, 128], strides = [1, 1]} : vector<16x256xf32> to vector<8x128xf32>
    %91 = arith.addf %89, %90 : vector<8x128xf32>
    %92 = vector.extract_strided_slice %91 {offsets = [0, 0], sizes = [8, 32], strides = [1, 1]} : vector<8x128xf32> to vector<8x32xf32>
    %93 = arith.negf %92 : vector<8x32xf32>
    %94 = math.exp %93 : vector<8x32xf32>
    %cst_34 = arith.constant 1.000000e+00 : f32
    %95 = vector.broadcast %cst_34 : f32 to vector<8x32xf32>
    %96 = arith.addf %95, %94 : vector<8x32xf32>
    %97 = arith.divf %95, %96 : vector<8x32xf32>
    %98 = vector.extract_strided_slice %91 {offsets = [0, 32], sizes = [8, 32], strides = [1, 1]} : vector<8x128xf32> to vector<8x32xf32>
    %99 = arith.negf %98 : vector<8x32xf32>
    %100 = math.exp %99 : vector<8x32xf32>
    %cst_35 = arith.constant 1.000000e+00 : f32
    %101 = vector.broadcast %cst_35 : f32 to vector<8x32xf32>
    %102 = arith.addf %101, %100 : vector<8x32xf32>
    %103 = arith.divf %101, %102 : vector<8x32xf32>
    %104 = vector.extract_strided_slice %91 {offsets = [0, 64], sizes = [8, 32], strides = [1, 1]} : vector<8x128xf32> to vector<8x32xf32>
    %105 = math.tanh %104 : vector<8x32xf32>
    %106 = vector.extract_strided_slice %91 {offsets = [0, 96], sizes = [8, 32], strides = [1, 1]} : vector<8x128xf32> to vector<8x32xf32>
    %107 = arith.negf %106 : vector<8x32xf32>
    %108 = math.exp %107 : vector<8x32xf32>
    %cst_36 = arith.constant 1.000000e+00 : f32
    %109 = vector.broadcast %cst_36 : f32 to vector<8x32xf32>
    %110 = arith.addf %109, %108 : vector<8x32xf32>
    %111 = arith.divf %109, %110 : vector<8x32xf32>
    %112 = arith.mulf %103, %44 : vector<8x32xf32>
    %113 = arith.mulf %97, %105 : vector<8x32xf32>
    %114 = arith.addf %112, %113 : vector<8x32xf32>
    %115 = math.tanh %114 : vector<8x32xf32>
    %116 = arith.mulf %111, %115 : vector<8x32xf32>
    %cst_37 = arith.constant dense<0.000000e+00> : vector<8x128xf32>
    %117 = tpu.matmul %116, %2, %cst_37 {dimension_numbers = #tpu.dot_dimension_numbers<[1], [0], [0], [1], [0, 0, 1, 1], [], []>} : vector<8x32xf32>, vector<32x128xf32>, vector<8x128xf32> -> vector<8x128xf32>
    %118 = vector.broadcast %4 : vector<1x128xf32> to vector<8x128xf32>
    %119 = arith.addf %117, %118 : vector<8x128xf32>
    %120 = vector.extract_strided_slice %88 {offsets = [8, 128], sizes = [8, 128], strides = [1, 1]} : vector<16x256xf32> to vector<8x128xf32>
    %121 = arith.addf %119, %120 : vector<8x128xf32>
    %122 = vector.extract_strided_slice %121 {offsets = [0, 0], sizes = [8, 32], strides = [1, 1]} : vector<8x128xf32> to vector<8x32xf32>
    %123 = arith.negf %122 : vector<8x32xf32>
    %124 = math.exp %123 : vector<8x32xf32>
    %cst_38 = arith.constant 1.000000e+00 : f32
    %125 = vector.broadcast %cst_38 : f32 to vector<8x32xf32>
    %126 = arith.addf %125, %124 : vector<8x32xf32>
    %127 = arith.divf %125, %126 : vector<8x32xf32>
    %128 = vector.extract_strided_slice %121 {offsets = [0, 32], sizes = [8, 32], strides = [1, 1]} : vector<8x128xf32> to vector<8x32xf32>
    %129 = arith.negf %128 : vector<8x32xf32>
    %130 = math.exp %129 : vector<8x32xf32>
    %cst_39 = arith.constant 1.000000e+00 : f32
    %131 = vector.broadcast %cst_39 : f32 to vector<8x32xf32>
    %132 = arith.addf %131, %130 : vector<8x32xf32>
    %133 = arith.divf %131, %132 : vector<8x32xf32>
    %134 = vector.extract_strided_slice %121 {offsets = [0, 64], sizes = [8, 32], strides = [1, 1]} : vector<8x128xf32> to vector<8x32xf32>
    %135 = math.tanh %134 : vector<8x32xf32>
    %136 = vector.extract_strided_slice %121 {offsets = [0, 96], sizes = [8, 32], strides = [1, 1]} : vector<8x128xf32> to vector<8x32xf32>
    %137 = arith.negf %136 : vector<8x32xf32>
    %138 = math.exp %137 : vector<8x32xf32>
    %cst_40 = arith.constant 1.000000e+00 : f32
    %139 = vector.broadcast %cst_40 : f32 to vector<8x32xf32>
    %140 = arith.addf %139, %138 : vector<8x32xf32>
    %141 = arith.divf %139, %140 : vector<8x32xf32>
    %142 = arith.mulf %133, %74 : vector<8x32xf32>
    %143 = arith.mulf %127, %135 : vector<8x32xf32>
    %144 = arith.addf %142, %143 : vector<8x32xf32>
    %145 = math.tanh %144 : vector<8x32xf32>
    %146 = arith.mulf %141, %145 : vector<8x32xf32>
    %cst_41 = arith.constant dense<0.000000e+00> : vector<8x512xf32>
    %147 = tpu.matmul %146, %5, %cst_41 {dimension_numbers = #tpu.dot_dimension_numbers<[1], [0], [0], [1], [0, 0, 1, 1], [], []>} : vector<8x32xf32>, vector<32x512xf32>, vector<8x512xf32> -> vector<8x512xf32>
    %148 = vector.broadcast %6 : vector<1x512xf32> to vector<8x512xf32>
    %149 = arith.addf %147, %148 : vector<8x512xf32>
    %150 = math.tanh %149 : vector<8x512xf32>
    %151 = vector.broadcast %7 : vector<1x512xf32> to vector<8x512xf32>
    %152 = arith.mulf %150, %151 : vector<8x512xf32>
    %cst_42 = arith.constant dense<0.000000e+00> : vector<8xf32>
    %153 = vector.multi_reduction <add>, %152, %cst_42 [1] : vector<8x512xf32> to vector<8xf32>
    %154 = vector.shape_cast %153 : vector<8xf32> to vector<8x1xf32>
    %155 = vector.broadcast %8 : vector<1x1xf32> to vector<8x1xf32>
    %156 = arith.addf %154, %155 : vector<8x1xf32>
    %157 = tpu.concatenate %116, %146 in 0 : vector<8x32xf32>, vector<8x32xf32> -> vector<16x32xf32>
    %cst_43 = arith.constant dense<0.000000e+00> : vector<16x256xf32>
    %158 = tpu.matmul %157, %0, %cst_43 {dimension_numbers = #tpu.dot_dimension_numbers<[1], [0], [0], [1], [0, 0, 1, 1], [], []>} : vector<16x32xf32>, vector<32x256xf32>, vector<16x256xf32> -> vector<16x256xf32>
    %159 = vector.extract_strided_slice %12 {offsets = [16, 0], sizes = [8, 128], strides = [1, 1]} : vector<64x128xf32> to vector<8x128xf32>
    %160 = vector.extract_strided_slice %158 {offsets = [0, 0], sizes = [8, 128], strides = [1, 1]} : vector<16x256xf32> to vector<8x128xf32>
    %161 = arith.addf %159, %160 : vector<8x128xf32>
    %162 = vector.extract_strided_slice %161 {offsets = [0, 0], sizes = [8, 32], strides = [1, 1]} : vector<8x128xf32> to vector<8x32xf32>
    %163 = arith.negf %162 : vector<8x32xf32>
    %164 = math.exp %163 : vector<8x32xf32>
    %cst_44 = arith.constant 1.000000e+00 : f32
    %165 = vector.broadcast %cst_44 : f32 to vector<8x32xf32>
    %166 = arith.addf %165, %164 : vector<8x32xf32>
    %167 = arith.divf %165, %166 : vector<8x32xf32>
    %168 = vector.extract_strided_slice %161 {offsets = [0, 32], sizes = [8, 32], strides = [1, 1]} : vector<8x128xf32> to vector<8x32xf32>
    %169 = arith.negf %168 : vector<8x32xf32>
    %170 = math.exp %169 : vector<8x32xf32>
    %cst_45 = arith.constant 1.000000e+00 : f32
    %171 = vector.broadcast %cst_45 : f32 to vector<8x32xf32>
    %172 = arith.addf %171, %170 : vector<8x32xf32>
    %173 = arith.divf %171, %172 : vector<8x32xf32>
    %174 = vector.extract_strided_slice %161 {offsets = [0, 64], sizes = [8, 32], strides = [1, 1]} : vector<8x128xf32> to vector<8x32xf32>
    %175 = math.tanh %174 : vector<8x32xf32>
    %176 = vector.extract_strided_slice %161 {offsets = [0, 96], sizes = [8, 32], strides = [1, 1]} : vector<8x128xf32> to vector<8x32xf32>
    %177 = arith.negf %176 : vector<8x32xf32>
    %178 = math.exp %177 : vector<8x32xf32>
    %cst_46 = arith.constant 1.000000e+00 : f32
    %179 = vector.broadcast %cst_46 : f32 to vector<8x32xf32>
    %180 = arith.addf %179, %178 : vector<8x32xf32>
    %181 = arith.divf %179, %180 : vector<8x32xf32>
    %182 = arith.mulf %173, %114 : vector<8x32xf32>
    %183 = arith.mulf %167, %175 : vector<8x32xf32>
    %184 = arith.addf %182, %183 : vector<8x32xf32>
    %185 = math.tanh %184 : vector<8x32xf32>
    %186 = arith.mulf %181, %185 : vector<8x32xf32>
    %cst_47 = arith.constant dense<0.000000e+00> : vector<8x128xf32>
    %187 = tpu.matmul %186, %2, %cst_47 {dimension_numbers = #tpu.dot_dimension_numbers<[1], [0], [0], [1], [0, 0, 1, 1], [], []>} : vector<8x32xf32>, vector<32x128xf32>, vector<8x128xf32> -> vector<8x128xf32>
    %188 = vector.broadcast %4 : vector<1x128xf32> to vector<8x128xf32>
    %189 = arith.addf %187, %188 : vector<8x128xf32>
    %190 = vector.extract_strided_slice %158 {offsets = [8, 128], sizes = [8, 128], strides = [1, 1]} : vector<16x256xf32> to vector<8x128xf32>
    %191 = arith.addf %189, %190 : vector<8x128xf32>
    %192 = vector.extract_strided_slice %191 {offsets = [0, 0], sizes = [8, 32], strides = [1, 1]} : vector<8x128xf32> to vector<8x32xf32>
    %193 = arith.negf %192 : vector<8x32xf32>
    %194 = math.exp %193 : vector<8x32xf32>
    %cst_48 = arith.constant 1.000000e+00 : f32
    %195 = vector.broadcast %cst_48 : f32 to vector<8x32xf32>
    %196 = arith.addf %195, %194 : vector<8x32xf32>
    %197 = arith.divf %195, %196 : vector<8x32xf32>
    %198 = vector.extract_strided_slice %191 {offsets = [0, 32], sizes = [8, 32], strides = [1, 1]} : vector<8x128xf32> to vector<8x32xf32>
    %199 = arith.negf %198 : vector<8x32xf32>
    %200 = math.exp %199 : vector<8x32xf32>
    %cst_49 = arith.constant 1.000000e+00 : f32
    %201 = vector.broadcast %cst_49 : f32 to vector<8x32xf32>
    %202 = arith.addf %201, %200 : vector<8x32xf32>
    %203 = arith.divf %201, %202 : vector<8x32xf32>
    %204 = vector.extract_strided_slice %191 {offsets = [0, 64], sizes = [8, 32], strides = [1, 1]} : vector<8x128xf32> to vector<8x32xf32>
    %205 = math.tanh %204 : vector<8x32xf32>
    %206 = vector.extract_strided_slice %191 {offsets = [0, 96], sizes = [8, 32], strides = [1, 1]} : vector<8x128xf32> to vector<8x32xf32>
    %207 = arith.negf %206 : vector<8x32xf32>
    %208 = math.exp %207 : vector<8x32xf32>
    %cst_50 = arith.constant 1.000000e+00 : f32
    %209 = vector.broadcast %cst_50 : f32 to vector<8x32xf32>
    %210 = arith.addf %209, %208 : vector<8x32xf32>
    %211 = arith.divf %209, %210 : vector<8x32xf32>
    %212 = arith.mulf %203, %144 : vector<8x32xf32>
    %213 = arith.mulf %197, %205 : vector<8x32xf32>
    %214 = arith.addf %212, %213 : vector<8x32xf32>
    %215 = math.tanh %214 : vector<8x32xf32>
    %216 = arith.mulf %211, %215 : vector<8x32xf32>
    %cst_51 = arith.constant dense<0.000000e+00> : vector<8x512xf32>
    %217 = tpu.matmul %216, %5, %cst_51 {dimension_numbers = #tpu.dot_dimension_numbers<[1], [0], [0], [1], [0, 0, 1, 1], [], []>} : vector<8x32xf32>, vector<32x512xf32>, vector<8x512xf32> -> vector<8x512xf32>
    %218 = vector.broadcast %6 : vector<1x512xf32> to vector<8x512xf32>
    %219 = arith.addf %217, %218 : vector<8x512xf32>
    %220 = math.tanh %219 : vector<8x512xf32>
    %221 = vector.broadcast %7 : vector<1x512xf32> to vector<8x512xf32>
    %222 = arith.mulf %220, %221 : vector<8x512xf32>
    %cst_52 = arith.constant dense<0.000000e+00> : vector<8xf32>
    %223 = vector.multi_reduction <add>, %222, %cst_52 [1] : vector<8x512xf32> to vector<8xf32>
    %224 = vector.shape_cast %223 : vector<8xf32> to vector<8x1xf32>
    %225 = vector.broadcast %8 : vector<1x1xf32> to vector<8x1xf32>
    %226 = arith.addf %224, %225 : vector<8x1xf32>
    %227 = tpu.concatenate %186, %216 in 0 : vector<8x32xf32>, vector<8x32xf32> -> vector<16x32xf32>
    %cst_53 = arith.constant dense<0.000000e+00> : vector<16x256xf32>
    %228 = tpu.matmul %227, %0, %cst_53 {dimension_numbers = #tpu.dot_dimension_numbers<[1], [0], [0], [1], [0, 0, 1, 1], [], []>} : vector<16x32xf32>, vector<32x256xf32>, vector<16x256xf32> -> vector<16x256xf32>
    %229 = vector.extract_strided_slice %12 {offsets = [24, 0], sizes = [8, 128], strides = [1, 1]} : vector<64x128xf32> to vector<8x128xf32>
    %230 = vector.extract_strided_slice %228 {offsets = [0, 0], sizes = [8, 128], strides = [1, 1]} : vector<16x256xf32> to vector<8x128xf32>
    %231 = arith.addf %229, %230 : vector<8x128xf32>
    %232 = vector.extract_strided_slice %231 {offsets = [0, 0], sizes = [8, 32], strides = [1, 1]} : vector<8x128xf32> to vector<8x32xf32>
    %233 = arith.negf %232 : vector<8x32xf32>
    %234 = math.exp %233 : vector<8x32xf32>
    %cst_54 = arith.constant 1.000000e+00 : f32
    %235 = vector.broadcast %cst_54 : f32 to vector<8x32xf32>
    %236 = arith.addf %235, %234 : vector<8x32xf32>
    %237 = arith.divf %235, %236 : vector<8x32xf32>
    %238 = vector.extract_strided_slice %231 {offsets = [0, 32], sizes = [8, 32], strides = [1, 1]} : vector<8x128xf32> to vector<8x32xf32>
    %239 = arith.negf %238 : vector<8x32xf32>
    %240 = math.exp %239 : vector<8x32xf32>
    %cst_55 = arith.constant 1.000000e+00 : f32
    %241 = vector.broadcast %cst_55 : f32 to vector<8x32xf32>
    %242 = arith.addf %241, %240 : vector<8x32xf32>
    %243 = arith.divf %241, %242 : vector<8x32xf32>
    %244 = vector.extract_strided_slice %231 {offsets = [0, 64], sizes = [8, 32], strides = [1, 1]} : vector<8x128xf32> to vector<8x32xf32>
    %245 = math.tanh %244 : vector<8x32xf32>
    %246 = vector.extract_strided_slice %231 {offsets = [0, 96], sizes = [8, 32], strides = [1, 1]} : vector<8x128xf32> to vector<8x32xf32>
    %247 = arith.negf %246 : vector<8x32xf32>
    %248 = math.exp %247 : vector<8x32xf32>
    %cst_56 = arith.constant 1.000000e+00 : f32
    %249 = vector.broadcast %cst_56 : f32 to vector<8x32xf32>
    %250 = arith.addf %249, %248 : vector<8x32xf32>
    %251 = arith.divf %249, %250 : vector<8x32xf32>
    %252 = arith.mulf %243, %184 : vector<8x32xf32>
    %253 = arith.mulf %237, %245 : vector<8x32xf32>
    %254 = arith.addf %252, %253 : vector<8x32xf32>
    %255 = math.tanh %254 : vector<8x32xf32>
    %256 = arith.mulf %251, %255 : vector<8x32xf32>
    %cst_57 = arith.constant dense<0.000000e+00> : vector<8x128xf32>
    %257 = tpu.matmul %256, %2, %cst_57 {dimension_numbers = #tpu.dot_dimension_numbers<[1], [0], [0], [1], [0, 0, 1, 1], [], []>} : vector<8x32xf32>, vector<32x128xf32>, vector<8x128xf32> -> vector<8x128xf32>
    %258 = vector.broadcast %4 : vector<1x128xf32> to vector<8x128xf32>
    %259 = arith.addf %257, %258 : vector<8x128xf32>
    %260 = vector.extract_strided_slice %228 {offsets = [8, 128], sizes = [8, 128], strides = [1, 1]} : vector<16x256xf32> to vector<8x128xf32>
    %261 = arith.addf %259, %260 : vector<8x128xf32>
    %262 = vector.extract_strided_slice %261 {offsets = [0, 0], sizes = [8, 32], strides = [1, 1]} : vector<8x128xf32> to vector<8x32xf32>
    %263 = arith.negf %262 : vector<8x32xf32>
    %264 = math.exp %263 : vector<8x32xf32>
    %cst_58 = arith.constant 1.000000e+00 : f32
    %265 = vector.broadcast %cst_58 : f32 to vector<8x32xf32>
    %266 = arith.addf %265, %264 : vector<8x32xf32>
    %267 = arith.divf %265, %266 : vector<8x32xf32>
    %268 = vector.extract_strided_slice %261 {offsets = [0, 32], sizes = [8, 32], strides = [1, 1]} : vector<8x128xf32> to vector<8x32xf32>
    %269 = arith.negf %268 : vector<8x32xf32>
    %270 = math.exp %269 : vector<8x32xf32>
    %cst_59 = arith.constant 1.000000e+00 : f32
    %271 = vector.broadcast %cst_59 : f32 to vector<8x32xf32>
    %272 = arith.addf %271, %270 : vector<8x32xf32>
    %273 = arith.divf %271, %272 : vector<8x32xf32>
    %274 = vector.extract_strided_slice %261 {offsets = [0, 64], sizes = [8, 32], strides = [1, 1]} : vector<8x128xf32> to vector<8x32xf32>
    %275 = math.tanh %274 : vector<8x32xf32>
    %276 = vector.extract_strided_slice %261 {offsets = [0, 96], sizes = [8, 32], strides = [1, 1]} : vector<8x128xf32> to vector<8x32xf32>
    %277 = arith.negf %276 : vector<8x32xf32>
    %278 = math.exp %277 : vector<8x32xf32>
    %cst_60 = arith.constant 1.000000e+00 : f32
    %279 = vector.broadcast %cst_60 : f32 to vector<8x32xf32>
    %280 = arith.addf %279, %278 : vector<8x32xf32>
    %281 = arith.divf %279, %280 : vector<8x32xf32>
    %282 = arith.mulf %273, %214 : vector<8x32xf32>
    %283 = arith.mulf %267, %275 : vector<8x32xf32>
    %284 = arith.addf %282, %283 : vector<8x32xf32>
    %285 = math.tanh %284 : vector<8x32xf32>
    %286 = arith.mulf %281, %285 : vector<8x32xf32>
    %cst_61 = arith.constant dense<0.000000e+00> : vector<8x512xf32>
    %287 = tpu.matmul %286, %5, %cst_61 {dimension_numbers = #tpu.dot_dimension_numbers<[1], [0], [0], [1], [0, 0, 1, 1], [], []>} : vector<8x32xf32>, vector<32x512xf32>, vector<8x512xf32> -> vector<8x512xf32>
    %288 = vector.broadcast %6 : vector<1x512xf32> to vector<8x512xf32>
    %289 = arith.addf %287, %288 : vector<8x512xf32>
    %290 = math.tanh %289 : vector<8x512xf32>
    %291 = vector.broadcast %7 : vector<1x512xf32> to vector<8x512xf32>
    %292 = arith.mulf %290, %291 : vector<8x512xf32>
    %cst_62 = arith.constant dense<0.000000e+00> : vector<8xf32>
    %293 = vector.multi_reduction <add>, %292, %cst_62 [1] : vector<8x512xf32> to vector<8xf32>
    %294 = vector.shape_cast %293 : vector<8xf32> to vector<8x1xf32>
    %295 = vector.broadcast %8 : vector<1x1xf32> to vector<8x1xf32>
    %296 = arith.addf %294, %295 : vector<8x1xf32>
    %297 = tpu.concatenate %256, %286 in 0 : vector<8x32xf32>, vector<8x32xf32> -> vector<16x32xf32>
    %cst_63 = arith.constant dense<0.000000e+00> : vector<16x256xf32>
    %298 = tpu.matmul %297, %0, %cst_63 {dimension_numbers = #tpu.dot_dimension_numbers<[1], [0], [0], [1], [0, 0, 1, 1], [], []>} : vector<16x32xf32>, vector<32x256xf32>, vector<16x256xf32> -> vector<16x256xf32>
    %299 = vector.extract_strided_slice %12 {offsets = [32, 0], sizes = [8, 128], strides = [1, 1]} : vector<64x128xf32> to vector<8x128xf32>
    %300 = vector.extract_strided_slice %298 {offsets = [0, 0], sizes = [8, 128], strides = [1, 1]} : vector<16x256xf32> to vector<8x128xf32>
    %301 = arith.addf %299, %300 : vector<8x128xf32>
    %302 = vector.extract_strided_slice %301 {offsets = [0, 0], sizes = [8, 32], strides = [1, 1]} : vector<8x128xf32> to vector<8x32xf32>
    %303 = arith.negf %302 : vector<8x32xf32>
    %304 = math.exp %303 : vector<8x32xf32>
    %cst_64 = arith.constant 1.000000e+00 : f32
    %305 = vector.broadcast %cst_64 : f32 to vector<8x32xf32>
    %306 = arith.addf %305, %304 : vector<8x32xf32>
    %307 = arith.divf %305, %306 : vector<8x32xf32>
    %308 = vector.extract_strided_slice %301 {offsets = [0, 32], sizes = [8, 32], strides = [1, 1]} : vector<8x128xf32> to vector<8x32xf32>
    %309 = arith.negf %308 : vector<8x32xf32>
    %310 = math.exp %309 : vector<8x32xf32>
    %cst_65 = arith.constant 1.000000e+00 : f32
    %311 = vector.broadcast %cst_65 : f32 to vector<8x32xf32>
    %312 = arith.addf %311, %310 : vector<8x32xf32>
    %313 = arith.divf %311, %312 : vector<8x32xf32>
    %314 = vector.extract_strided_slice %301 {offsets = [0, 64], sizes = [8, 32], strides = [1, 1]} : vector<8x128xf32> to vector<8x32xf32>
    %315 = math.tanh %314 : vector<8x32xf32>
    %316 = vector.extract_strided_slice %301 {offsets = [0, 96], sizes = [8, 32], strides = [1, 1]} : vector<8x128xf32> to vector<8x32xf32>
    %317 = arith.negf %316 : vector<8x32xf32>
    %318 = math.exp %317 : vector<8x32xf32>
    %cst_66 = arith.constant 1.000000e+00 : f32
    %319 = vector.broadcast %cst_66 : f32 to vector<8x32xf32>
    %320 = arith.addf %319, %318 : vector<8x32xf32>
    %321 = arith.divf %319, %320 : vector<8x32xf32>
    %322 = arith.mulf %313, %254 : vector<8x32xf32>
    %323 = arith.mulf %307, %315 : vector<8x32xf32>
    %324 = arith.addf %322, %323 : vector<8x32xf32>
    %325 = math.tanh %324 : vector<8x32xf32>
    %326 = arith.mulf %321, %325 : vector<8x32xf32>
    %cst_67 = arith.constant dense<0.000000e+00> : vector<8x128xf32>
    %327 = tpu.matmul %326, %2, %cst_67 {dimension_numbers = #tpu.dot_dimension_numbers<[1], [0], [0], [1], [0, 0, 1, 1], [], []>} : vector<8x32xf32>, vector<32x128xf32>, vector<8x128xf32> -> vector<8x128xf32>
    %328 = vector.broadcast %4 : vector<1x128xf32> to vector<8x128xf32>
    %329 = arith.addf %327, %328 : vector<8x128xf32>
    %330 = vector.extract_strided_slice %298 {offsets = [8, 128], sizes = [8, 128], strides = [1, 1]} : vector<16x256xf32> to vector<8x128xf32>
    %331 = arith.addf %329, %330 : vector<8x128xf32>
    %332 = vector.extract_strided_slice %331 {offsets = [0, 0], sizes = [8, 32], strides = [1, 1]} : vector<8x128xf32> to vector<8x32xf32>
    %333 = arith.negf %332 : vector<8x32xf32>
    %334 = math.exp %333 : vector<8x32xf32>
    %cst_68 = arith.constant 1.000000e+00 : f32
    %335 = vector.broadcast %cst_68 : f32 to vector<8x32xf32>
    %336 = arith.addf %335, %334 : vector<8x32xf32>
    %337 = arith.divf %335, %336 : vector<8x32xf32>
    %338 = vector.extract_strided_slice %331 {offsets = [0, 32], sizes = [8, 32], strides = [1, 1]} : vector<8x128xf32> to vector<8x32xf32>
    %339 = arith.negf %338 : vector<8x32xf32>
    %340 = math.exp %339 : vector<8x32xf32>
    %cst_69 = arith.constant 1.000000e+00 : f32
    %341 = vector.broadcast %cst_69 : f32 to vector<8x32xf32>
    %342 = arith.addf %341, %340 : vector<8x32xf32>
    %343 = arith.divf %341, %342 : vector<8x32xf32>
    %344 = vector.extract_strided_slice %331 {offsets = [0, 64], sizes = [8, 32], strides = [1, 1]} : vector<8x128xf32> to vector<8x32xf32>
    %345 = math.tanh %344 : vector<8x32xf32>
    %346 = vector.extract_strided_slice %331 {offsets = [0, 96], sizes = [8, 32], strides = [1, 1]} : vector<8x128xf32> to vector<8x32xf32>
    %347 = arith.negf %346 : vector<8x32xf32>
    %348 = math.exp %347 : vector<8x32xf32>
    %cst_70 = arith.constant 1.000000e+00 : f32
    %349 = vector.broadcast %cst_70 : f32 to vector<8x32xf32>
    %350 = arith.addf %349, %348 : vector<8x32xf32>
    %351 = arith.divf %349, %350 : vector<8x32xf32>
    %352 = arith.mulf %343, %284 : vector<8x32xf32>
    %353 = arith.mulf %337, %345 : vector<8x32xf32>
    %354 = arith.addf %352, %353 : vector<8x32xf32>
    %355 = math.tanh %354 : vector<8x32xf32>
    %356 = arith.mulf %351, %355 : vector<8x32xf32>
    %cst_71 = arith.constant dense<0.000000e+00> : vector<8x512xf32>
    %357 = tpu.matmul %356, %5, %cst_71 {dimension_numbers = #tpu.dot_dimension_numbers<[1], [0], [0], [1], [0, 0, 1, 1], [], []>} : vector<8x32xf32>, vector<32x512xf32>, vector<8x512xf32> -> vector<8x512xf32>
    %358 = vector.broadcast %6 : vector<1x512xf32> to vector<8x512xf32>
    %359 = arith.addf %357, %358 : vector<8x512xf32>
    %360 = math.tanh %359 : vector<8x512xf32>
    %361 = vector.broadcast %7 : vector<1x512xf32> to vector<8x512xf32>
    %362 = arith.mulf %360, %361 : vector<8x512xf32>
    %cst_72 = arith.constant dense<0.000000e+00> : vector<8xf32>
    %363 = vector.multi_reduction <add>, %362, %cst_72 [1] : vector<8x512xf32> to vector<8xf32>
    %364 = vector.shape_cast %363 : vector<8xf32> to vector<8x1xf32>
    %365 = vector.broadcast %8 : vector<1x1xf32> to vector<8x1xf32>
    %366 = arith.addf %364, %365 : vector<8x1xf32>
    %367 = tpu.concatenate %326, %356 in 0 : vector<8x32xf32>, vector<8x32xf32> -> vector<16x32xf32>
    %cst_73 = arith.constant dense<0.000000e+00> : vector<16x256xf32>
    %368 = tpu.matmul %367, %0, %cst_73 {dimension_numbers = #tpu.dot_dimension_numbers<[1], [0], [0], [1], [0, 0, 1, 1], [], []>} : vector<16x32xf32>, vector<32x256xf32>, vector<16x256xf32> -> vector<16x256xf32>
    %369 = vector.extract_strided_slice %12 {offsets = [40, 0], sizes = [8, 128], strides = [1, 1]} : vector<64x128xf32> to vector<8x128xf32>
    %370 = vector.extract_strided_slice %368 {offsets = [0, 0], sizes = [8, 128], strides = [1, 1]} : vector<16x256xf32> to vector<8x128xf32>
    %371 = arith.addf %369, %370 : vector<8x128xf32>
    %372 = vector.extract_strided_slice %371 {offsets = [0, 0], sizes = [8, 32], strides = [1, 1]} : vector<8x128xf32> to vector<8x32xf32>
    %373 = arith.negf %372 : vector<8x32xf32>
    %374 = math.exp %373 : vector<8x32xf32>
    %cst_74 = arith.constant 1.000000e+00 : f32
    %375 = vector.broadcast %cst_74 : f32 to vector<8x32xf32>
    %376 = arith.addf %375, %374 : vector<8x32xf32>
    %377 = arith.divf %375, %376 : vector<8x32xf32>
    %378 = vector.extract_strided_slice %371 {offsets = [0, 32], sizes = [8, 32], strides = [1, 1]} : vector<8x128xf32> to vector<8x32xf32>
    %379 = arith.negf %378 : vector<8x32xf32>
    %380 = math.exp %379 : vector<8x32xf32>
    %cst_75 = arith.constant 1.000000e+00 : f32
    %381 = vector.broadcast %cst_75 : f32 to vector<8x32xf32>
    %382 = arith.addf %381, %380 : vector<8x32xf32>
    %383 = arith.divf %381, %382 : vector<8x32xf32>
    %384 = vector.extract_strided_slice %371 {offsets = [0, 64], sizes = [8, 32], strides = [1, 1]} : vector<8x128xf32> to vector<8x32xf32>
    %385 = math.tanh %384 : vector<8x32xf32>
    %386 = vector.extract_strided_slice %371 {offsets = [0, 96], sizes = [8, 32], strides = [1, 1]} : vector<8x128xf32> to vector<8x32xf32>
    %387 = arith.negf %386 : vector<8x32xf32>
    %388 = math.exp %387 : vector<8x32xf32>
    %cst_76 = arith.constant 1.000000e+00 : f32
    %389 = vector.broadcast %cst_76 : f32 to vector<8x32xf32>
    %390 = arith.addf %389, %388 : vector<8x32xf32>
    %391 = arith.divf %389, %390 : vector<8x32xf32>
    %392 = arith.mulf %383, %324 : vector<8x32xf32>
    %393 = arith.mulf %377, %385 : vector<8x32xf32>
    %394 = arith.addf %392, %393 : vector<8x32xf32>
    %395 = math.tanh %394 : vector<8x32xf32>
    %396 = arith.mulf %391, %395 : vector<8x32xf32>
    %cst_77 = arith.constant dense<0.000000e+00> : vector<8x128xf32>
    %397 = tpu.matmul %396, %2, %cst_77 {dimension_numbers = #tpu.dot_dimension_numbers<[1], [0], [0], [1], [0, 0, 1, 1], [], []>} : vector<8x32xf32>, vector<32x128xf32>, vector<8x128xf32> -> vector<8x128xf32>
    %398 = vector.broadcast %4 : vector<1x128xf32> to vector<8x128xf32>
    %399 = arith.addf %397, %398 : vector<8x128xf32>
    %400 = vector.extract_strided_slice %368 {offsets = [8, 128], sizes = [8, 128], strides = [1, 1]} : vector<16x256xf32> to vector<8x128xf32>
    %401 = arith.addf %399, %400 : vector<8x128xf32>
    %402 = vector.extract_strided_slice %401 {offsets = [0, 0], sizes = [8, 32], strides = [1, 1]} : vector<8x128xf32> to vector<8x32xf32>
    %403 = arith.negf %402 : vector<8x32xf32>
    %404 = math.exp %403 : vector<8x32xf32>
    %cst_78 = arith.constant 1.000000e+00 : f32
    %405 = vector.broadcast %cst_78 : f32 to vector<8x32xf32>
    %406 = arith.addf %405, %404 : vector<8x32xf32>
    %407 = arith.divf %405, %406 : vector<8x32xf32>
    %408 = vector.extract_strided_slice %401 {offsets = [0, 32], sizes = [8, 32], strides = [1, 1]} : vector<8x128xf32> to vector<8x32xf32>
    %409 = arith.negf %408 : vector<8x32xf32>
    %410 = math.exp %409 : vector<8x32xf32>
    %cst_79 = arith.constant 1.000000e+00 : f32
    %411 = vector.broadcast %cst_79 : f32 to vector<8x32xf32>
    %412 = arith.addf %411, %410 : vector<8x32xf32>
    %413 = arith.divf %411, %412 : vector<8x32xf32>
    %414 = vector.extract_strided_slice %401 {offsets = [0, 64], sizes = [8, 32], strides = [1, 1]} : vector<8x128xf32> to vector<8x32xf32>
    %415 = math.tanh %414 : vector<8x32xf32>
    %416 = vector.extract_strided_slice %401 {offsets = [0, 96], sizes = [8, 32], strides = [1, 1]} : vector<8x128xf32> to vector<8x32xf32>
    %417 = arith.negf %416 : vector<8x32xf32>
    %418 = math.exp %417 : vector<8x32xf32>
    %cst_80 = arith.constant 1.000000e+00 : f32
    %419 = vector.broadcast %cst_80 : f32 to vector<8x32xf32>
    %420 = arith.addf %419, %418 : vector<8x32xf32>
    %421 = arith.divf %419, %420 : vector<8x32xf32>
    %422 = arith.mulf %413, %354 : vector<8x32xf32>
    %423 = arith.mulf %407, %415 : vector<8x32xf32>
    %424 = arith.addf %422, %423 : vector<8x32xf32>
    %425 = math.tanh %424 : vector<8x32xf32>
    %426 = arith.mulf %421, %425 : vector<8x32xf32>
    %cst_81 = arith.constant dense<0.000000e+00> : vector<8x512xf32>
    %427 = tpu.matmul %426, %5, %cst_81 {dimension_numbers = #tpu.dot_dimension_numbers<[1], [0], [0], [1], [0, 0, 1, 1], [], []>} : vector<8x32xf32>, vector<32x512xf32>, vector<8x512xf32> -> vector<8x512xf32>
    %428 = vector.broadcast %6 : vector<1x512xf32> to vector<8x512xf32>
    %429 = arith.addf %427, %428 : vector<8x512xf32>
    %430 = math.tanh %429 : vector<8x512xf32>
    %431 = vector.broadcast %7 : vector<1x512xf32> to vector<8x512xf32>
    %432 = arith.mulf %430, %431 : vector<8x512xf32>
    %cst_82 = arith.constant dense<0.000000e+00> : vector<8xf32>
    %433 = vector.multi_reduction <add>, %432, %cst_82 [1] : vector<8x512xf32> to vector<8xf32>
    %434 = vector.shape_cast %433 : vector<8xf32> to vector<8x1xf32>
    %435 = vector.broadcast %8 : vector<1x1xf32> to vector<8x1xf32>
    %436 = arith.addf %434, %435 : vector<8x1xf32>
    %437 = tpu.concatenate %396, %426 in 0 : vector<8x32xf32>, vector<8x32xf32> -> vector<16x32xf32>
    %cst_83 = arith.constant dense<0.000000e+00> : vector<16x256xf32>
    %438 = tpu.matmul %437, %0, %cst_83 {dimension_numbers = #tpu.dot_dimension_numbers<[1], [0], [0], [1], [0, 0, 1, 1], [], []>} : vector<16x32xf32>, vector<32x256xf32>, vector<16x256xf32> -> vector<16x256xf32>
    %439 = vector.extract_strided_slice %12 {offsets = [48, 0], sizes = [8, 128], strides = [1, 1]} : vector<64x128xf32> to vector<8x128xf32>
    %440 = vector.extract_strided_slice %438 {offsets = [0, 0], sizes = [8, 128], strides = [1, 1]} : vector<16x256xf32> to vector<8x128xf32>
    %441 = arith.addf %439, %440 : vector<8x128xf32>
    %442 = vector.extract_strided_slice %441 {offsets = [0, 0], sizes = [8, 32], strides = [1, 1]} : vector<8x128xf32> to vector<8x32xf32>
    %443 = arith.negf %442 : vector<8x32xf32>
    %444 = math.exp %443 : vector<8x32xf32>
    %cst_84 = arith.constant 1.000000e+00 : f32
    %445 = vector.broadcast %cst_84 : f32 to vector<8x32xf32>
    %446 = arith.addf %445, %444 : vector<8x32xf32>
    %447 = arith.divf %445, %446 : vector<8x32xf32>
    %448 = vector.extract_strided_slice %441 {offsets = [0, 32], sizes = [8, 32], strides = [1, 1]} : vector<8x128xf32> to vector<8x32xf32>
    %449 = arith.negf %448 : vector<8x32xf32>
    %450 = math.exp %449 : vector<8x32xf32>
    %cst_85 = arith.constant 1.000000e+00 : f32
    %451 = vector.broadcast %cst_85 : f32 to vector<8x32xf32>
    %452 = arith.addf %451, %450 : vector<8x32xf32>
    %453 = arith.divf %451, %452 : vector<8x32xf32>
    %454 = vector.extract_strided_slice %441 {offsets = [0, 64], sizes = [8, 32], strides = [1, 1]} : vector<8x128xf32> to vector<8x32xf32>
    %455 = math.tanh %454 : vector<8x32xf32>
    %456 = vector.extract_strided_slice %441 {offsets = [0, 96], sizes = [8, 32], strides = [1, 1]} : vector<8x128xf32> to vector<8x32xf32>
    %457 = arith.negf %456 : vector<8x32xf32>
    %458 = math.exp %457 : vector<8x32xf32>
    %cst_86 = arith.constant 1.000000e+00 : f32
    %459 = vector.broadcast %cst_86 : f32 to vector<8x32xf32>
    %460 = arith.addf %459, %458 : vector<8x32xf32>
    %461 = arith.divf %459, %460 : vector<8x32xf32>
    %462 = arith.mulf %453, %394 : vector<8x32xf32>
    %463 = arith.mulf %447, %455 : vector<8x32xf32>
    %464 = arith.addf %462, %463 : vector<8x32xf32>
    %465 = math.tanh %464 : vector<8x32xf32>
    %466 = arith.mulf %461, %465 : vector<8x32xf32>
    %cst_87 = arith.constant dense<0.000000e+00> : vector<8x128xf32>
    %467 = tpu.matmul %466, %2, %cst_87 {dimension_numbers = #tpu.dot_dimension_numbers<[1], [0], [0], [1], [0, 0, 1, 1], [], []>} : vector<8x32xf32>, vector<32x128xf32>, vector<8x128xf32> -> vector<8x128xf32>
    %468 = vector.broadcast %4 : vector<1x128xf32> to vector<8x128xf32>
    %469 = arith.addf %467, %468 : vector<8x128xf32>
    %470 = vector.extract_strided_slice %438 {offsets = [8, 128], sizes = [8, 128], strides = [1, 1]} : vector<16x256xf32> to vector<8x128xf32>
    %471 = arith.addf %469, %470 : vector<8x128xf32>
    %472 = vector.extract_strided_slice %471 {offsets = [0, 0], sizes = [8, 32], strides = [1, 1]} : vector<8x128xf32> to vector<8x32xf32>
    %473 = arith.negf %472 : vector<8x32xf32>
    %474 = math.exp %473 : vector<8x32xf32>
    %cst_88 = arith.constant 1.000000e+00 : f32
    %475 = vector.broadcast %cst_88 : f32 to vector<8x32xf32>
    %476 = arith.addf %475, %474 : vector<8x32xf32>
    %477 = arith.divf %475, %476 : vector<8x32xf32>
    %478 = vector.extract_strided_slice %471 {offsets = [0, 32], sizes = [8, 32], strides = [1, 1]} : vector<8x128xf32> to vector<8x32xf32>
    %479 = arith.negf %478 : vector<8x32xf32>
    %480 = math.exp %479 : vector<8x32xf32>
    %cst_89 = arith.constant 1.000000e+00 : f32
    %481 = vector.broadcast %cst_89 : f32 to vector<8x32xf32>
    %482 = arith.addf %481, %480 : vector<8x32xf32>
    %483 = arith.divf %481, %482 : vector<8x32xf32>
    %484 = vector.extract_strided_slice %471 {offsets = [0, 64], sizes = [8, 32], strides = [1, 1]} : vector<8x128xf32> to vector<8x32xf32>
    %485 = math.tanh %484 : vector<8x32xf32>
    %486 = vector.extract_strided_slice %471 {offsets = [0, 96], sizes = [8, 32], strides = [1, 1]} : vector<8x128xf32> to vector<8x32xf32>
    %487 = arith.negf %486 : vector<8x32xf32>
    %488 = math.exp %487 : vector<8x32xf32>
    %cst_90 = arith.constant 1.000000e+00 : f32
    %489 = vector.broadcast %cst_90 : f32 to vector<8x32xf32>
    %490 = arith.addf %489, %488 : vector<8x32xf32>
    %491 = arith.divf %489, %490 : vector<8x32xf32>
    %492 = arith.mulf %483, %424 : vector<8x32xf32>
    %493 = arith.mulf %477, %485 : vector<8x32xf32>
    %494 = arith.addf %492, %493 : vector<8x32xf32>
    %495 = math.tanh %494 : vector<8x32xf32>
    %496 = arith.mulf %491, %495 : vector<8x32xf32>
    %cst_91 = arith.constant dense<0.000000e+00> : vector<8x512xf32>
    %497 = tpu.matmul %496, %5, %cst_91 {dimension_numbers = #tpu.dot_dimension_numbers<[1], [0], [0], [1], [0, 0, 1, 1], [], []>} : vector<8x32xf32>, vector<32x512xf32>, vector<8x512xf32> -> vector<8x512xf32>
    %498 = vector.broadcast %6 : vector<1x512xf32> to vector<8x512xf32>
    %499 = arith.addf %497, %498 : vector<8x512xf32>
    %500 = math.tanh %499 : vector<8x512xf32>
    %501 = vector.broadcast %7 : vector<1x512xf32> to vector<8x512xf32>
    %502 = arith.mulf %500, %501 : vector<8x512xf32>
    %cst_92 = arith.constant dense<0.000000e+00> : vector<8xf32>
    %503 = vector.multi_reduction <add>, %502, %cst_92 [1] : vector<8x512xf32> to vector<8xf32>
    %504 = vector.shape_cast %503 : vector<8xf32> to vector<8x1xf32>
    %505 = vector.broadcast %8 : vector<1x1xf32> to vector<8x1xf32>
    %506 = arith.addf %504, %505 : vector<8x1xf32>
    %507 = tpu.concatenate %466, %496 in 0 : vector<8x32xf32>, vector<8x32xf32> -> vector<16x32xf32>
    %cst_93 = arith.constant dense<0.000000e+00> : vector<16x256xf32>
    %508 = tpu.matmul %507, %0, %cst_93 {dimension_numbers = #tpu.dot_dimension_numbers<[1], [0], [0], [1], [0, 0, 1, 1], [], []>} : vector<16x32xf32>, vector<32x256xf32>, vector<16x256xf32> -> vector<16x256xf32>
    %509 = vector.extract_strided_slice %12 {offsets = [56, 0], sizes = [8, 128], strides = [1, 1]} : vector<64x128xf32> to vector<8x128xf32>
    %510 = vector.extract_strided_slice %508 {offsets = [0, 0], sizes = [8, 128], strides = [1, 1]} : vector<16x256xf32> to vector<8x128xf32>
    %511 = arith.addf %509, %510 : vector<8x128xf32>
    %512 = vector.extract_strided_slice %511 {offsets = [0, 0], sizes = [8, 32], strides = [1, 1]} : vector<8x128xf32> to vector<8x32xf32>
    %513 = arith.negf %512 : vector<8x32xf32>
    %514 = math.exp %513 : vector<8x32xf32>
    %cst_94 = arith.constant 1.000000e+00 : f32
    %515 = vector.broadcast %cst_94 : f32 to vector<8x32xf32>
    %516 = arith.addf %515, %514 : vector<8x32xf32>
    %517 = arith.divf %515, %516 : vector<8x32xf32>
    %518 = vector.extract_strided_slice %511 {offsets = [0, 32], sizes = [8, 32], strides = [1, 1]} : vector<8x128xf32> to vector<8x32xf32>
    %519 = arith.negf %518 : vector<8x32xf32>
    %520 = math.exp %519 : vector<8x32xf32>
    %cst_95 = arith.constant 1.000000e+00 : f32
    %521 = vector.broadcast %cst_95 : f32 to vector<8x32xf32>
    %522 = arith.addf %521, %520 : vector<8x32xf32>
    %523 = arith.divf %521, %522 : vector<8x32xf32>
    %524 = vector.extract_strided_slice %511 {offsets = [0, 64], sizes = [8, 32], strides = [1, 1]} : vector<8x128xf32> to vector<8x32xf32>
    %525 = math.tanh %524 : vector<8x32xf32>
    %526 = vector.extract_strided_slice %511 {offsets = [0, 96], sizes = [8, 32], strides = [1, 1]} : vector<8x128xf32> to vector<8x32xf32>
    %527 = arith.negf %526 : vector<8x32xf32>
    %528 = math.exp %527 : vector<8x32xf32>
    %cst_96 = arith.constant 1.000000e+00 : f32
    %529 = vector.broadcast %cst_96 : f32 to vector<8x32xf32>
    %530 = arith.addf %529, %528 : vector<8x32xf32>
    %531 = arith.divf %529, %530 : vector<8x32xf32>
    %532 = arith.mulf %523, %464 : vector<8x32xf32>
    %533 = arith.mulf %517, %525 : vector<8x32xf32>
    %534 = arith.addf %532, %533 : vector<8x32xf32>
    %535 = math.tanh %534 : vector<8x32xf32>
    %536 = arith.mulf %531, %535 : vector<8x32xf32>
    %cst_97 = arith.constant dense<0.000000e+00> : vector<8x128xf32>
    %537 = tpu.matmul %536, %2, %cst_97 {dimension_numbers = #tpu.dot_dimension_numbers<[1], [0], [0], [1], [0, 0, 1, 1], [], []>} : vector<8x32xf32>, vector<32x128xf32>, vector<8x128xf32> -> vector<8x128xf32>
    %538 = vector.broadcast %4 : vector<1x128xf32> to vector<8x128xf32>
    %539 = arith.addf %537, %538 : vector<8x128xf32>
    %540 = vector.extract_strided_slice %508 {offsets = [8, 128], sizes = [8, 128], strides = [1, 1]} : vector<16x256xf32> to vector<8x128xf32>
    %541 = arith.addf %539, %540 : vector<8x128xf32>
    %542 = vector.extract_strided_slice %541 {offsets = [0, 0], sizes = [8, 32], strides = [1, 1]} : vector<8x128xf32> to vector<8x32xf32>
    %543 = arith.negf %542 : vector<8x32xf32>
    %544 = math.exp %543 : vector<8x32xf32>
    %cst_98 = arith.constant 1.000000e+00 : f32
    %545 = vector.broadcast %cst_98 : f32 to vector<8x32xf32>
    %546 = arith.addf %545, %544 : vector<8x32xf32>
    %547 = arith.divf %545, %546 : vector<8x32xf32>
    %548 = vector.extract_strided_slice %541 {offsets = [0, 32], sizes = [8, 32], strides = [1, 1]} : vector<8x128xf32> to vector<8x32xf32>
    %549 = arith.negf %548 : vector<8x32xf32>
    %550 = math.exp %549 : vector<8x32xf32>
    %cst_99 = arith.constant 1.000000e+00 : f32
    %551 = vector.broadcast %cst_99 : f32 to vector<8x32xf32>
    %552 = arith.addf %551, %550 : vector<8x32xf32>
    %553 = arith.divf %551, %552 : vector<8x32xf32>
    %554 = vector.extract_strided_slice %541 {offsets = [0, 64], sizes = [8, 32], strides = [1, 1]} : vector<8x128xf32> to vector<8x32xf32>
    %555 = math.tanh %554 : vector<8x32xf32>
    %556 = vector.extract_strided_slice %541 {offsets = [0, 96], sizes = [8, 32], strides = [1, 1]} : vector<8x128xf32> to vector<8x32xf32>
    %557 = arith.negf %556 : vector<8x32xf32>
    %558 = math.exp %557 : vector<8x32xf32>
    %cst_100 = arith.constant 1.000000e+00 : f32
    %559 = vector.broadcast %cst_100 : f32 to vector<8x32xf32>
    %560 = arith.addf %559, %558 : vector<8x32xf32>
    %561 = arith.divf %559, %560 : vector<8x32xf32>
    %562 = arith.mulf %553, %494 : vector<8x32xf32>
    %563 = arith.mulf %547, %555 : vector<8x32xf32>
    %564 = arith.addf %562, %563 : vector<8x32xf32>
    %565 = math.tanh %564 : vector<8x32xf32>
    %566 = arith.mulf %561, %565 : vector<8x32xf32>
    %cst_101 = arith.constant dense<0.000000e+00> : vector<8x512xf32>
    %567 = tpu.matmul %566, %5, %cst_101 {dimension_numbers = #tpu.dot_dimension_numbers<[1], [0], [0], [1], [0, 0, 1, 1], [], []>} : vector<8x32xf32>, vector<32x512xf32>, vector<8x512xf32> -> vector<8x512xf32>
    %568 = vector.broadcast %6 : vector<1x512xf32> to vector<8x512xf32>
    %569 = arith.addf %567, %568 : vector<8x512xf32>
    %570 = math.tanh %569 : vector<8x512xf32>
    %571 = vector.broadcast %7 : vector<1x512xf32> to vector<8x512xf32>
    %572 = arith.mulf %570, %571 : vector<8x512xf32>
    %cst_102 = arith.constant dense<0.000000e+00> : vector<8xf32>
    %573 = vector.multi_reduction <add>, %572, %cst_102 [1] : vector<8x512xf32> to vector<8xf32>
    %574 = vector.shape_cast %573 : vector<8xf32> to vector<8x1xf32>
    %575 = vector.broadcast %8 : vector<1x1xf32> to vector<8x1xf32>
    %576 = arith.addf %574, %575 : vector<8x1xf32>
    %577 = arith.maximumf %86, %156 : vector<8x1xf32>
    %578 = arith.maximumf %577, %226 : vector<8x1xf32>
    %579 = arith.maximumf %578, %296 : vector<8x1xf32>
    %580 = arith.maximumf %579, %366 : vector<8x1xf32>
    %581 = arith.maximumf %580, %436 : vector<8x1xf32>
    %582 = arith.maximumf %581, %506 : vector<8x1xf32>
    %583 = arith.maximumf %582, %576 : vector<8x1xf32>
    %cst_103 = arith.constant 0.000000e+00 : f32
    %584 = vector.broadcast %cst_103 : f32 to vector<8x1xf32>
    %cst_104 = arith.constant 0.000000e+00 : f32
    %585 = vector.broadcast %cst_104 : f32 to vector<8x32xf32>
    %586 = arith.subf %86, %583 : vector<8x1xf32>
    %587 = math.exp %586 : vector<8x1xf32>
    %588 = arith.addf %584, %587 : vector<8x1xf32>
    %589 = vector.broadcast %587 : vector<8x1xf32> to vector<8x32xf32>
    %590 = arith.mulf %589, %76 : vector<8x32xf32>
    %591 = arith.addf %585, %590 : vector<8x32xf32>
    %592 = arith.subf %156, %583 : vector<8x1xf32>
    %593 = math.exp %592 : vector<8x1xf32>
    %594 = arith.addf %588, %593 : vector<8x1xf32>
    %595 = vector.broadcast %593 : vector<8x1xf32> to vector<8x32xf32>
    %596 = arith.mulf %595, %146 : vector<8x32xf32>
    %597 = arith.addf %591, %596 : vector<8x32xf32>
    %598 = arith.subf %226, %583 : vector<8x1xf32>
    %599 = math.exp %598 : vector<8x1xf32>
    %600 = arith.addf %594, %599 : vector<8x1xf32>
    %601 = vector.broadcast %599 : vector<8x1xf32> to vector<8x32xf32>
    %602 = arith.mulf %601, %216 : vector<8x32xf32>
    %603 = arith.addf %597, %602 : vector<8x32xf32>
    %604 = arith.subf %296, %583 : vector<8x1xf32>
    %605 = math.exp %604 : vector<8x1xf32>
    %606 = arith.addf %600, %605 : vector<8x1xf32>
    %607 = vector.broadcast %605 : vector<8x1xf32> to vector<8x32xf32>
    %608 = arith.mulf %607, %286 : vector<8x32xf32>
    %609 = arith.addf %603, %608 : vector<8x32xf32>
    %610 = arith.subf %366, %583 : vector<8x1xf32>
    %611 = math.exp %610 : vector<8x1xf32>
    %612 = arith.addf %606, %611 : vector<8x1xf32>
    %613 = vector.broadcast %611 : vector<8x1xf32> to vector<8x32xf32>
    %614 = arith.mulf %613, %356 : vector<8x32xf32>
    %615 = arith.addf %609, %614 : vector<8x32xf32>
    %616 = arith.subf %436, %583 : vector<8x1xf32>
    %617 = math.exp %616 : vector<8x1xf32>
    %618 = arith.addf %612, %617 : vector<8x1xf32>
    %619 = vector.broadcast %617 : vector<8x1xf32> to vector<8x32xf32>
    %620 = arith.mulf %619, %426 : vector<8x32xf32>
    %621 = arith.addf %615, %620 : vector<8x32xf32>
    %622 = arith.subf %506, %583 : vector<8x1xf32>
    %623 = math.exp %622 : vector<8x1xf32>
    %624 = arith.addf %618, %623 : vector<8x1xf32>
    %625 = vector.broadcast %623 : vector<8x1xf32> to vector<8x32xf32>
    %626 = arith.mulf %625, %496 : vector<8x32xf32>
    %627 = arith.addf %621, %626 : vector<8x32xf32>
    %628 = arith.subf %576, %583 : vector<8x1xf32>
    %629 = math.exp %628 : vector<8x1xf32>
    %630 = arith.addf %624, %629 : vector<8x1xf32>
    %631 = vector.broadcast %629 : vector<8x1xf32> to vector<8x32xf32>
    %632 = arith.mulf %631, %566 : vector<8x32xf32>
    %633 = arith.addf %627, %632 : vector<8x32xf32>
    %634 = vector.broadcast %630 : vector<8x1xf32> to vector<8x32xf32>
    %635 = arith.divf %633, %634 : vector<8x32xf32>
    %c0_105 = arith.constant 0 : index
    %c0_106 = arith.constant 0 : index
    %636 = vector.load %arg1[%c0_105, %c0_106] : memref<8x24xf32, #tpu.memory_space<vmem>>, vector<8x24xf32>
    %c0_107 = arith.constant 0 : index
    %c0_108 = arith.constant 0 : index
    %637 = vector.load %arg11[%c0_107, %c0_108] : memref<24x512xf32, #tpu.memory_space<vmem>>, vector<24x512xf32>
    %cst_109 = arith.constant dense<0.000000e+00> : vector<8x512xf32>
    %638 = tpu.matmul %636, %637, %cst_109 {dimension_numbers = #tpu.dot_dimension_numbers<[1], [0], [0], [1], [0, 0, 1, 1], [], []>} : vector<8x24xf32>, vector<24x512xf32>, vector<8x512xf32> -> vector<8x512xf32>
    %c0_110 = arith.constant 0 : index
    %c0_111 = arith.constant 0 : index
    %639 = vector.load %arg12[%c0_110, %c0_111] : memref<1x512xf32, #tpu.memory_space<vmem>>, vector<1x512xf32>
    %640 = vector.broadcast %639 : vector<1x512xf32> to vector<8x512xf32>
    %641 = arith.addf %638, %640 : vector<8x512xf32>
    %cst_112 = arith.constant 5.000000e-01 : f32
    %642 = vector.broadcast %cst_112 : f32 to vector<8x512xf32>
    %643 = arith.mulf %642, %641 : vector<8x512xf32>
    %cst_113 = arith.constant 0.707106769 : f32
    %644 = vector.broadcast %cst_113 : f32 to vector<8x512xf32>
    %645 = arith.mulf %641, %644 : vector<8x512xf32>
    %646 = math.absf %645 : vector<8x512xf32>
    %cst_114 = arith.constant 0.327591091 : f32
    %647 = vector.broadcast %cst_114 : f32 to vector<8x512xf32>
    %648 = arith.mulf %647, %646 : vector<8x512xf32>
    %cst_115 = arith.constant 1.000000e+00 : f32
    %649 = vector.broadcast %cst_115 : f32 to vector<8x512xf32>
    %650 = arith.addf %649, %648 : vector<8x512xf32>
    %cst_116 = arith.constant 1.000000e+00 : f32
    %651 = vector.broadcast %cst_116 : f32 to vector<8x512xf32>
    %652 = arith.divf %651, %650 : vector<8x512xf32>
    %cst_117 = arith.constant 1.06140542 : f32
    %653 = vector.broadcast %cst_117 : f32 to vector<8x512xf32>
    %654 = arith.mulf %653, %652 : vector<8x512xf32>
    %cst_118 = arith.constant -1.45315206 : f32
    %655 = vector.broadcast %cst_118 : f32 to vector<8x512xf32>
    %656 = arith.addf %654, %655 : vector<8x512xf32>
    %657 = arith.mulf %656, %652 : vector<8x512xf32>
    %cst_119 = arith.constant 1.42141378 : f32
    %658 = vector.broadcast %cst_119 : f32 to vector<8x512xf32>
    %659 = arith.addf %657, %658 : vector<8x512xf32>
    %660 = arith.mulf %659, %652 : vector<8x512xf32>
    %cst_120 = arith.constant -0.284496725 : f32
    %661 = vector.broadcast %cst_120 : f32 to vector<8x512xf32>
    %662 = arith.addf %660, %661 : vector<8x512xf32>
    %663 = arith.mulf %662, %652 : vector<8x512xf32>
    %cst_121 = arith.constant 0.254829586 : f32
    %664 = vector.broadcast %cst_121 : f32 to vector<8x512xf32>
    %665 = arith.addf %663, %664 : vector<8x512xf32>
    %666 = arith.mulf %665, %652 : vector<8x512xf32>
    %cst_122 = arith.constant 0.000000e+00 : f32
    %667 = vector.broadcast %cst_122 : f32 to vector<8x512xf32>
    %668 = arith.subf %667, %646 : vector<8x512xf32>
    %669 = arith.mulf %668, %646 : vector<8x512xf32>
    %670 = math.exp %669 : vector<8x512xf32>
    %671 = arith.mulf %666, %670 : vector<8x512xf32>
    %cst_123 = arith.constant 1.000000e+00 : f32
    %672 = vector.broadcast %cst_123 : f32 to vector<8x512xf32>
    %673 = arith.subf %672, %671 : vector<8x512xf32>
    %cst_124 = arith.constant 0.000000e+00 : f32
    %674 = vector.broadcast %cst_124 : f32 to vector<8x512xf32>
    %675 = arith.cmpf olt, %645, %674 : vector<8x512xf32>
    %cst_125 = arith.constant 0.000000e+00 : f32
    %676 = vector.broadcast %cst_125 : f32 to vector<8x512xf32>
    %677 = arith.subf %676, %673 : vector<8x512xf32>
    %678 = arith.select %675, %677, %673 : vector<8x512xi1>, vector<8x512xf32>
    %cst_126 = arith.constant 1.000000e+00 : f32
    %679 = vector.broadcast %cst_126 : f32 to vector<8x512xf32>
    %680 = arith.addf %679, %678 : vector<8x512xf32>
    %681 = arith.mulf %643, %680 : vector<8x512xf32>
    %c0_127 = arith.constant 0 : index
    %c0_128 = arith.constant 0 : index
    %682 = vector.load %arg13[%c0_127, %c0_128] : memref<512x512xf32, #tpu.memory_space<vmem>>, vector<512x512xf32>
    %cst_129 = arith.constant dense<0.000000e+00> : vector<8x512xf32>
    %683 = tpu.matmul %681, %682, %cst_129 {dimension_numbers = #tpu.dot_dimension_numbers<[1], [0], [0], [1], [0, 0, 1, 1], [], []>} : vector<8x512xf32>, vector<512x512xf32>, vector<8x512xf32> -> vector<8x512xf32>
    %c0_130 = arith.constant 0 : index
    %c0_131 = arith.constant 0 : index
    %684 = vector.load %arg14[%c0_130, %c0_131] : memref<1x512xf32, #tpu.memory_space<vmem>>, vector<1x512xf32>
    %685 = vector.broadcast %684 : vector<1x512xf32> to vector<8x512xf32>
    %686 = arith.addf %683, %685 : vector<8x512xf32>
    %cst_132 = arith.constant 5.000000e-01 : f32
    %687 = vector.broadcast %cst_132 : f32 to vector<8x512xf32>
    %688 = arith.mulf %687, %686 : vector<8x512xf32>
    %cst_133 = arith.constant 0.707106769 : f32
    %689 = vector.broadcast %cst_133 : f32 to vector<8x512xf32>
    %690 = arith.mulf %686, %689 : vector<8x512xf32>
    %691 = math.absf %690 : vector<8x512xf32>
    %cst_134 = arith.constant 0.327591091 : f32
    %692 = vector.broadcast %cst_134 : f32 to vector<8x512xf32>
    %693 = arith.mulf %692, %691 : vector<8x512xf32>
    %cst_135 = arith.constant 1.000000e+00 : f32
    %694 = vector.broadcast %cst_135 : f32 to vector<8x512xf32>
    %695 = arith.addf %694, %693 : vector<8x512xf32>
    %cst_136 = arith.constant 1.000000e+00 : f32
    %696 = vector.broadcast %cst_136 : f32 to vector<8x512xf32>
    %697 = arith.divf %696, %695 : vector<8x512xf32>
    %cst_137 = arith.constant 1.06140542 : f32
    %698 = vector.broadcast %cst_137 : f32 to vector<8x512xf32>
    %699 = arith.mulf %698, %697 : vector<8x512xf32>
    %cst_138 = arith.constant -1.45315206 : f32
    %700 = vector.broadcast %cst_138 : f32 to vector<8x512xf32>
    %701 = arith.addf %699, %700 : vector<8x512xf32>
    %702 = arith.mulf %701, %697 : vector<8x512xf32>
    %cst_139 = arith.constant 1.42141378 : f32
    %703 = vector.broadcast %cst_139 : f32 to vector<8x512xf32>
    %704 = arith.addf %702, %703 : vector<8x512xf32>
    %705 = arith.mulf %704, %697 : vector<8x512xf32>
    %cst_140 = arith.constant -0.284496725 : f32
    %706 = vector.broadcast %cst_140 : f32 to vector<8x512xf32>
    %707 = arith.addf %705, %706 : vector<8x512xf32>
    %708 = arith.mulf %707, %697 : vector<8x512xf32>
    %cst_141 = arith.constant 0.254829586 : f32
    %709 = vector.broadcast %cst_141 : f32 to vector<8x512xf32>
    %710 = arith.addf %708, %709 : vector<8x512xf32>
    %711 = arith.mulf %710, %697 : vector<8x512xf32>
    %cst_142 = arith.constant 0.000000e+00 : f32
    %712 = vector.broadcast %cst_142 : f32 to vector<8x512xf32>
    %713 = arith.subf %712, %691 : vector<8x512xf32>
    %714 = arith.mulf %713, %691 : vector<8x512xf32>
    %715 = math.exp %714 : vector<8x512xf32>
    %716 = arith.mulf %711, %715 : vector<8x512xf32>
    %cst_143 = arith.constant 1.000000e+00 : f32
    %717 = vector.broadcast %cst_143 : f32 to vector<8x512xf32>
    %718 = arith.subf %717, %716 : vector<8x512xf32>
    %cst_144 = arith.constant 0.000000e+00 : f32
    %719 = vector.broadcast %cst_144 : f32 to vector<8x512xf32>
    %720 = arith.cmpf olt, %690, %719 : vector<8x512xf32>
    %cst_145 = arith.constant 0.000000e+00 : f32
    %721 = vector.broadcast %cst_145 : f32 to vector<8x512xf32>
    %722 = arith.subf %721, %718 : vector<8x512xf32>
    %723 = arith.select %720, %722, %718 : vector<8x512xi1>, vector<8x512xf32>
    %cst_146 = arith.constant 1.000000e+00 : f32
    %724 = vector.broadcast %cst_146 : f32 to vector<8x512xf32>
    %725 = arith.addf %724, %723 : vector<8x512xf32>
    %726 = arith.mulf %688, %725 : vector<8x512xf32>
    %c0_147 = arith.constant 0 : index
    %c0_148 = arith.constant 0 : index
    %727 = vector.load %arg15[%c0_147, %c0_148] : memref<512x256xf32, #tpu.memory_space<vmem>>, vector<512x256xf32>
    %cst_149 = arith.constant dense<0.000000e+00> : vector<8x256xf32>
    %728 = tpu.matmul %726, %727, %cst_149 {dimension_numbers = #tpu.dot_dimension_numbers<[1], [0], [0], [1], [0, 0, 1, 1], [], []>} : vector<8x512xf32>, vector<512x256xf32>, vector<8x256xf32> -> vector<8x256xf32>
    %c0_150 = arith.constant 0 : index
    %c0_151 = arith.constant 0 : index
    %729 = vector.load %arg16[%c0_150, %c0_151] : memref<1x256xf32, #tpu.memory_space<vmem>>, vector<1x256xf32>
    %730 = vector.broadcast %729 : vector<1x256xf32> to vector<8x256xf32>
    %731 = arith.addf %728, %730 : vector<8x256xf32>
    %c0_152 = arith.constant 0 : index
    %c0_153 = arith.constant 0 : index
    %732 = vector.load %arg17[%c0_152, %c0_153] : memref<32x512xf32, #tpu.memory_space<vmem>>, vector<32x512xf32>
    %cst_154 = arith.constant dense<0.000000e+00> : vector<8x512xf32>
    %733 = tpu.matmul %635, %732, %cst_154 {dimension_numbers = #tpu.dot_dimension_numbers<[1], [0], [0], [1], [0, 0, 1, 1], [], []>} : vector<8x32xf32>, vector<32x512xf32>, vector<8x512xf32> -> vector<8x512xf32>
    %c0_155 = arith.constant 0 : index
    %c0_156 = arith.constant 0 : index
    %734 = vector.load %arg18[%c0_155, %c0_156] : memref<256x512xf32, #tpu.memory_space<vmem>>, vector<256x512xf32>
    %cst_157 = arith.constant dense<0.000000e+00> : vector<8x512xf32>
    %735 = tpu.matmul %731, %734, %cst_157 {dimension_numbers = #tpu.dot_dimension_numbers<[1], [0], [0], [1], [0, 0, 1, 1], [], []>} : vector<8x256xf32>, vector<256x512xf32>, vector<8x512xf32> -> vector<8x512xf32>
    %736 = arith.addf %733, %735 : vector<8x512xf32>
    %c0_158 = arith.constant 0 : index
    %c0_159 = arith.constant 0 : index
    %737 = vector.load %arg19[%c0_158, %c0_159] : memref<1x512xf32, #tpu.memory_space<vmem>>, vector<1x512xf32>
    %738 = vector.broadcast %737 : vector<1x512xf32> to vector<8x512xf32>
    %739 = arith.addf %736, %738 : vector<8x512xf32>
    %cst_160 = arith.constant 5.000000e-01 : f32
    %740 = vector.broadcast %cst_160 : f32 to vector<8x512xf32>
    %741 = arith.mulf %740, %739 : vector<8x512xf32>
    %cst_161 = arith.constant 0.707106769 : f32
    %742 = vector.broadcast %cst_161 : f32 to vector<8x512xf32>
    %743 = arith.mulf %739, %742 : vector<8x512xf32>
    %744 = math.absf %743 : vector<8x512xf32>
    %cst_162 = arith.constant 0.327591091 : f32
    %745 = vector.broadcast %cst_162 : f32 to vector<8x512xf32>
    %746 = arith.mulf %745, %744 : vector<8x512xf32>
    %cst_163 = arith.constant 1.000000e+00 : f32
    %747 = vector.broadcast %cst_163 : f32 to vector<8x512xf32>
    %748 = arith.addf %747, %746 : vector<8x512xf32>
    %cst_164 = arith.constant 1.000000e+00 : f32
    %749 = vector.broadcast %cst_164 : f32 to vector<8x512xf32>
    %750 = arith.divf %749, %748 : vector<8x512xf32>
    %cst_165 = arith.constant 1.06140542 : f32
    %751 = vector.broadcast %cst_165 : f32 to vector<8x512xf32>
    %752 = arith.mulf %751, %750 : vector<8x512xf32>
    %cst_166 = arith.constant -1.45315206 : f32
    %753 = vector.broadcast %cst_166 : f32 to vector<8x512xf32>
    %754 = arith.addf %752, %753 : vector<8x512xf32>
    %755 = arith.mulf %754, %750 : vector<8x512xf32>
    %cst_167 = arith.constant 1.42141378 : f32
    %756 = vector.broadcast %cst_167 : f32 to vector<8x512xf32>
    %757 = arith.addf %755, %756 : vector<8x512xf32>
    %758 = arith.mulf %757, %750 : vector<8x512xf32>
    %cst_168 = arith.constant -0.284496725 : f32
    %759 = vector.broadcast %cst_168 : f32 to vector<8x512xf32>
    %760 = arith.addf %758, %759 : vector<8x512xf32>
    %761 = arith.mulf %760, %750 : vector<8x512xf32>
    %cst_169 = arith.constant 0.254829586 : f32
    %762 = vector.broadcast %cst_169 : f32 to vector<8x512xf32>
    %763 = arith.addf %761, %762 : vector<8x512xf32>
    %764 = arith.mulf %763, %750 : vector<8x512xf32>
    %cst_170 = arith.constant 0.000000e+00 : f32
    %765 = vector.broadcast %cst_170 : f32 to vector<8x512xf32>
    %766 = arith.subf %765, %744 : vector<8x512xf32>
    %767 = arith.mulf %766, %744 : vector<8x512xf32>
    %768 = math.exp %767 : vector<8x512xf32>
    %769 = arith.mulf %764, %768 : vector<8x512xf32>
    %cst_171 = arith.constant 1.000000e+00 : f32
    %770 = vector.broadcast %cst_171 : f32 to vector<8x512xf32>
    %771 = arith.subf %770, %769 : vector<8x512xf32>
    %cst_172 = arith.constant 0.000000e+00 : f32
    %772 = vector.broadcast %cst_172 : f32 to vector<8x512xf32>
    %773 = arith.cmpf olt, %743, %772 : vector<8x512xf32>
    %cst_173 = arith.constant 0.000000e+00 : f32
    %774 = vector.broadcast %cst_173 : f32 to vector<8x512xf32>
    %775 = arith.subf %774, %771 : vector<8x512xf32>
    %776 = arith.select %773, %775, %771 : vector<8x512xi1>, vector<8x512xf32>
    %cst_174 = arith.constant 1.000000e+00 : f32
    %777 = vector.broadcast %cst_174 : f32 to vector<8x512xf32>
    %778 = arith.addf %777, %776 : vector<8x512xf32>
    %779 = arith.mulf %741, %778 : vector<8x512xf32>
    %c0_175 = arith.constant 0 : index
    %c0_176 = arith.constant 0 : index
    %780 = vector.load %arg20[%c0_175, %c0_176] : memref<512x256xf32, #tpu.memory_space<vmem>>, vector<512x256xf32>
    %cst_177 = arith.constant dense<0.000000e+00> : vector<8x256xf32>
    %781 = tpu.matmul %779, %780, %cst_177 {dimension_numbers = #tpu.dot_dimension_numbers<[1], [0], [0], [1], [0, 0, 1, 1], [], []>} : vector<8x512xf32>, vector<512x256xf32>, vector<8x256xf32> -> vector<8x256xf32>
    %c0_178 = arith.constant 0 : index
    %c0_179 = arith.constant 0 : index
    %782 = vector.load %arg21[%c0_178, %c0_179] : memref<1x256xf32, #tpu.memory_space<vmem>>, vector<1x256xf32>
    %783 = vector.broadcast %782 : vector<1x256xf32> to vector<8x256xf32>
    %784 = arith.addf %781, %783 : vector<8x256xf32>
    %cst_180 = arith.constant 5.000000e-01 : f32
    %785 = vector.broadcast %cst_180 : f32 to vector<8x256xf32>
    %786 = arith.mulf %785, %784 : vector<8x256xf32>
    %cst_181 = arith.constant 0.707106769 : f32
    %787 = vector.broadcast %cst_181 : f32 to vector<8x256xf32>
    %788 = arith.mulf %784, %787 : vector<8x256xf32>
    %789 = math.absf %788 : vector<8x256xf32>
    %cst_182 = arith.constant 0.327591091 : f32
    %790 = vector.broadcast %cst_182 : f32 to vector<8x256xf32>
    %791 = arith.mulf %790, %789 : vector<8x256xf32>
    %cst_183 = arith.constant 1.000000e+00 : f32
    %792 = vector.broadcast %cst_183 : f32 to vector<8x256xf32>
    %793 = arith.addf %792, %791 : vector<8x256xf32>
    %cst_184 = arith.constant 1.000000e+00 : f32
    %794 = vector.broadcast %cst_184 : f32 to vector<8x256xf32>
    %795 = arith.divf %794, %793 : vector<8x256xf32>
    %cst_185 = arith.constant 1.06140542 : f32
    %796 = vector.broadcast %cst_185 : f32 to vector<8x256xf32>
    %797 = arith.mulf %796, %795 : vector<8x256xf32>
    %cst_186 = arith.constant -1.45315206 : f32
    %798 = vector.broadcast %cst_186 : f32 to vector<8x256xf32>
    %799 = arith.addf %797, %798 : vector<8x256xf32>
    %800 = arith.mulf %799, %795 : vector<8x256xf32>
    %cst_187 = arith.constant 1.42141378 : f32
    %801 = vector.broadcast %cst_187 : f32 to vector<8x256xf32>
    %802 = arith.addf %800, %801 : vector<8x256xf32>
    %803 = arith.mulf %802, %795 : vector<8x256xf32>
    %cst_188 = arith.constant -0.284496725 : f32
    %804 = vector.broadcast %cst_188 : f32 to vector<8x256xf32>
    %805 = arith.addf %803, %804 : vector<8x256xf32>
    %806 = arith.mulf %805, %795 : vector<8x256xf32>
    %cst_189 = arith.constant 0.254829586 : f32
    %807 = vector.broadcast %cst_189 : f32 to vector<8x256xf32>
    %808 = arith.addf %806, %807 : vector<8x256xf32>
    %809 = arith.mulf %808, %795 : vector<8x256xf32>
    %cst_190 = arith.constant 0.000000e+00 : f32
    %810 = vector.broadcast %cst_190 : f32 to vector<8x256xf32>
    %811 = arith.subf %810, %789 : vector<8x256xf32>
    %812 = arith.mulf %811, %789 : vector<8x256xf32>
    %813 = math.exp %812 : vector<8x256xf32>
    %814 = arith.mulf %809, %813 : vector<8x256xf32>
    %cst_191 = arith.constant 1.000000e+00 : f32
    %815 = vector.broadcast %cst_191 : f32 to vector<8x256xf32>
    %816 = arith.subf %815, %814 : vector<8x256xf32>
    %cst_192 = arith.constant 0.000000e+00 : f32
    %817 = vector.broadcast %cst_192 : f32 to vector<8x256xf32>
    %818 = arith.cmpf olt, %788, %817 : vector<8x256xf32>
    %cst_193 = arith.constant 0.000000e+00 : f32
    %819 = vector.broadcast %cst_193 : f32 to vector<8x256xf32>
    %820 = arith.subf %819, %816 : vector<8x256xf32>
    %821 = arith.select %818, %820, %816 : vector<8x256xi1>, vector<8x256xf32>
    %cst_194 = arith.constant 1.000000e+00 : f32
    %822 = vector.broadcast %cst_194 : f32 to vector<8x256xf32>
    %823 = arith.addf %822, %821 : vector<8x256xf32>
    %824 = arith.mulf %786, %823 : vector<8x256xf32>
    %c0_195 = arith.constant 0 : index
    %c0_196 = arith.constant 0 : index
    %825 = vector.load %arg22[%c0_195, %c0_196] : memref<1x256xf32, #tpu.memory_space<vmem>>, vector<1x256xf32>
    %826 = vector.broadcast %825 : vector<1x256xf32> to vector<8x256xf32>
    %827 = arith.mulf %824, %826 : vector<8x256xf32>
    %cst_197 = arith.constant dense<0.000000e+00> : vector<8xf32>
    %828 = vector.multi_reduction <add>, %827, %cst_197 [1] : vector<8x256xf32> to vector<8xf32>
    %829 = vector.shape_cast %828 : vector<8xf32> to vector<8x1xf32>
    %c0_198 = arith.constant 0 : index
    %c0_199 = arith.constant 0 : index
    %830 = vector.load %arg23[%c0_198, %c0_199] : memref<1x1xf32, #tpu.memory_space<vmem>>, vector<1x1xf32>
    %831 = vector.broadcast %830 : vector<1x1xf32> to vector<8x1xf32>
    %832 = arith.addf %829, %831 : vector<8x1xf32>
    %c0_200 = arith.constant 0 : index
    %c0_201 = arith.constant 0 : index
    %833 = vector.load %arg24[%c0_200, %c0_201] : memref<8x1xf32, #tpu.memory_space<vmem>>, vector<8x1xf32>
    tpu.vector_store %arg24[%c0_200, %c0_201], %832 {strides = array<i32>} : memref<8x1xf32, #tpu.memory_space<vmem>>, vector<8x1xf32>,
    return
  }
}

</mosaic_0001>

<llo_original>
// kernel: lstm_amex_forward.1
$region0: #{lstm_amex_forward.1}
  #allocation0 [shape = 'u32[]', space=smem, size = 0x4, offset = 0x4, fixed_abs, tag = 'smem constant byte address 0x4 - core index']
  #allocation1 [shape = 'u32[72,128]{1,0:T(1,128)}', space=vmem, size = 0x9000, scoped, tag = 'internal scratch']
  #allocation2 [shape = 'f32[1,1]{1,0:T(1,128)S(1)}', space=vmem, size = 0x200, scoped, tag = 'scoped memory for lstm_amex_forward.1']
  #allocation3 [shape = 'f32[1,1]{1,0:T(1,128)S(1)}', space=vmem, size = 0x200, scoped, tag = 'scoped memory for lstm_amex_forward.1']
  %s0 = inlined_call_operand.vmem [shape: f32[64,16], index: 0, kind: input, shape index: {}]
  %s1 = inlined_call_operand.vmem [shape: f32[8,24], index: 1, kind: input, shape index: {}]
  %s2 = inlined_call_operand.vmem [shape: f32[32,256], index: 2, kind: input, shape index: {}]
  %s3 = inlined_call_operand.vmem [shape: f32[16,128], index: 3, kind: input, shape index: {}]
  %s4 = inlined_call_operand.vmem [shape: f32[1,128], index: 4, kind: input, shape index: {}]
  %s5 = inlined_call_operand.vmem [shape: f32[32,128], index: 5, kind: input, shape index: {}]
  %s6 = inlined_call_operand.vmem [shape: f32[1,128], index: 6, kind: input, shape index: {}]
  %s7 = inlined_call_operand.vmem [shape: f32[32,512], index: 7, kind: input, shape index: {}]
  %s8 = inlined_call_operand.vmem [shape: f32[1,512], index: 8, kind: input, shape index: {}]
  %s9 = inlined_call_operand.vmem [shape: f32[1,512], index: 9, kind: input, shape index: {}]
  %s10 = inlined_call_operand.<no memory space> [shape: f32[1,1], index: 10, kind: input, shape index: {}]
  %s11 = inlined_call_operand.vmem [shape: f32[24,512], index: 11, kind: input, shape index: {}]
  %s12 = inlined_call_operand.vmem [shape: f32[1,512], index: 12, kind: input, shape index: {}]
  %s13 = inlined_call_operand.hbm [shape: f32[512,512], index: 13, kind: input, shape index: {}]
  %s14 = inlined_call_operand.vmem [shape: f32[1,512], index: 14, kind: input, shape index: {}]
  %s15 = inlined_call_operand.vmem [shape: f32[512,256], index: 15, kind: input, shape index: {}]
  %s16 = inlined_call_operand.vmem [shape: f32[1,256], index: 16, kind: input, shape index: {}]
  %s17 = inlined_call_operand.vmem [shape: f32[32,512], index: 17, kind: input, shape index: {}]
  %s18 = inlined_call_operand.vmem [shape: f32[256,512], index: 18, kind: input, shape index: {}]
  %s19 = inlined_call_operand.vmem [shape: f32[1,512], index: 19, kind: input, shape index: {}]
  %s20 = inlined_call_operand.hbm [shape: f32[512,256], index: 20, kind: input, shape index: {}]
  %s21 = inlined_call_operand.vmem [shape: f32[1,256], index: 21, kind: input, shape index: {}]
  %s22 = inlined_call_operand.vmem [shape: f32[1,256], index: 22, kind: input, shape index: {}]
  %s23 = inlined_call_operand.<no memory space> [shape: f32[1,1], index: 23, kind: input, shape index: {}]
  %s24 = inlined_call_operand.vmem [shape: f32[8,1], index: 24, kind: output, shape index: {}]
  %s25 = sld [smem:[#allocation0]]
  $region114: #{lstm_amex_forward.1} parent=0
    _
  %s27 = ssub.s32 1, %s25
  %s28 = scalar_select 0, %s27, %s25
  %v29 = vstv %s10
  %30 = vst [vmem:[#allocation2] sm:$0x1] %v29
  %v31 = vstv %s23
  %32 = vst [vmem:[#allocation3] sm:$0x1] %v31
  $region1: #{lstm_amex_forward.1} parent=0
    #allocation4 [shape = 'u8[1048576]{0}', space=vmem, size = 0x100000, scoped, tag = 'input window, operand 13, single buffered']
    #allocation5 [shape = 's32[1]{0}', space=sflag, size = 0x4, scoped, tag = 'scoped memory for lstm_amex_forward.1']
    #allocation6 [shape = 'u8[524288]{0}', space=vmem, size = 0x80000, scoped, tag = 'input window, operand 20, single buffered']
    #allocation7 [shape = 's32[1]{0}', space=sflag, size = 0x4, scoped, tag = 'scoped memory for lstm_amex_forward.1']
    %33 = vsyncpa [#allocation5], 0
    %34 = vsyncpa [#allocation7], 0
    // Predicated region
    $region2: #{lstm_amex_forward.1} parent=1 // pred_check
      _
    $region3: #{lstm_amex_forward.1} parent=1 // pred_check_branch
      %36 = sbr.rel (0) target = $region5
    $region4: #{lstm_amex_forward.1} parent=1 // pred_region
      _
    $region5: #{lstm_amex_forward.1} parent=1 // pred_fallthru
      _
    // Predicated region
    $region6: #{lstm_amex_forward.1} parent=1 // pred_check
      _
    $region7: #{lstm_amex_forward.1} parent=1 // pred_check_branch
      %38 = sbr.rel (0) target = $region9
    $region8: #{lstm_amex_forward.1} parent=1 // pred_region
      _
    $region9: #{lstm_amex_forward.1} parent=1 // pred_fallthru
      _
    // Predicated region
    $region10: #{lstm_amex_forward.1} parent=1 // pred_check
      _
    $region11: #{lstm_amex_forward.1} parent=1 // pred_check_branch
      %40 = sbr.rel (0) target = $region13
    $region12: #{lstm_amex_forward.1} parent=1 // pred_region
      _
    $region13: #{lstm_amex_forward.1} parent=1 // pred_fallthru
      _
    // Predicated region
    $region14: #{lstm_amex_forward.1} parent=1 // pred_check
      _
    $region15: #{lstm_amex_forward.1} parent=1 // pred_check_branch
      %42 = sbr.rel (0) target = $region17
    $region16: #{lstm_amex_forward.1} parent=1 // pred_region
      _
    $region17: #{lstm_amex_forward.1} parent=1 // pred_fallthru
      _
    // Predicated region
    $region18: #{lstm_amex_forward.1} parent=1 // pred_check
      _
    $region19: #{lstm_amex_forward.1} parent=1 // pred_check_branch
      %44 = sbr.rel (0) target = $region21
    $region20: #{lstm_amex_forward.1} parent=1 // pred_region
      _
    $region21: #{lstm_amex_forward.1} parent=1 // pred_fallthru
      _
    // Predicated region
    $region22: #{lstm_amex_forward.1} parent=1 // pred_check
      _
    $region23: #{lstm_amex_forward.1} parent=1 // pred_check_branch
      %46 = sbr.rel (0) target = $region25
    $region24: #{lstm_amex_forward.1} parent=1 // pred_region
      _
    $region25: #{lstm_amex_forward.1} parent=1 // pred_fallthru
      _
    // Predicated region
    $region26: #{lstm_amex_forward.1} parent=1 // pred_check
      _
    $region27: #{lstm_amex_forward.1} parent=1 // pred_check_branch
      %48 = sbr.rel (0) target = $region29
    $region28: #{lstm_amex_forward.1} parent=1 // pred_region
      _
    $region29: #{lstm_amex_forward.1} parent=1 // pred_fallthru
      _
    // Predicated region
    $region30: #{lstm_amex_forward.1} parent=1 // pred_check
      _
    $region31: #{lstm_amex_forward.1} parent=1 // pred_check_branch
      %50 = sbr.rel (0) target = $region33
    $region32: #{lstm_amex_forward.1} parent=1 // pred_region
      _
    $region33: #{lstm_amex_forward.1} parent=1 // pred_fallthru
      _
    // Predicated region
    $region34: #{lstm_amex_forward.1} parent=1 // pred_check
      _
    $region35: #{lstm_amex_forward.1} parent=1 // pred_check_branch
      %52 = sbr.rel (0) target = $region37
    $region36: #{lstm_amex_forward.1} parent=1 // pred_region
      _
    $region37: #{lstm_amex_forward.1} parent=1 // pred_fallthru
      _
    // Predicated region
    $region38: #{lstm_amex_forward.1} parent=1 // pred_check
      _
    $region39: #{lstm_amex_forward.1} parent=1 // pred_check_branch
      %54 = sbr.rel (0) target = $region41
    $region40: #{lstm_amex_forward.1} parent=1 // pred_region
      _
    $region41: #{lstm_amex_forward.1} parent=1 // pred_fallthru
      _
    // Predicated region
    $region42: #{lstm_amex_forward.1} parent=1 // pred_check
      _
    $region43: #{lstm_amex_forward.1} parent=1 // pred_check_branch
      %56 = sbr.rel (0) target = $region45
    $region44: #{lstm_amex_forward.1} parent=1 // pred_region
      _
    $region45: #{lstm_amex_forward.1} parent=1 // pred_fallthru
      _
    // Predicated region
    $region46: #{lstm_amex_forward.1} parent=1 // pred_check
      _
    $region47: #{lstm_amex_forward.1} parent=1 // pred_check_branch
      %58 = sbr.rel (0) target = $region49
    $region48: #{lstm_amex_forward.1} parent=1 // pred_region
      _
    $region49: #{lstm_amex_forward.1} parent=1 // pred_fallthru
      _
    // Predicated region
    $region50: #{lstm_amex_forward.1} parent=1 // pred_check
      _
    $region51: #{lstm_amex_forward.1} parent=1 // pred_check_branch
      %60 = sbr.rel (0) target = $region53
    $region52: #{lstm_amex_forward.1} parent=1 // pred_region
      _
    $region53: #{lstm_amex_forward.1} parent=1 // pred_fallthru
      _
    // Predicated region
    $region54: #{lstm_amex_forward.1} parent=1 // pred_check
      _
    $region55: #{lstm_amex_forward.1} parent=1 // pred_check_branch
      %62 = sbr.rel (0) target = $region57
    $region56: #{lstm_amex_forward.1} parent=1 // pred_region
      %64 = vsyncadd [#allocation5], 0
      %s65 = sshll.u32 %s13, 4
      %s66 = int_to_ptr.hbm [resolvable:$true] %s65
      %s67 = sshll.u32 [#allocation4], 4
      %s68 = int_to_ptr.vmem [resolvable:$true] %s67
      %73 = dma.hbm_to_vmem [thread:$0]  %s66, 32768, %s68, [#allocation5], 512, 512, 32
    $region57: #{lstm_amex_forward.1} parent=1 // pred_fallthru
      _
    // Predicated region
    $region58: #{lstm_amex_forward.1} parent=1 // pred_check
      _
    $region59: #{lstm_amex_forward.1} parent=1 // pred_check_branch
      %75 = sbr.rel (0) target = $region61
    $region60: #{lstm_amex_forward.1} parent=1 // pred_region
      _
    $region61: #{lstm_amex_forward.1} parent=1 // pred_fallthru
      _
    // Predicated region
    $region62: #{lstm_amex_forward.1} parent=1 // pred_check
      _
    $region63: #{lstm_amex_forward.1} parent=1 // pred_check_branch
      %77 = sbr.rel (0) target = $region65
    $region64: #{lstm_amex_forward.1} parent=1 // pred_region
      _
    $region65: #{lstm_amex_forward.1} parent=1 // pred_fallthru
      _
    // Predicated region
    $region66: #{lstm_amex_forward.1} parent=1 // pred_check
      _
    $region67: #{lstm_amex_forward.1} parent=1 // pred_check_branch
      %79 = sbr.rel (0) target = $region69
    $region68: #{lstm_amex_forward.1} parent=1 // pred_region
      _
    $region69: #{lstm_amex_forward.1} parent=1 // pred_fallthru
      _
    // Predicated region
    $region70: #{lstm_amex_forward.1} parent=1 // pred_check
      _
    $region71: #{lstm_amex_forward.1} parent=1 // pred_check_branch
      %81 = sbr.rel (0) target = $region73
    $region72: #{lstm_amex_forward.1} parent=1 // pred_region
      _
    $region73: #{lstm_amex_forward.1} parent=1 // pred_fallthru
      _
    // Predicated region
    $region74: #{lstm_amex_forward.1} parent=1 // pred_check
      _
    $region75: #{lstm_amex_forward.1} parent=1 // pred_check_branch
      %83 = sbr.rel (0) target = $region77
    $region76: #{lstm_amex_forward.1} parent=1 // pred_region
      _
    $region77: #{lstm_amex_forward.1} parent=1 // pred_fallthru
      _
    // Predicated region
    $region78: #{lstm_amex_forward.1} parent=1 // pred_check
      _
    $region79: #{lstm_amex_forward.1} parent=1 // pred_check_branch
      %85 = sbr.rel (0) target = $region81
    $region80: #{lstm_amex_forward.1} parent=1 // pred_region
      _
    $region81: #{lstm_amex_forward.1} parent=1 // pred_fallthru
      _
    // Predicated region
    $region82: #{lstm_amex_forward.1} parent=1 // pred_check
      _
    $region83: #{lstm_amex_forward.1} parent=1 // pred_check_branch
      %87 = sbr.rel (0) target = $region85
    $region84: #{lstm_amex_forward.1} parent=1 // pred_region
      %89 = vsyncadd [#allocation7], 0
      %s90 = sshll.u32 %s20, 4
      %s91 = int_to_ptr.hbm [resolvable:$true] %s90
      %s92 = sshll.u32 [#allocation6], 4
      %s93 = int_to_ptr.vmem [resolvable:$true] %s92
      %98 = dma.hbm_to_vmem [thread:$0]  %s91, 16384, %s93, [#allocation7], 256, 256, 16
    $region85: #{lstm_amex_forward.1} parent=1 // pred_fallthru
      _
    // Predicated region
    $region86: #{lstm_amex_forward.1} parent=1 // pred_check
      _
    $region87: #{lstm_amex_forward.1} parent=1 // pred_check_branch
      %100 = sbr.rel (0) target = $region89
    $region88: #{lstm_amex_forward.1} parent=1 // pred_region
      _
    $region89: #{lstm_amex_forward.1} parent=1 // pred_fallthru
      _
    // Predicated region
    $region90: #{lstm_amex_forward.1} parent=1 // pred_check
      _
    $region91: #{lstm_amex_forward.1} parent=1 // pred_check_branch
      %102 = sbr.rel (0) target = $region93
    $region92: #{lstm_amex_forward.1} parent=1 // pred_region
      _
    $region93: #{lstm_amex_forward.1} parent=1 // pred_fallthru
      _
    // Predicated region
    $region94: #{lstm_amex_forward.1} parent=1 // pred_check
      _
    $region95: #{lstm_amex_forward.1} parent=1 // pred_check_branch
      %104 = sbr.rel (0) target = $region97
    $region96: #{lstm_amex_forward.1} parent=1 // pred_region
      _
    $region97: #{lstm_amex_forward.1} parent=1 // pred_fallthru
      _
    // Predicated region
    $region98: #{lstm_amex_forward.1} parent=1 // pred_check
      _
    $region99: #{lstm_amex_forward.1} parent=1 // pred_check_branch
      %106 = sbr.rel (0) target = $region101
    $region100: #{lstm_amex_forward.1} parent=1 // pred_region
      %108 = dma.done [#allocation5], 32768
    $region101: #{lstm_amex_forward.1} parent=1 // pred_fallthru
      _
    // Predicated region
    $region102: #{lstm_amex_forward.1} parent=1 // pred_check
      _
    $region103: #{lstm_amex_forward.1} parent=1 // pred_check_branch
      %110 = sbr.rel (0) target = $region105
    $region104: #{lstm_amex_forward.1} parent=1 // pred_region
      %112 = dma.done [#allocation7], 16384
    $region105: #{lstm_amex_forward.1} parent=1 // pred_fallthru
      _
    %v113 = vld [vmem:[%s2] sm:$0xff]
    %v114 = vld [vmem:[%s2 + $0x8] sm:$0xff]
    %v115 = vld [vmem:[%s2 + $0x10] sm:$0xff]
    %v116 = vld [vmem:[%s2 + $0x18] sm:$0xff]
    %v117 = vld [vmem:[%s2 + $0x20] sm:$0xff]
    %v118 = vld [vmem:[%s2 + $0x28] sm:$0xff]
    %v119 = vld [vmem:[%s2 + $0x30] sm:$0xff]
    %v120 = vld [vmem:[%s2 + $0x38] sm:$0xff]
    %v121 = vld [vmem:[%s3] sm:$0xff]
    %v122 = vld [vmem:[%s3 + $0x8] sm:$0xff]
    %v123 = vld [vmem:[%s5] sm:$0xff]
    %v124 = vld [vmem:[%s5 + $0x8] sm:$0xff]
    %v125 = vld [vmem:[%s5 + $0x10] sm:$0xff]
    %v126 = vld [vmem:[%s5 + $0x18] sm:$0xff]
    %v127 = vld [vmem:[%s4] sm:$0x1]
    %v128 = vld [vmem:[%s6] sm:$0x1]
    %v129 = vld [vmem:[%s7] sm:$0xff]
    %v130 = vld [vmem:[%s7 + $0x8] sm:$0xff]
    %v131 = vld [vmem:[%s7 + $0x10] sm:$0xff]
    %v132 = vld [vmem:[%s7 + $0x18] sm:$0xff]
    %v133 = vld [vmem:[%s7 + $0x20] sm:$0xff]
    %v134 = vld [vmem:[%s7 + $0x28] sm:$0xff]
    %v135 = vld [vmem:[%s7 + $0x30] sm:$0xff]
    %v136 = vld [vmem:[%s7 + $0x38] sm:$0xff]
    %v137 = vld [vmem:[%s7 + $0x40] sm:$0xff]
    %v138 = vld [vmem:[%s7 + $0x48] sm:$0xff]
    %v139 = vld [vmem:[%s7 + $0x50] sm:$0xff]
    %v140 = vld [vmem:[%s7 + $0x58] sm:$0xff]
    %v141 = vld [vmem:[%s7 + $0x60] sm:$0xff]
    %v142 = vld [vmem:[%s7 + $0x68] sm:$0xff]
    %v143 = vld [vmem:[%s7 + $0x70] sm:$0xff]
    %v144 = vld [vmem:[%s7 + $0x78] sm:$0xff]
    %v145 = vld [vmem:[%s8] sm:$0xf]
    %v146 = vld [vmem:[%s9] sm:$0xf]
    %v147 = vld [vmem:[#allocation2] sm:$0x1]
    %v148 = vld [vmem:[%s0] sm:$0xff]
    %v149 = vld [vmem:[%s0 + $0x8] sm:$0xff]
    %v150 = vld [vmem:[%s0 + $0x10] sm:$0xff]
    %v151 = vld [vmem:[%s0 + $0x18] sm:$0xff]
    %v152 = vld [vmem:[%s0 + $0x20] sm:$0xff]
    %v153 = vld [vmem:[%s0 + $0x28] sm:$0xff]
    %v154 = vld [vmem:[%s0 + $0x30] sm:$0xff]
    %v155 = vld [vmem:[%s0 + $0x38] sm:$0xff]
    %v157 = vperm.slane %v127, 0
    %vm159 = vcmask 130048
    %v161 = vsel %vm159, %v148, 0
    %v164 = vsel %vm159, %v149, 0
    %v167 = vsel %vm159, %v150, 0
    %v170 = vsel %vm159, %v151, 0
    %v173 = vsel %vm159, %v152, 0
    %v176 = vsel %vm159, %v153, 0
    %v179 = vsel %vm159, %v154, 0
    %v182 = vsel %vm159, %v155, 0
    %184 = vmatpush.msra.mxu0 0.0
    %185 = vmatpush.msra.mxu0 0.0
    %186 = vmatpush.msra.mxu0 0.0
    %187 = vmatpush.msra.mxu0 0.0
    %188 = vmatpush.msra.mxu0 0.0
    %189 = vmatpush.msra.mxu0 0.0
    %190 = vmatpush.msra.mxu0 0.0
    %191 = vmatpush.msra.mxu0 0.0
    %192 = vmatpush.msra.mxu0 0.0
    %193 = vmatpush.msra.mxu0 0.0
    %194 = vmatpush.msra.mxu0 0.0
    %195 = vmatpush.msra.mxu0 0.0
    %196 = vmatpush.msra.mxu0 0.0
    %197 = vmatpush.msra.mxu0 0.0
    %198 = vmatpush.msra.mxu0 %v122
    %199 = vmatpush.msra.mxu0 %v121
    %200 = vmatmul.f32.gmra.mxu0 %v161
    %v201 = vpop.f32.mrf.mxu0
    %v202 = vadd.f32 %v157, %v201
    %203 = vmatmul.f32.gmra.mxu0 %v164
    %v204 = vpop.f32.mrf.mxu0
    %v205 = vadd.f32 %v157, %v204
    %206 = vmatmul.f32.gmra.mxu0 %v167
    %v207 = vpop.f32.mrf.mxu0
    %v208 = vadd.f32 %v157, %v207
    %209 = vmatmul.f32.gmra.mxu0 %v170
    %v210 = vpop.f32.mrf.mxu0
    %v211 = vadd.f32 %v157, %v210
    %212 = vmatmul.f32.gmra.mxu0 %v173
    %v213 = vpop.f32.mrf.mxu0
    %v214 = vadd.f32 %v157, %v213
    %215 = vmatmul.f32.gmra.mxu0 %v176
    %v216 = vpop.f32.mrf.mxu0
    %v217 = vadd.f32 %v157, %v216
    %218 = vmatmul.f32.gmra.mxu0 %v179
    %v219 = vpop.f32.mrf.mxu0
    %v220 = vadd.f32 %v157, %v219
    %221 = vmatmul.f32.gmra.mxu0 %v182
    %v222 = vpop.f32.mrf.mxu0
    %v223 = vadd.f32 %v157, %v222
    %224 = vdwg.mxu0
    %vm225 = vcmask 261120
    %v227 = vsel %vm225, 0.0, 0
    %229 = vmatpush.msra.mxu0 0.0
    %230 = vmatpush.msra.mxu0 0.0
    %231 = vmatpush.msra.mxu0 0.0
    %232 = vmatpush.msra.mxu0 0.0
    %233 = vmatpush.msra.mxu0 0.0
    %234 = vmatpush.msra.mxu0 0.0
    %235 = vmatpush.msra.mxu0 0.0
    %236 = vmatpush.msra.mxu0 0.0
    %237 = vmatpush.msra.mxu0 0.0
    %238 = vmatpush.msra.mxu0 0.0
    %239 = vmatpush.msra.mxu0 0.0
    %240 = vmatpush.msra.mxu0 0.0
    %241 = vmatpush.msra.mxu0 %v119
    %242 = vmatpush.msra.mxu0 %v117
    %243 = vmatpush.msra.mxu0 %v115
    %244 = vmatpush.msra.mxu0 %v113
    %245 = vmatmul.f32.gmra.mxu0 %v227
    %v246 = vpop.f32.mrf.mxu0
    %v247 = vadd.f32 0.0, %v246
    %248 = vmatmul.f32.gmra.mxu0 %v227
    %v249 = vpop.f32.mrf.mxu0
    %250 = vdwg.mxu0
    %251 = vmatpush.msra.mxu0 0.0
    %252 = vmatpush.msra.mxu0 0.0
    %253 = vmatpush.msra.mxu0 0.0
    %254 = vmatpush.msra.mxu0 0.0
    %255 = vmatpush.msra.mxu0 0.0
    %256 = vmatpush.msra.mxu0 0.0
    %257 = vmatpush.msra.mxu0 0.0
    %258 = vmatpush.msra.mxu0 0.0
    %259 = vmatpush.msra.mxu0 0.0
    %260 = vmatpush.msra.mxu0 0.0
    %261 = vmatpush.msra.mxu0 0.0
    %262 = vmatpush.msra.mxu0 0.0
    %263 = vmatpush.msra.mxu0 %v120
    %264 = vmatpush.msra.mxu0 %v118
    %265 = vmatpush.msra.mxu0 %v116
    %266 = vmatpush.msra.mxu0 %v114
    %267 = vmatmul.f32.gmra.mxu0 %v227
    %v268 = vpop.f32.mrf.mxu0
    %269 = vmatmul.f32.gmra.mxu0 %v227
    %v270 = vpop.f32.mrf.mxu0
    %v271 = vadd.f32 0.0, %v270
    %272 = vdwg.mxu0
    %v273 = vadd.f32 %v202, %v247
    %v274 = vxor.u32 %v273, 2147483648
    %v275 = vmul.f32 %v274, 1.442695
    %v276 = vpow.pop %v275
    %v277 = vadd.f32 %v276, 1.0
    %v278 = vrcp.pop %v277
    %v279 = vmul.f32 %v277, %v278
    %v280 = vsub.f32 1.0, %v279
    %v281 = vmul.f32 %v278, %v280
    %v282 = vadd.f32 %v278, %v281
    %vm283 = vweird.f32 %v277
    %vm284 = vweird.f32 %v278
    %vm285 = vmor %vm283, %vm284
    %v286 = vsel %vm285, %v278, %v282
    %v287 = vand.u32 2147483647, %v277
    %vm288 = vcmp.eq.f32.partialorder %v287, 8.507059e+37
    %v289 = vand.u32 %v277, 2147483648
    %v290 = vor.u32 1.1754944e-38, %v289
    %v291 = vsel %vm288, %v290, %v286
    %v292 = vmul.f32 1.0, %v291
    %v293 = vtanh.pop %v273
    %v294 = vmul.f32 %v292, 0.0
    %296 = vrot.lane.b32.xlu0 %v293, 64
    %v297 = vpop.permute.xlu0 %296
    %v299 = vmul.f32 %v292, %v297
    %301 = vrot.lane.b32.xlu0 %v299, 32
    %v302 = vpop.permute.xlu0 %301
    %v304 = vadd.f32 %v294, %v302
    %v305 = vtanh.pop %v304
    %307 = vrot.lane.b32.xlu0 %v305, 64
    %v308 = vpop.permute.xlu0 %307
    %v310 = vmul.f32 %v292, %v308
    %v312 = vperm.slane %v128, 0
    %315 = vrot.lane.b32.xlu0 %v310, 32
    %v316 = vpop.permute.xlu0 %315
    %v317 = vsel %vm225, %v316, 0
    %319 = vmatpush.msra.mxu0 0.0
    %320 = vmatpush.msra.mxu0 0.0
    %321 = vmatpush.msra.mxu0 0.0
    %322 = vmatpush.msra.mxu0 0.0
    %323 = vmatpush.msra.mxu0 0.0
    %324 = vmatpush.msra.mxu0 0.0
    %325 = vmatpush.msra.mxu0 0.0
    %326 = vmatpush.msra.mxu0 0.0
    %327 = vmatpush.msra.mxu0 0.0
    %328 = vmatpush.msra.mxu0 0.0
    %329 = vmatpush.msra.mxu0 0.0
    %330 = vmatpush.msra.mxu0 0.0
    %331 = vmatpush.msra.mxu0 %v126
    %332 = vmatpush.msra.mxu0 %v125
    %333 = vmatpush.msra.mxu0 %v124
    %334 = vmatpush.msra.mxu0 %v123
    %335 = vmatmul.f32.gmra.mxu0 %v317
    %v336 = vpop.f32.mrf.mxu0
    %v337 = vadd.f32 %v312, %v336
    %338 = vdwg.mxu0
    %v339 = vadd.f32 %v337, %v271
    %v340 = vxor.u32 %v339, 2147483648
    %v341 = vmul.f32 %v340, 1.442695
    %v342 = vpow.pop %v341
    %v343 = vadd.f32 %v342, 1.0
    %v344 = vrcp.pop %v343
    %v345 = vmul.f32 %v343, %v344
    %v346 = vsub.f32 1.0, %v345
    %v347 = vmul.f32 %v344, %v346
    %v348 = vadd.f32 %v344, %v347
    %vm349 = vweird.f32 %v343
    %vm350 = vweird.f32 %v344
    %vm351 = vmor %vm349, %vm350
    %v352 = vsel %vm351, %v344, %v348
    %v353 = vand.u32 2147483647, %v343
    %vm354 = vcmp.eq.f32.partialorder %v353, 8.507059e+37
    %v355 = vand.u32 %v343, 2147483648
    %v356 = vor.u32 1.1754944e-38, %v355
    %v357 = vsel %vm354, %v356, %v352
    %v358 = vmul.f32 1.0, %v357
    %v359 = vtanh.pop %v339
    %v360 = vmul.f32 %v358, 0.0
    %362 = vrot.lane.b32.xlu0 %v359, 64
    %v363 = vpop.permute.xlu0 %362
    %v365 = vmul.f32 %v358, %v363
    %367 = vrot.lane.b32.xlu0 %v365, 32
    %v368 = vpop.permute.xlu0 %367
    %v370 = vadd.f32 %v360, %v368
    %v371 = vtanh.pop %v370
    %373 = vrot.lane.b32.xlu0 %v371, 64
    %v374 = vpop.permute.xlu0 %373
    %v376 = vmul.f32 %v358, %v374
    %v378 = vperm.slane %v145, 0
    %v379 = vperm.slane %v145, 1
    %v380 = vperm.slane %v145, 2
    %v381 = vperm.slane %v145, 3
    %387 = vrot.lane.b32.xlu0 %v376, 32
    %v388 = vpop.permute.xlu0 %387
    %v389 = vsel %vm225, %v388, 0
    %391 = vmatpush.msra.mxu0 0.0
    %392 = vmatpush.msra.mxu0 0.0
    %393 = vmatpush.msra.mxu0 0.0
    %394 = vmatpush.msra.mxu0 0.0
    %395 = vmatpush.msra.mxu0 0.0
    %396 = vmatpush.msra.mxu0 0.0
    %397 = vmatpush.msra.mxu0 0.0
    %398 = vmatpush.msra.mxu0 0.0
    %399 = vmatpush.msra.mxu0 0.0
    %400 = vmatpush.msra.mxu0 0.0
    %401 = vmatpush.msra.mxu0 0.0
    %402 = vmatpush.msra.mxu0 0.0
    %403 = vmatpush.msra.mxu0 %v141
    %404 = vmatpush.msra.mxu0 %v137
    %405 = vmatpush.msra.mxu0 %v133
    %406 = vmatpush.msra.mxu0 %v129
    %407 = vmatmul.f32.gmra.mxu0 %v389
    %v408 = vpop.f32.mrf.mxu0
    %v409 = vadd.f32 %v378, %v408
    %410 = vdwg.mxu0
    %411 = vmatpush.msra.mxu0 0.0
    %412 = vmatpush.msra.mxu0 0.0
    %413 = vmatpush.msra.mxu0 0.0
    %414 = vmatpush.msra.mxu0 0.0
    %415 = vmatpush.msra.mxu0 0.0
    %416 = vmatpush.msra.mxu0 0.0
    %417 = vmatpush.msra.mxu0 0.0
    %418 = vmatpush.msra.mxu0 0.0
    %419 = vmatpush.msra.mxu0 0.0
    %420 = vmatpush.msra.mxu0 0.0
    %421 = vmatpush.msra.mxu0 0.0
    %422 = vmatpush.msra.mxu0 0.0
    %423 = vmatpush.msra.mxu0 %v142
    %424 = vmatpush.msra.mxu0 %v138
    %425 = vmatpush.msra.mxu0 %v134
    %426 = vmatpush.msra.mxu0 %v130
    %427 = vmatmul.f32.gmra.mxu0 %v389
    %v428 = vpop.f32.mrf.mxu0
    %v429 = vadd.f32 %v379, %v428
    %430 = vdwg.mxu0
    %431 = vmatpush.msra.mxu0 0.0
    %432 = vmatpush.msra.mxu0 0.0
    %433 = vmatpush.msra.mxu0 0.0
    %434 = vmatpush.msra.mxu0 0.0
    %435 = vmatpush.msra.mxu0 0.0
    %436 = vmatpush.msra.mxu0 0.0
    %437 = vmatpush.msra.mxu0 0.0
    %438 = vmatpush.msra.mxu0 0.0
    %439 = vmatpush.msra.mxu0 0.0
    %440 = vmatpush.msra.mxu0 0.0
    %441 = vmatpush.msra.mxu0 0.0
    %442 = vmatpush.msra.mxu0 0.0
    %443 = vmatpush.msra.mxu0 %v143
    %444 = vmatpush.msra.mxu0 %v139
    %445 = vmatpush.msra.mxu0 %v135
    %446 = vmatpush.msra.mxu0 %v131
    %447 = vmatmul.f32.gmra.mxu0 %v389
    %v448 = vpop.f32.mrf.mxu0
    %v449 = vadd.f32 %v380, %v448
    %450 = vdwg.mxu0
    %451 = vmatpush.msra.mxu0 0.0
    %452 = vmatpush.msra.mxu0 0.0
    %453 = vmatpush.msra.mxu0 0.0
    %454 = vmatpush.msra.mxu0 0.0
    %455 = vmatpush.msra.mxu0 0.0
    %456 = vmatpush.msra.mxu0 0.0
    %457 = vmatpush.msra.mxu0 0.0
    %458 = vmatpush.msra.mxu0 0.0
    %459 = vmatpush.msra.mxu0 0.0
    %460 = vmatpush.msra.mxu0 0.0
    %461 = vmatpush.msra.mxu0 0.0
    %462 = vmatpush.msra.mxu0 0.0
    %463 = vmatpush.msra.mxu0 %v144
    %464 = vmatpush.msra.mxu0 %v140
    %465 = vmatpush.msra.mxu0 %v136
    %466 = vmatpush.msra.mxu0 %v132
    %467 = vmatmul.f32.gmra.mxu0 %v389
    %v468 = vpop.f32.mrf.mxu0
    %v469 = vadd.f32 %v381, %v468
    %470 = vdwg.mxu0
    %v471 = vtanh.pop %v409
    %v472 = vtanh.pop %v429
    %v473 = vtanh.pop %v449
    %v474 = vtanh.pop %v469
    %v476 = vperm.slane %v146, 0
    %v477 = vperm.slane %v146, 1
    %v478 = vperm.slane %v146, 2
    %v479 = vperm.slane %v146, 3
    %v484 = vmul.f32 %v471, %v476
    %v485 = vmul.f32 %v472, %v477
    %v486 = vmul.f32 %v473, %v478
    %v487 = vmul.f32 %v474, %v479
    %v488 = vadd.f32 %v484, %v485
    %v489 = vadd.f32 %v488, %v486
    %v490 = vadd.f32 %v489, %v487
    %491 = vadd.xlane.f32.xlu0 %v490
    %v492 = vpop.xlane.xlu0 %491
    %v494 = vperm.slane %v147, 0
    %v496 = vadd.f32 %v492, %v494
    %497 = vmatpush.msra.mxu0 0.0
    %498 = vmatpush.msra.mxu0 0.0
    %499 = vmatpush.msra.mxu0 0.0
    %500 = vmatpush.msra.mxu0 0.0
    %501 = vmatpush.msra.mxu0 0.0
    %502 = vmatpush.msra.mxu0 0.0
    %503 = vmatpush.msra.mxu0 0.0
    %504 = vmatpush.msra.mxu0 0.0
    %505 = vmatpush.msra.mxu0 0.0
    %506 = vmatpush.msra.mxu0 0.0
    %507 = vmatpush.msra.mxu0 0.0
    %508 = vmatpush.msra.mxu0 0.0
    %509 = vmatpush.msra.mxu0 %v119
    %510 = vmatpush.msra.mxu0 %v117
    %511 = vmatpush.msra.mxu0 %v115
    %512 = vmatpush.msra.mxu0 %v113
    %513 = vmatmul.f32.gmra.mxu0 %v317
    %v514 = vpop.f32.mrf.mxu0
    %v515 = vadd.f32 0.0, %v514
    %516 = vmatmul.f32.gmra.mxu0 %v389
    %v517 = vpop.f32.mrf.mxu0
    %518 = vdwg.mxu0
    %519 = vmatpush.msra.mxu0 0.0
    %520 = vmatpush.msra.mxu0 0.0
    %521 = vmatpush.msra.mxu0 0.0
    %522 = vmatpush.msra.mxu0 0.0
    %523 = vmatpush.msra.mxu0 0.0
    %524 = vmatpush.msra.mxu0 0.0
    %525 = vmatpush.msra.mxu0 0.0
    %526 = vmatpush.msra.mxu0 0.0
    %527 = vmatpush.msra.mxu0 0.0
    %528 = vmatpush.msra.mxu0 0.0
    %529 = vmatpush.msra.mxu0 0.0
    %530 = vmatpush.msra.mxu0 0.0
    %531 = vmatpush.msra.mxu0 %v120
    %532 = vmatpush.msra.mxu0 %v118
    %533 = vmatpush.msra.mxu0 %v116
    %534 = vmatpush.msra.mxu0 %v114
    %535 = vmatmul.f32.gmra.mxu0 %v317
    %v536 = vpop.f32.mrf.mxu0
    %537 = vmatmul.f32.gmra.mxu0 %v389
    %v538 = vpop.f32.mrf.mxu0
    %v539 = vadd.f32 0.0, %v538
    %540 = vdwg.mxu0
    %v541 = vadd.f32 %v205, %v515
    %v542 = vxor.u32 %v541, 2147483648
    %v543 = vmul.f32 %v542, 1.442695
    %v544 = vpow.pop %v543
    %v545 = vadd.f32 %v544, 1.0
    %v546 = vrcp.pop %v545
    %v547 = vmul.f32 %v545, %v546
    %v548 = vsub.f32 1.0, %v547
    %v549 = vmul.f32 %v546, %v548
    %v550 = vadd.f32 %v546, %v549
    %vm551 = vweird.f32 %v545
    %vm552 = vweird.f32 %v546
    %vm553 = vmor %vm551, %vm552
    %v554 = vsel %vm553, %v546, %v550
    %v555 = vand.u32 2147483647, %v545
    %vm556 = vcmp.eq.f32.partialorder %v555, 8.507059e+37
    %v557 = vand.u32 %v545, 2147483648
    %v558 = vor.u32 1.1754944e-38, %v557
    %v559 = vsel %vm556, %v558, %v554
    %v560 = vmul.f32 1.0, %v559
    %v561 = vtanh.pop %v541
    %v562 = vmul.f32 %v560, %v304
    %564 = vrot.lane.b32.xlu0 %v561, 64
    %v565 = vpop.permute.xlu0 %564
    %v567 = vmul.f32 %v560, %v565
    %569 = vrot.lane.b32.xlu0 %v567, 32
    %v570 = vpop.permute.xlu0 %569
    %v572 = vadd.f32 %v562, %v570
    %v573 = vtanh.pop %v572
    %575 = vrot.lane.b32.xlu0 %v573, 64
    %v576 = vpop.permute.xlu0 %575
    %v578 = vmul.f32 %v560, %v576
    %580 = vrot.lane.b32.xlu0 %v578, 32
    %v581 = vpop.permute.xlu0 %580
    %v582 = vsel %vm225, %v581, 0
    %584 = vmatpush.msra.mxu0 0.0
    %585 = vmatpush.msra.mxu0 0.0
    %586 = vmatpush.msra.mxu0 0.0
    %587 = vmatpush.msra.mxu0 0.0
    %588 = vmatpush.msra.mxu0 0.0
    %589 = vmatpush.msra.mxu0 0.0
    %590 = vmatpush.msra.mxu0 0.0
    %591 = vmatpush.msra.mxu0 0.0
    %592 = vmatpush.msra.mxu0 0.0
    %593 = vmatpush.msra.mxu0 0.0
    %594 = vmatpush.msra.mxu0 0.0
    %595 = vmatpush.msra.mxu0 0.0
    %596 = vmatpush.msra.mxu0 %v126
    %597 = vmatpush.msra.mxu0 %v125
    %598 = vmatpush.msra.mxu0 %v124
    %599 = vmatpush.msra.mxu0 %v123
    %600 = vmatmul.f32.gmra.mxu0 %v582
    %v601 = vpop.f32.mrf.mxu0
    %v602 = vadd.f32 %v312, %v601
    %603 = vdwg.mxu0
    %v604 = vadd.f32 %v602, %v539
    %v605 = vxor.u32 %v604, 2147483648
    %v606 = vmul.f32 %v605, 1.442695
    %v607 = vpow.pop %v606
    %v608 = vadd.f32 %v607, 1.0
    %v609 = vrcp.pop %v608
    %v610 = vmul.f32 %v608, %v609
    %v611 = vsub.f32 1.0, %v610
    %v612 = vmul.f32 %v609, %v611
    %v613 = vadd.f32 %v609, %v612
    %vm614 = vweird.f32 %v608
    %vm615 = vweird.f32 %v609
    %vm616 = vmor %vm614, %vm615
    %v617 = vsel %vm616, %v609, %v613
    %v618 = vand.u32 2147483647, %v608
    %vm619 = vcmp.eq.f32.partialorder %v618, 8.507059e+37
    %v620 = vand.u32 %v608, 2147483648
    %v621 = vor.u32 1.1754944e-38, %v620
    %v622 = vsel %vm619, %v621, %v617
    %v623 = vmul.f32 1.0, %v622
    %v624 = vtanh.pop %v604
    %v625 = vmul.f32 %v623, %v370
    %627 = vrot.lane.b32.xlu0 %v624, 64
    %v628 = vpop.permute.xlu0 %627
    %v630 = vmul.f32 %v623, %v628
    %632 = vrot.lane.b32.xlu0 %v630, 32
    %v633 = vpop.permute.xlu0 %632
    %v635 = vadd.f32 %v625, %v633
    %v636 = vtanh.pop %v635
    %638 = vrot.lane.b32.xlu0 %v636, 64
    %v639 = vpop.permute.xlu0 %638
    %v641 = vmul.f32 %v623, %v639
    %643 = vrot.lane.b32.xlu0 %v641, 32
    %v644 = vpop.permute.xlu0 %643
    %v645 = vsel %vm225, %v644, 0
    %647 = vmatpush.msra.mxu0 0.0
    %648 = vmatpush.msra.mxu0 0.0
    %649 = vmatpush.msra.mxu0 0.0
    %650 = vmatpush.msra.mxu0 0.0
    %651 = vmatpush.msra.mxu0 0.0
    %652 = vmatpush.msra.mxu0 0.0
    %653 = vmatpush.msra.mxu0 0.0
    %654 = vmatpush.msra.mxu0 0.0
    %655 = vmatpush.msra.mxu0 0.0
    %656 = vmatpush.msra.mxu0 0.0
    %657 = vmatpush.msra.mxu0 0.0
    %658 = vmatpush.msra.mxu0 0.0
    %659 = vmatpush.msra.mxu0 %v141
    %660 = vmatpush.msra.mxu0 %v137
    %661 = vmatpush.msra.mxu0 %v133
    %662 = vmatpush.msra.mxu0 %v129
    %663 = vmatmul.f32.gmra.mxu0 %v645
    %v664 = vpop.f32.mrf.mxu0
    %v665 = vadd.f32 %v378, %v664
    %666 = vdwg.mxu0
    %667 = vmatpush.msra.mxu0 0.0
    %668 = vmatpush.msra.mxu0 0.0
    %669 = vmatpush.msra.mxu0 0.0
    %670 = vmatpush.msra.mxu0 0.0
    %671 = vmatpush.msra.mxu0 0.0
    %672 = vmatpush.msra.mxu0 0.0
    %673 = vmatpush.msra.mxu0 0.0
    %674 = vmatpush.msra.mxu0 0.0
    %675 = vmatpush.msra.mxu0 0.0
    %676 = vmatpush.msra.mxu0 0.0
    %677 = vmatpush.msra.mxu0 0.0
    %678 = vmatpush.msra.mxu0 0.0
    %679 = vmatpush.msra.mxu0 %v142
    %680 = vmatpush.msra.mxu0 %v138
    %681 = vmatpush.msra.mxu0 %v134
    %682 = vmatpush.msra.mxu0 %v130
    %683 = vmatmul.f32.gmra.mxu0 %v645
    %v684 = vpop.f32.mrf.mxu0
    %v685 = vadd.f32 %v379, %v684
    %686 = vdwg.mxu0
    %687 = vmatpush.msra.mxu0 0.0
    %688 = vmatpush.msra.mxu0 0.0
    %689 = vmatpush.msra.mxu0 0.0
    %690 = vmatpush.msra.mxu0 0.0
    %691 = vmatpush.msra.mxu0 0.0
    %692 = vmatpush.msra.mxu0 0.0
    %693 = vmatpush.msra.mxu0 0.0
    %694 = vmatpush.msra.mxu0 0.0
    %695 = vmatpush.msra.mxu0 0.0
    %696 = vmatpush.msra.mxu0 0.0
    %697 = vmatpush.msra.mxu0 0.0
    %698 = vmatpush.msra.mxu0 0.0
    %699 = vmatpush.msra.mxu0 %v143
    %700 = vmatpush.msra.mxu0 %v139
    %701 = vmatpush.msra.mxu0 %v135
    %702 = vmatpush.msra.mxu0 %v131
    %703 = vmatmul.f32.gmra.mxu0 %v645
    %v704 = vpop.f32.mrf.mxu0
    %v705 = vadd.f32 %v380, %v704
    %706 = vdwg.mxu0
    %707 = vmatpush.msra.mxu0 0.0
    %708 = vmatpush.msra.mxu0 0.0
    %709 = vmatpush.msra.mxu0 0.0
    %710 = vmatpush.msra.mxu0 0.0
    %711 = vmatpush.msra.mxu0 0.0
    %712 = vmatpush.msra.mxu0 0.0
    %713 = vmatpush.msra.mxu0 0.0
    %714 = vmatpush.msra.mxu0 0.0
    %715 = vmatpush.msra.mxu0 0.0
    %716 = vmatpush.msra.mxu0 0.0
    %717 = vmatpush.msra.mxu0 0.0
    %718 = vmatpush.msra.mxu0 0.0
    %719 = vmatpush.msra.mxu0 %v144
    %720 = vmatpush.msra.mxu0 %v140
    %721 = vmatpush.msra.mxu0 %v136
    %722 = vmatpush.msra.mxu0 %v132
    %723 = vmatmul.f32.gmra.mxu0 %v645
    %v724 = vpop.f32.mrf.mxu0
    %v725 = vadd.f32 %v381, %v724
    %726 = vdwg.mxu0
    %v727 = vtanh.pop %v665
    %v728 = vtanh.pop %v685
    %v729 = vtanh.pop %v705
    %v730 = vtanh.pop %v725
    %v731 = vmul.f32 %v727, %v476
    %v732 = vmul.f32 %v728, %v477
    %v733 = vmul.f32 %v729, %v478
    %v734 = vmul.f32 %v730, %v479
    %v735 = vadd.f32 %v731, %v732
    %v736 = vadd.f32 %v735, %v733
    %v737 = vadd.f32 %v736, %v734
    %738 = vadd.xlane.f32.xlu0 %v737
    %v739 = vpop.xlane.xlu0 %738
    %v740 = vadd.f32 %v739, %v494
    %741 = vmatpush.msra.mxu0 0.0
    %742 = vmatpush.msra.mxu0 0.0
    %743 = vmatpush.msra.mxu0 0.0
    %744 = vmatpush.msra.mxu0 0.0
    %745 = vmatpush.msra.mxu0 0.0
    %746 = vmatpush.msra.mxu0 0.0
    %747 = vmatpush.msra.mxu0 0.0
    %748 = vmatpush.msra.mxu0 0.0
    %749 = vmatpush.msra.mxu0 0.0
    %750 = vmatpush.msra.mxu0 0.0
    %751 = vmatpush.msra.mxu0 0.0
    %752 = vmatpush.msra.mxu0 0.0
    %753 = vmatpush.msra.mxu0 %v119
    %754 = vmatpush.msra.mxu0 %v117
    %755 = vmatpush.msra.mxu0 %v115
    %756 = vmatpush.msra.mxu0 %v113
    %757 = vmatmul.f32.gmra.mxu0 %v582
    %v758 = vpop.f32.mrf.mxu0
    %v759 = vadd.f32 0.0, %v758
    %760 = vmatmul.f32.gmra.mxu0 %v645
    %v761 = vpop.f32.mrf.mxu0
    %762 = vdwg.mxu0
    %763 = vmatpush.msra.mxu0 0.0
    %764 = vmatpush.msra.mxu0 0.0
    %765 = vmatpush.msra.mxu0 0.0
    %766 = vmatpush.msra.mxu0 0.0
    %767 = vmatpush.msra.mxu0 0.0
    %768 = vmatpush.msra.mxu0 0.0
    %769 = vmatpush.msra.mxu0 0.0
    %770 = vmatpush.msra.mxu0 0.0
    %771 = vmatpush.msra.mxu0 0.0
    %772 = vmatpush.msra.mxu0 0.0
    %773 = vmatpush.msra.mxu0 0.0
    %774 = vmatpush.msra.mxu0 0.0
    %775 = vmatpush.msra.mxu0 %v120
    %776 = vmatpush.msra.mxu0 %v118
    %777 = vmatpush.msra.mxu0 %v116
    %778 = vmatpush.msra.mxu0 %v114
    %779 = vmatmul.f32.gmra.mxu0 %v582
    %v780 = vpop.f32.mrf.mxu0
    %781 = vmatmul.f32.gmra.mxu0 %v645
    %v782 = vpop.f32.mrf.mxu0
    %v783 = vadd.f32 0.0, %v782
    %784 = vdwg.mxu0
    %v785 = vadd.f32 %v208, %v759
    %v786 = vxor.u32 %v785, 2147483648
    %v787 = vmul.f32 %v786, 1.442695
    %v788 = vpow.pop %v787
    %v789 = vadd.f32 %v788, 1.0
    %v790 = vrcp.pop %v789
    %v791 = vmul.f32 %v789, %v790
    %v792 = vsub.f32 1.0, %v791
    %v793 = vmul.f32 %v790, %v792
    %v794 = vadd.f32 %v790, %v793
    %vm795 = vweird.f32 %v789
    %vm796 = vweird.f32 %v790
    %vm797 = vmor %vm795, %vm796
    %v798 = vsel %vm797, %v790, %v794
    %v799 = vand.u32 2147483647, %v789
    %vm800 = vcmp.eq.f32.partialorder %v799, 8.507059e+37
    %v801 = vand.u32 %v789, 2147483648
    %v802 = vor.u32 1.1754944e-38, %v801
    %v803 = vsel %vm800, %v802, %v798
    %v804 = vmul.f32 1.0, %v803
    %v805 = vtanh.pop %v785
    %v806 = vmul.f32 %v804, %v572
    %808 = vrot.lane.b32.xlu0 %v805, 64
    %v809 = vpop.permute.xlu0 %808
    %v811 = vmul.f32 %v804, %v809
    %813 = vrot.lane.b32.xlu0 %v811, 32
    %v814 = vpop.permute.xlu0 %813
    %v816 = vadd.f32 %v806, %v814
    %v817 = vtanh.pop %v816
    %819 = vrot.lane.b32.xlu0 %v817, 64
    %v820 = vpop.permute.xlu0 %819
    %v822 = vmul.f32 %v804, %v820
    %824 = vrot.lane.b32.xlu0 %v822, 32
    %v825 = vpop.permute.xlu0 %824
    %v826 = vsel %vm225, %v825, 0
    %828 = vmatpush.msra.mxu0 0.0
    %829 = vmatpush.msra.mxu0 0.0
    %830 = vmatpush.msra.mxu0 0.0
    %831 = vmatpush.msra.mxu0 0.0
    %832 = vmatpush.msra.mxu0 0.0
    %833 = vmatpush.msra.mxu0 0.0
    %834 = vmatpush.msra.mxu0 0.0
    %835 = vmatpush.msra.mxu0 0.0
    %836 = vmatpush.msra.mxu0 0.0
    %837 = vmatpush.msra.mxu0 0.0
    %838 = vmatpush.msra.mxu0 0.0
    %839 = vmatpush.msra.mxu0 0.0
    %840 = vmatpush.msra.mxu0 %v126
    %841 = vmatpush.msra.mxu0 %v125
    %842 = vmatpush.msra.mxu0 %v124
    %843 = vmatpush.msra.mxu0 %v123
    %844 = vmatmul.f32.gmra.mxu0 %v826
    %v845 = vpop.f32.mrf.mxu0
    %v846 = vadd.f32 %v312, %v845
    %847 = vdwg.mxu0
    %v848 = vadd.f32 %v846, %v783
    %v849 = vxor.u32 %v848, 2147483648
    %v850 = vmul.f32 %v849, 1.442695
    %v851 = vpow.pop %v850
    %v852 = vadd.f32 %v851, 1.0
    %v853 = vrcp.pop %v852
    %v854 = vmul.f32 %v852, %v853
    %v855 = vsub.f32 1.0, %v854
    %v856 = vmul.f32 %v853, %v855
    %v857 = vadd.f32 %v853, %v856
    %vm858 = vweird.f32 %v852
    %vm859 = vweird.f32 %v853
    %vm860 = vmor %vm858, %vm859
    %v861 = vsel %vm860, %v853, %v857
    %v862 = vand.u32 2147483647, %v852
    %vm863 = vcmp.eq.f32.partialorder %v862, 8.507059e+37
    %v864 = vand.u32 %v852, 2147483648
    %v865 = vor.u32 1.1754944e-38, %v864
    %v866 = vsel %vm863, %v865, %v861
    %v867 = vmul.f32 1.0, %v866
    %v868 = vtanh.pop %v848
    %v869 = vmul.f32 %v867, %v635
    %871 = vrot.lane.b32.xlu0 %v868, 64
    %v872 = vpop.permute.xlu0 %871
    %v874 = vmul.f32 %v867, %v872
    %876 = vrot.lane.b32.xlu0 %v874, 32
    %v877 = vpop.permute.xlu0 %876
    %v879 = vadd.f32 %v869, %v877
    %v880 = vtanh.pop %v879
    %882 = vrot.lane.b32.xlu0 %v880, 64
    %v883 = vpop.permute.xlu0 %882
    %v885 = vmul.f32 %v867, %v883
    %887 = vrot.lane.b32.xlu0 %v885, 32
    %v888 = vpop.permute.xlu0 %887
    %v889 = vsel %vm225, %v888, 0
    %891 = vmatpush.msra.mxu0 0.0
    %892 = vmatpush.msra.mxu0 0.0
    %893 = vmatpush.msra.mxu0 0.0
    %894 = vmatpush.msra.mxu0 0.0
    %895 = vmatpush.msra.mxu0 0.0
    %896 = vmatpush.msra.mxu0 0.0
    %897 = vmatpush.msra.mxu0 0.0
    %898 = vmatpush.msra.mxu0 0.0
    %899 = vmatpush.msra.mxu0 0.0
    %900 = vmatpush.msra.mxu0 0.0
    %901 = vmatpush.msra.mxu0 0.0
    %902 = vmatpush.msra.mxu0 0.0
    %903 = vmatpush.msra.mxu0 %v141
    %904 = vmatpush.msra.mxu0 %v137
    %905 = vmatpush.msra.mxu0 %v133
    %906 = vmatpush.msra.mxu0 %v129
    %907 = vmatmul.f32.gmra.mxu0 %v889
    %v908 = vpop.f32.mrf.mxu0
    %v909 = vadd.f32 %v378, %v908
    %910 = vdwg.mxu0
    %911 = vmatpush.msra.mxu0 0.0
    %912 = vmatpush.msra.mxu0 0.0
    %913 = vmatpush.msra.mxu0 0.0
    %914 = vmatpush.msra.mxu0 0.0
    %915 = vmatpush.msra.mxu0 0.0
    %916 = vmatpush.msra.mxu0 0.0
    %917 = vmatpush.msra.mxu0 0.0
    %918 = vmatpush.msra.mxu0 0.0
    %919 = vmatpush.msra.mxu0 0.0
    %920 = vmatpush.msra.mxu0 0.0
    %921 = vmatpush.msra.mxu0 0.0
    %922 = vmatpush.msra.mxu0 0.0
    %923 = vmatpush.msra.mxu0 %v142
    %924 = vmatpush.msra.mxu0 %v138
    %925 = vmatpush.msra.mxu0 %v134
    %926 = vmatpush.msra.mxu0 %v130
    %927 = vmatmul.f32.gmra.mxu0 %v889
    %v928 = vpop.f32.mrf.mxu0
    %v929 = vadd.f32 %v379, %v928
    %930 = vdwg.mxu0
    %931 = vmatpush.msra.mxu0 0.0
    %932 = vmatpush.msra.mxu0 0.0
    %933 = vmatpush.msra.mxu0 0.0
    %934 = vmatpush.msra.mxu0 0.0
    %935 = vmatpush.msra.mxu0 0.0
    %936 = vmatpush.msra.mxu0 0.0
    %937 = vmatpush.msra.mxu0 0.0
    %938 = vmatpush.msra.mxu0 0.0
    %939 = vmatpush.msra.mxu0 0.0
    %940 = vmatpush.msra.mxu0 0.0
    %941 = vmatpush.msra.mxu0 0.0
    %942 = vmatpush.msra.mxu0 0.0
    %943 = vmatpush.msra.mxu0 %v143
    %944 = vmatpush.msra.mxu0 %v139
    %945 = vmatpush.msra.mxu0 %v135
    %946 = vmatpush.msra.mxu0 %v131
    %947 = vmatmul.f32.gmra.mxu0 %v889
    %v948 = vpop.f32.mrf.mxu0
    %v949 = vadd.f32 %v380, %v948
    %950 = vdwg.mxu0
    %951 = vmatpush.msra.mxu0 0.0
    %952 = vmatpush.msra.mxu0 0.0
    %953 = vmatpush.msra.mxu0 0.0
    %954 = vmatpush.msra.mxu0 0.0
    %955 = vmatpush.msra.mxu0 0.0
    %956 = vmatpush.msra.mxu0 0.0
    %957 = vmatpush.msra.mxu0 0.0
    %958 = vmatpush.msra.mxu0 0.0
    %959 = vmatpush.msra.mxu0 0.0
    %960 = vmatpush.msra.mxu0 0.0
    %961 = vmatpush.msra.mxu0 0.0
    %962 = vmatpush.msra.mxu0 0.0
    %963 = vmatpush.msra.mxu0 %v144
    %964 = vmatpush.msra.mxu0 %v140
    %965 = vmatpush.msra.mxu0 %v136
    %966 = vmatpush.msra.mxu0 %v132
    %967 = vmatmul.f32.gmra.mxu0 %v889
    %v968 = vpop.f32.mrf.mxu0
    %v969 = vadd.f32 %v381, %v968
    %970 = vdwg.mxu0
    %v971 = vtanh.pop %v909
    %v972 = vtanh.pop %v929
    %v973 = vtanh.pop %v949
    %v974 = vtanh.pop %v969
    %v975 = vmul.f32 %v971, %v476
    %v976 = vmul.f32 %v972, %v477
    %v977 = vmul.f32 %v973, %v478
    %v978 = vmul.f32 %v974, %v479
    %v979 = vadd.f32 %v975, %v976
    %v980 = vadd.f32 %v979, %v977
    %v981 = vadd.f32 %v980, %v978
    %982 = vadd.xlane.f32.xlu0 %v981
    %v983 = vpop.xlane.xlu0 %982
    %v984 = vadd.f32 %v983, %v494
    %985 = vmatpush.msra.mxu0 0.0
    %986 = vmatpush.msra.mxu0 0.0
    %987 = vmatpush.msra.mxu0 0.0
    %988 = vmatpush.msra.mxu0 0.0
    %989 = vmatpush.msra.mxu0 0.0
    %990 = vmatpush.msra.mxu0 0.0
    %991 = vmatpush.msra.mxu0 0.0
    %992 = vmatpush.msra.mxu0 0.0
    %993 = vmatpush.msra.mxu0 0.0
    %994 = vmatpush.msra.mxu0 0.0
    %995 = vmatpush.msra.mxu0 0.0
    %996 = vmatpush.msra.mxu0 0.0
    %997 = vmatpush.msra.mxu0 %v119
    %998 = vmatpush.msra.mxu0 %v117
    %999 = vmatpush.msra.mxu0 %v115
    %1000 = vmatpush.msra.mxu0 %v113
    %1001 = vmatmul.f32.gmra.mxu0 %v826
    %v1002 = vpop.f32.mrf.mxu0
    %v1003 = vadd.f32 0.0, %v1002
    %1004 = vmatmul.f32.gmra.mxu0 %v889
    %v1005 = vpop.f32.mrf.mxu0
    %1006 = vdwg.mxu0
    %1007 = vmatpush.msra.mxu0 0.0
    %1008 = vmatpush.msra.mxu0 0.0
    %1009 = vmatpush.msra.mxu0 0.0
    %1010 = vmatpush.msra.mxu0 0.0
    %1011 = vmatpush.msra.mxu0 0.0
    %1012 = vmatpush.msra.mxu0 0.0
    %1013 = vmatpush.msra.mxu0 0.0
    %1014 = vmatpush.msra.mxu0 0.0
    %1015 = vmatpush.msra.mxu0 0.0
    %1016 = vmatpush.msra.mxu0 0.0
    %1017 = vmatpush.msra.mxu0 0.0
    %1018 = vmatpush.msra.mxu0 0.0
    %1019 = vmatpush.msra.mxu0 %v120
    %1020 = vmatpush.msra.mxu0 %v118
    %1021 = vmatpush.msra.mxu0 %v116
    %1022 = vmatpush.msra.mxu0 %v114
    %1023 = vmatmul.f32.gmra.mxu0 %v826
    %v1024 = vpop.f32.mrf.mxu0
    %1025 = vmatmul.f32.gmra.mxu0 %v889
    %v1026 = vpop.f32.mrf.mxu0
    %v1027 = vadd.f32 0.0, %v1026
    %1028 = vdwg.mxu0
    %v1029 = vadd.f32 %v211, %v1003
    %v1030 = vxor.u32 %v1029, 2147483648
    %v1031 = vmul.f32 %v1030, 1.442695
    %v1032 = vpow.pop %v1031
    %v1033 = vadd.f32 %v1032, 1.0
    %v1034 = vrcp.pop %v1033
    %v1035 = vmul.f32 %v1033, %v1034
    %v1036 = vsub.f32 1.0, %v1035
    %v1037 = vmul.f32 %v1034, %v1036
    %v1038 = vadd.f32 %v1034, %v1037
    %vm1039 = vweird.f32 %v1033
    %vm1040 = vweird.f32 %v1034
    %vm1041 = vmor %vm1039, %vm1040
    %v1042 = vsel %vm1041, %v1034, %v1038
    %v1043 = vand.u32 2147483647, %v1033
    %vm1044 = vcmp.eq.f32.partialorder %v1043, 8.507059e+37
    %v1045 = vand.u32 %v1033, 2147483648
    %v1046 = vor.u32 1.1754944e-38, %v1045
    %v1047 = vsel %vm1044, %v1046, %v1042
    %v1048 = vmul.f32 1.0, %v1047
    %v1049 = vtanh.pop %v1029
    %v1050 = vmul.f32 %v1048, %v816
    %1052 = vrot.lane.b32.xlu0 %v1049, 64
    %v1053 = vpop.permute.xlu0 %1052
    %v1055 = vmul.f32 %v1048, %v1053
    %1057 = vrot.lane.b32.xlu0 %v1055, 32
    %v1058 = vpop.permute.xlu0 %1057
    %v1060 = vadd.f32 %v1050, %v1058
    %v1061 = vtanh.pop %v1060
    %1063 = vrot.lane.b32.xlu0 %v1061, 64
    %v1064 = vpop.permute.xlu0 %1063
    %v1066 = vmul.f32 %v1048, %v1064
    %1068 = vrot.lane.b32.xlu0 %v1066, 32
    %v1069 = vpop.permute.xlu0 %1068
    %v1070 = vsel %vm225, %v1069, 0
    %1072 = vmatpush.msra.mxu0 0.0
    %1073 = vmatpush.msra.mxu0 0.0
    %1074 = vmatpush.msra.mxu0 0.0
    %1075 = vmatpush.msra.mxu0 0.0
    %1076 = vmatpush.msra.mxu0 0.0
    %1077 = vmatpush.msra.mxu0 0.0
    %1078 = vmatpush.msra.mxu0 0.0
    %1079 = vmatpush.msra.mxu0 0.0
    %1080 = vmatpush.msra.mxu0 0.0
    %1081 = vmatpush.msra.mxu0 0.0
    %1082 = vmatpush.msra.mxu0 0.0
    %1083 = vmatpush.msra.mxu0 0.0
    %1084 = vmatpush.msra.mxu0 %v126
    %1085 = vmatpush.msra.mxu0 %v125
    %1086 = vmatpush.msra.mxu0 %v124
    %1087 = vmatpush.msra.mxu0 %v123
    %1088 = vmatmul.f32.gmra.mxu0 %v1070
    %v1089 = vpop.f32.mrf.mxu0
    %v1090 = vadd.f32 %v312, %v1089
    %1091 = vdwg.mxu0
    %v1092 = vadd.f32 %v1090, %v1027
    %v1093 = vxor.u32 %v1092, 2147483648
    %v1094 = vmul.f32 %v1093, 1.442695
    %v1095 = vpow.pop %v1094
    %v1096 = vadd.f32 %v1095, 1.0
    %v1097 = vrcp.pop %v1096
    %v1098 = vmul.f32 %v1096, %v1097
    %v1099 = vsub.f32 1.0, %v1098
    %v1100 = vmul.f32 %v1097, %v1099
    %v1101 = vadd.f32 %v1097, %v1100
    %vm1102 = vweird.f32 %v1096
    %vm1103 = vweird.f32 %v1097
    %vm1104 = vmor %vm1102, %vm1103
    %v1105 = vsel %vm1104, %v1097, %v1101
    %v1106 = vand.u32 2147483647, %v1096
    %vm1107 = vcmp.eq.f32.partialorder %v1106, 8.507059e+37
    %v1108 = vand.u32 %v1096, 2147483648
    %v1109 = vor.u32 1.1754944e-38, %v1108
    %v1110 = vsel %vm1107, %v1109, %v1105
    %v1111 = vmul.f32 1.0, %v1110
    %v1112 = vtanh.pop %v1092
    %v1113 = vmul.f32 %v1111, %v879
    %1115 = vrot.lane.b32.xlu0 %v1112, 64
    %v1116 = vpop.permute.xlu0 %1115
    %v1118 = vmul.f32 %v1111, %v1116
    %1120 = vrot.lane.b32.xlu0 %v1118, 32
    %v1121 = vpop.permute.xlu0 %1120
    %v1123 = vadd.f32 %v1113, %v1121
    %v1124 = vtanh.pop %v1123
    %1126 = vrot.lane.b32.xlu0 %v1124, 64
    %v1127 = vpop.permute.xlu0 %1126
    %v1129 = vmul.f32 %v1111, %v1127
    %1131 = vrot.lane.b32.xlu0 %v1129, 32
    %v1132 = vpop.permute.xlu0 %1131
    %v1133 = vsel %vm225, %v1132, 0
    %1135 = vmatpush.msra.mxu0 0.0
    %1136 = vmatpush.msra.mxu0 0.0
    %1137 = vmatpush.msra.mxu0 0.0
    %1138 = vmatpush.msra.mxu0 0.0
    %1139 = vmatpush.msra.mxu0 0.0
    %1140 = vmatpush.msra.mxu0 0.0
    %1141 = vmatpush.msra.mxu0 0.0
    %1142 = vmatpush.msra.mxu0 0.0
    %1143 = vmatpush.msra.mxu0 0.0
    %1144 = vmatpush.msra.mxu0 0.0
    %1145 = vmatpush.msra.mxu0 0.0
    %1146 = vmatpush.msra.mxu0 0.0
    %1147 = vmatpush.msra.mxu0 %v141
    %1148 = vmatpush.msra.mxu0 %v137
    %1149 = vmatpush.msra.mxu0 %v133
    %1150 = vmatpush.msra.mxu0 %v129
    %1151 = vmatmul.f32.gmra.mxu0 %v1133
    %v1152 = vpop.f32.mrf.mxu0
    %v1153 = vadd.f32 %v378, %v1152
    %1154 = vdwg.mxu0
    %1155 = vmatpush.msra.mxu0 0.0
    %1156 = vmatpush.msra.mxu0 0.0
    %1157 = vmatpush.msra.mxu0 0.0
    %1158 = vmatpush.msra.mxu0 0.0
    %1159 = vmatpush.msra.mxu0 0.0
    %1160 = vmatpush.msra.mxu0 0.0
    %1161 = vmatpush.msra.mxu0 0.0
    %1162 = vmatpush.msra.mxu0 0.0
    %1163 = vmatpush.msra.mxu0 0.0
    %1164 = vmatpush.msra.mxu0 0.0
    %1165 = vmatpush.msra.mxu0 0.0
    %1166 = vmatpush.msra.mxu0 0.0
    %1167 = vmatpush.msra.mxu0 %v142
    %1168 = vmatpush.msra.mxu0 %v138
    %1169 = vmatpush.msra.mxu0 %v134
    %1170 = vmatpush.msra.mxu0 %v130
    %1171 = vmatmul.f32.gmra.mxu0 %v1133
    %v1172 = vpop.f32.mrf.mxu0
    %v1173 = vadd.f32 %v379, %v1172
    %1174 = vdwg.mxu0
    %1175 = vmatpush.msra.mxu0 0.0
    %1176 = vmatpush.msra.mxu0 0.0
    %1177 = vmatpush.msra.mxu0 0.0
    %1178 = vmatpush.msra.mxu0 0.0
    %1179 = vmatpush.msra.mxu0 0.0
    %1180 = vmatpush.msra.mxu0 0.0
    %1181 = vmatpush.msra.mxu0 0.0
    %1182 = vmatpush.msra.mxu0 0.0
    %1183 = vmatpush.msra.mxu0 0.0
    %1184 = vmatpush.msra.mxu0 0.0
    %1185 = vmatpush.msra.mxu0 0.0
    %1186 = vmatpush.msra.mxu0 0.0
    %1187 = vmatpush.msra.mxu0 %v143
    %1188 = vmatpush.msra.mxu0 %v139
    %1189 = vmatpush.msra.mxu0 %v135
    %1190 = vmatpush.msra.mxu0 %v131
    %1191 = vmatmul.f32.gmra.mxu0 %v1133
    %v1192 = vpop.f32.mrf.mxu0
    %v1193 = vadd.f32 %v380, %v1192
    %1194 = vdwg.mxu0
    %1195 = vmatpush.msra.mxu0 0.0
    %1196 = vmatpush.msra.mxu0 0.0
    %1197 = vmatpush.msra.mxu0 0.0
    %1198 = vmatpush.msra.mxu0 0.0
    %1199 = vmatpush.msra.mxu0 0.0
    %1200 = vmatpush.msra.mxu0 0.0
    %1201 = vmatpush.msra.mxu0 0.0
    %1202 = vmatpush.msra.mxu0 0.0
    %1203 = vmatpush.msra.mxu0 0.0
    %1204 = vmatpush.msra.mxu0 0.0
    %1205 = vmatpush.msra.mxu0 0.0
    %1206 = vmatpush.msra.mxu0 0.0
    %1207 = vmatpush.msra.mxu0 %v144
    %1208 = vmatpush.msra.mxu0 %v140
    %1209 = vmatpush.msra.mxu0 %v136
    %1210 = vmatpush.msra.mxu0 %v132
    %1211 = vmatmul.f32.gmra.mxu0 %v1133
    %v1212 = vpop.f32.mrf.mxu0
    %v1213 = vadd.f32 %v381, %v1212
    %1214 = vdwg.mxu0
    %v1215 = vtanh.pop %v1153
    %v1216 = vtanh.pop %v1173
    %v1217 = vtanh.pop %v1193
    %v1218 = vtanh.pop %v1213
    %v1219 = vmul.f32 %v1215, %v476
    %v1220 = vmul.f32 %v1216, %v477
    %v1221 = vmul.f32 %v1217, %v478
    %v1222 = vmul.f32 %v1218, %v479
    %v1223 = vadd.f32 %v1219, %v1220
    %v1224 = vadd.f32 %v1223, %v1221
    %v1225 = vadd.f32 %v1224, %v1222
    %1226 = vadd.xlane.f32.xlu0 %v1225
    %v1227 = vpop.xlane.xlu0 %1226
    %v1228 = vadd.f32 %v1227, %v494
    %1229 = vmatpush.msra.mxu0 0.0
    %1230 = vmatpush.msra.mxu0 0.0
    %1231 = vmatpush.msra.mxu0 0.0
    %1232 = vmatpush.msra.mxu0 0.0
    %1233 = vmatpush.msra.mxu0 0.0
    %1234 = vmatpush.msra.mxu0 0.0
    %1235 = vmatpush.msra.mxu0 0.0
    %1236 = vmatpush.msra.mxu0 0.0
    %1237 = vmatpush.msra.mxu0 0.0
    %1238 = vmatpush.msra.mxu0 0.0
    %1239 = vmatpush.msra.mxu0 0.0
    %1240 = vmatpush.msra.mxu0 0.0
    %1241 = vmatpush.msra.mxu0 %v119
    %1242 = vmatpush.msra.mxu0 %v117
    %1243 = vmatpush.msra.mxu0 %v115
    %1244 = vmatpush.msra.mxu0 %v113
    %1245 = vmatmul.f32.gmra.mxu0 %v1070
    %v1246 = vpop.f32.mrf.mxu0
    %v1247 = vadd.f32 0.0, %v1246
    %1248 = vmatmul.f32.gmra.mxu0 %v1133
    %v1249 = vpop.f32.mrf.mxu0
    %1250 = vdwg.mxu0
    %1251 = vmatpush.msra.mxu0 0.0
    %1252 = vmatpush.msra.mxu0 0.0
    %1253 = vmatpush.msra.mxu0 0.0
    %1254 = vmatpush.msra.mxu0 0.0
    %1255 = vmatpush.msra.mxu0 0.0
    %1256 = vmatpush.msra.mxu0 0.0
    %1257 = vmatpush.msra.mxu0 0.0
    %1258 = vmatpush.msra.mxu0 0.0
    %1259 = vmatpush.msra.mxu0 0.0
    %1260 = vmatpush.msra.mxu0 0.0
    %1261 = vmatpush.msra.mxu0 0.0
    %1262 = vmatpush.msra.mxu0 0.0
    %1263 = vmatpush.msra.mxu0 %v120
    %1264 = vmatpush.msra.mxu0 %v118
    %1265 = vmatpush.msra.mxu0 %v116
    %1266 = vmatpush.msra.mxu0 %v114
    %1267 = vmatmul.f32.gmra.mxu0 %v1070
    %v1268 = vpop.f32.mrf.mxu0
    %1269 = vmatmul.f32.gmra.mxu0 %v1133
    %v1270 = vpop.f32.mrf.mxu0
    %v1271 = vadd.f32 0.0, %v1270
    %1272 = vdwg.mxu0
    %v1273 = vadd.f32 %v214, %v1247
    %v1274 = vxor.u32 %v1273, 2147483648
    %v1275 = vmul.f32 %v1274, 1.442695
    %v1276 = vpow.pop %v1275
    %v1277 = vadd.f32 %v1276, 1.0
    %v1278 = vrcp.pop %v1277
    %v1279 = vmul.f32 %v1277, %v1278
    %v1280 = vsub.f32 1.0, %v1279
    %v1281 = vmul.f32 %v1278, %v1280
    %v1282 = vadd.f32 %v1278, %v1281
    %vm1283 = vweird.f32 %v1277
    %vm1284 = vweird.f32 %v1278
    %vm1285 = vmor %vm1283, %vm1284
    %v1286 = vsel %vm1285, %v1278, %v1282
    %v1287 = vand.u32 2147483647, %v1277
    %vm1288 = vcmp.eq.f32.partialorder %v1287, 8.507059e+37
    %v1289 = vand.u32 %v1277, 2147483648
    %v1290 = vor.u32 1.1754944e-38, %v1289
    %v1291 = vsel %vm1288, %v1290, %v1286
    %v1292 = vmul.f32 1.0, %v1291
    %v1293 = vtanh.pop %v1273
    %v1294 = vmul.f32 %v1292, %v1060
    %1296 = vrot.lane.b32.xlu0 %v1293, 64
    %v1297 = vpop.permute.xlu0 %1296
    %v1299 = vmul.f32 %v1292, %v1297
    %1301 = vrot.lane.b32.xlu0 %v1299, 32
    %v1302 = vpop.permute.xlu0 %1301
    %v1304 = vadd.f32 %v1294, %v1302
    %v1305 = vtanh.pop %v1304
    %1307 = vrot.lane.b32.xlu0 %v1305, 64
    %v1308 = vpop.permute.xlu0 %1307
    %v1310 = vmul.f32 %v1292, %v1308
    %1312 = vrot.lane.b32.xlu0 %v1310, 32
    %v1313 = vpop.permute.xlu0 %1312
    %v1314 = vsel %vm225, %v1313, 0
    %1316 = vmatpush.msra.mxu0 0.0
    %1317 = vmatpush.msra.mxu0 0.0
    %1318 = vmatpush.msra.mxu0 0.0
    %1319 = vmatpush.msra.mxu0 0.0
    %1320 = vmatpush.msra.mxu0 0.0
    %1321 = vmatpush.msra.mxu0 0.0
    %1322 = vmatpush.msra.mxu0 0.0
    %1323 = vmatpush.msra.mxu0 0.0
    %1324 = vmatpush.msra.mxu0 0.0
    %1325 = vmatpush.msra.mxu0 0.0
    %1326 = vmatpush.msra.mxu0 0.0
    %1327 = vmatpush.msra.mxu0 0.0
    %1328 = vmatpush.msra.mxu0 %v126
    %1329 = vmatpush.msra.mxu0 %v125
    %1330 = vmatpush.msra.mxu0 %v124
    %1331 = vmatpush.msra.mxu0 %v123
    %1332 = vmatmul.f32.gmra.mxu0 %v1314
    %v1333 = vpop.f32.mrf.mxu0
    %v1334 = vadd.f32 %v312, %v1333
    %1335 = vdwg.mxu0
    %v1336 = vadd.f32 %v1334, %v1271
    %v1337 = vxor.u32 %v1336, 2147483648
    %v1338 = vmul.f32 %v1337, 1.442695
    %v1339 = vpow.pop %v1338
    %v1340 = vadd.f32 %v1339, 1.0
    %v1341 = vrcp.pop %v1340
    %v1342 = vmul.f32 %v1340, %v1341
    %v1343 = vsub.f32 1.0, %v1342
    %v1344 = vmul.f32 %v1341, %v1343
    %v1345 = vadd.f32 %v1341, %v1344
    %vm1346 = vweird.f32 %v1340
    %vm1347 = vweird.f32 %v1341
    %vm1348 = vmor %vm1346, %vm1347
    %v1349 = vsel %vm1348, %v1341, %v1345
    %v1350 = vand.u32 2147483647, %v1340
    %vm1351 = vcmp.eq.f32.partialorder %v1350, 8.507059e+37
    %v1352 = vand.u32 %v1340, 2147483648
    %v1353 = vor.u32 1.1754944e-38, %v1352
    %v1354 = vsel %vm1351, %v1353, %v1349
    %v1355 = vmul.f32 1.0, %v1354
    %v1356 = vtanh.pop %v1336
    %v1357 = vmul.f32 %v1355, %v1123
    %1359 = vrot.lane.b32.xlu0 %v1356, 64
    %v1360 = vpop.permute.xlu0 %1359
    %v1362 = vmul.f32 %v1355, %v1360
    %1364 = vrot.lane.b32.xlu0 %v1362, 32
    %v1365 = vpop.permute.xlu0 %1364
    %v1367 = vadd.f32 %v1357, %v1365
    %v1368 = vtanh.pop %v1367
    %1370 = vrot.lane.b32.xlu0 %v1368, 64
    %v1371 = vpop.permute.xlu0 %1370
    %v1373 = vmul.f32 %v1355, %v1371
    %1375 = vrot.lane.b32.xlu0 %v1373, 32
    %v1376 = vpop.permute.xlu0 %1375
    %v1377 = vsel %vm225, %v1376, 0
    %1379 = vmatpush.msra.mxu0 0.0
    %1380 = vmatpush.msra.mxu0 0.0
    %1381 = vmatpush.msra.mxu0 0.0
    %1382 = vmatpush.msra.mxu0 0.0
    %1383 = vmatpush.msra.mxu0 0.0
    %1384 = vmatpush.msra.mxu0 0.0
    %1385 = vmatpush.msra.mxu0 0.0
    %1386 = vmatpush.msra.mxu0 0.0
    %1387 = vmatpush.msra.mxu0 0.0
    %1388 = vmatpush.msra.mxu0 0.0
    %1389 = vmatpush.msra.mxu0 0.0
    %1390 = vmatpush.msra.mxu0 0.0
    %1391 = vmatpush.msra.mxu0 %v141
    %1392 = vmatpush.msra.mxu0 %v137
    %1393 = vmatpush.msra.mxu0 %v133
    %1394 = vmatpush.msra.mxu0 %v129
    %1395 = vmatmul.f32.gmra.mxu0 %v1377
    %v1396 = vpop.f32.mrf.mxu0
    %v1397 = vadd.f32 %v378, %v1396
    %1398 = vdwg.mxu0
    %1399 = vmatpush.msra.mxu0 0.0
    %1400 = vmatpush.msra.mxu0 0.0
    %1401 = vmatpush.msra.mxu0 0.0
    %1402 = vmatpush.msra.mxu0 0.0
    %1403 = vmatpush.msra.mxu0 0.0
    %1404 = vmatpush.msra.mxu0 0.0
    %1405 = vmatpush.msra.mxu0 0.0
    %1406 = vmatpush.msra.mxu0 0.0
    %1407 = vmatpush.msra.mxu0 0.0
    %1408 = vmatpush.msra.mxu0 0.0
    %1409 = vmatpush.msra.mxu0 0.0
    %1410 = vmatpush.msra.mxu0 0.0
    %1411 = vmatpush.msra.mxu0 %v142
    %1412 = vmatpush.msra.mxu0 %v138
    %1413 = vmatpush.msra.mxu0 %v134
    %1414 = vmatpush.msra.mxu0 %v130
    %1415 = vmatmul.f32.gmra.mxu0 %v1377
    %v1416 = vpop.f32.mrf.mxu0
    %v1417 = vadd.f32 %v379, %v1416
    %1418 = vdwg.mxu0
    %1419 = vmatpush.msra.mxu0 0.0
    %1420 = vmatpush.msra.mxu0 0.0
    %1421 = vmatpush.msra.mxu0 0.0
    %1422 = vmatpush.msra.mxu0 0.0
    %1423 = vmatpush.msra.mxu0 0.0
    %1424 = vmatpush.msra.mxu0 0.0
    %1425 = vmatpush.msra.mxu0 0.0
    %1426 = vmatpush.msra.mxu0 0.0
    %1427 = vmatpush.msra.mxu0 0.0
    %1428 = vmatpush.msra.mxu0 0.0
    %1429 = vmatpush.msra.mxu0 0.0
    %1430 = vmatpush.msra.mxu0 0.0
    %1431 = vmatpush.msra.mxu0 %v143
    %1432 = vmatpush.msra.mxu0 %v139
    %1433 = vmatpush.msra.mxu0 %v135
    %1434 = vmatpush.msra.mxu0 %v131
    %1435 = vmatmul.f32.gmra.mxu0 %v1377
    %v1436 = vpop.f32.mrf.mxu0
    %v1437 = vadd.f32 %v380, %v1436
    %1438 = vdwg.mxu0
    %1439 = vmatpush.msra.mxu0 0.0
    %1440 = vmatpush.msra.mxu0 0.0
    %1441 = vmatpush.msra.mxu0 0.0
    %1442 = vmatpush.msra.mxu0 0.0
    %1443 = vmatpush.msra.mxu0 0.0
    %1444 = vmatpush.msra.mxu0 0.0
    %1445 = vmatpush.msra.mxu0 0.0
    %1446 = vmatpush.msra.mxu0 0.0
    %1447 = vmatpush.msra.mxu0 0.0
    %1448 = vmatpush.msra.mxu0 0.0
    %1449 = vmatpush.msra.mxu0 0.0
    %1450 = vmatpush.msra.mxu0 0.0
    %1451 = vmatpush.msra.mxu0 %v144
    %1452 = vmatpush.msra.mxu0 %v140
    %1453 = vmatpush.msra.mxu0 %v136
    %1454 = vmatpush.msra.mxu0 %v132
    %1455 = vmatmul.f32.gmra.mxu0 %v1377
    %v1456 = vpop.f32.mrf.mxu0
    %v1457 = vadd.f32 %v381, %v1456
    %1458 = vdwg.mxu0
    %v1459 = vtanh.pop %v1397
    %v1460 = vtanh.pop %v1417
    %v1461 = vtanh.pop %v1437
    %v1462 = vtanh.pop %v1457
    %v1463 = vmul.f32 %v1459, %v476
    %v1464 = vmul.f32 %v1460, %v477
    %v1465 = vmul.f32 %v1461, %v478
    %v1466 = vmul.f32 %v1462, %v479
    %v1467 = vadd.f32 %v1463, %v1464
    %v1468 = vadd.f32 %v1467, %v1465
    %v1469 = vadd.f32 %v1468, %v1466
    %1470 = vadd.xlane.f32.xlu0 %v1469
    %v1471 = vpop.xlane.xlu0 %1470
    %v1472 = vadd.f32 %v1471, %v494
    %1473 = vmatpush.msra.mxu0 0.0
    %1474 = vmatpush.msra.mxu0 0.0
    %1475 = vmatpush.msra.mxu0 0.0
    %1476 = vmatpush.msra.mxu0 0.0
    %1477 = vmatpush.msra.mxu0 0.0
    %1478 = vmatpush.msra.mxu0 0.0
    %1479 = vmatpush.msra.mxu0 0.0
    %1480 = vmatpush.msra.mxu0 0.0
    %1481 = vmatpush.msra.mxu0 0.0
    %1482 = vmatpush.msra.mxu0 0.0
    %1483 = vmatpush.msra.mxu0 0.0
    %1484 = vmatpush.msra.mxu0 0.0
    %1485 = vmatpush.msra.mxu0 %v119
    %1486 = vmatpush.msra.mxu0 %v117
    %1487 = vmatpush.msra.mxu0 %v115
    %1488 = vmatpush.msra.mxu0 %v113
    %1489 = vmatmul.f32.gmra.mxu0 %v1314
    %v1490 = vpop.f32.mrf.mxu0
    %v1491 = vadd.f32 0.0, %v1490
    %1492 = vmatmul.f32.gmra.mxu0 %v1377
    %v1493 = vpop.f32.mrf.mxu0
    %1494 = vdwg.mxu0
    %1495 = vmatpush.msra.mxu0 0.0
    %1496 = vmatpush.msra.mxu0 0.0
    %1497 = vmatpush.msra.mxu0 0.0
    %1498 = vmatpush.msra.mxu0 0.0
    %1499 = vmatpush.msra.mxu0 0.0
    %1500 = vmatpush.msra.mxu0 0.0
    %1501 = vmatpush.msra.mxu0 0.0
    %1502 = vmatpush.msra.mxu0 0.0
    %1503 = vmatpush.msra.mxu0 0.0
    %1504 = vmatpush.msra.mxu0 0.0
    %1505 = vmatpush.msra.mxu0 0.0
    %1506 = vmatpush.msra.mxu0 0.0
    %1507 = vmatpush.msra.mxu0 %v120
    %1508 = vmatpush.msra.mxu0 %v118
    %1509 = vmatpush.msra.mxu0 %v116
    %1510 = vmatpush.msra.mxu0 %v114
    %1511 = vmatmul.f32.gmra.mxu0 %v1314
    %v1512 = vpop.f32.mrf.mxu0
    %1513 = vmatmul.f32.gmra.mxu0 %v1377
    %v1514 = vpop.f32.mrf.mxu0
    %v1515 = vadd.f32 0.0, %v1514
    %1516 = vdwg.mxu0
    %v1517 = vadd.f32 %v217, %v1491
    %v1518 = vxor.u32 %v1517, 2147483648
    %v1519 = vmul.f32 %v1518, 1.442695
    %v1520 = vpow.pop %v1519
    %v1521 = vadd.f32 %v1520, 1.0
    %v1522 = vrcp.pop %v1521
    %v1523 = vmul.f32 %v1521, %v1522
    %v1524 = vsub.f32 1.0, %v1523
    %v1525 = vmul.f32 %v1522, %v1524
    %v1526 = vadd.f32 %v1522, %v1525
    %vm1527 = vweird.f32 %v1521
    %vm1528 = vweird.f32 %v1522
    %vm1529 = vmor %vm1527, %vm1528
    %v1530 = vsel %vm1529, %v1522, %v1526
    %v1531 = vand.u32 2147483647, %v1521
    %vm1532 = vcmp.eq.f32.partialorder %v1531, 8.507059e+37
    %v1533 = vand.u32 %v1521, 2147483648
    %v1534 = vor.u32 1.1754944e-38, %v1533
    %v1535 = vsel %vm1532, %v1534, %v1530
    %v1536 = vmul.f32 1.0, %v1535
    %v1537 = vtanh.pop %v1517
    %v1538 = vmul.f32 %v1536, %v1304
    %1540 = vrot.lane.b32.xlu0 %v1537, 64
    %v1541 = vpop.permute.xlu0 %1540
    %v1543 = vmul.f32 %v1536, %v1541
    %1545 = vrot.lane.b32.xlu0 %v1543, 32
    %v1546 = vpop.permute.xlu0 %1545
    %v1548 = vadd.f32 %v1538, %v1546
    %v1549 = vtanh.pop %v1548
    %1551 = vrot.lane.b32.xlu0 %v1549, 64
    %v1552 = vpop.permute.xlu0 %1551
    %v1554 = vmul.f32 %v1536, %v1552
    %1556 = vrot.lane.b32.xlu0 %v1554, 32
    %v1557 = vpop.permute.xlu0 %1556
    %v1558 = vsel %vm225, %v1557, 0
    %1560 = vmatpush.msra.mxu0 0.0
    %1561 = vmatpush.msra.mxu0 0.0
    %1562 = vmatpush.msra.mxu0 0.0
    %1563 = vmatpush.msra.mxu0 0.0
    %1564 = vmatpush.msra.mxu0 0.0
    %1565 = vmatpush.msra.mxu0 0.0
    %1566 = vmatpush.msra.mxu0 0.0
    %1567 = vmatpush.msra.mxu0 0.0
    %1568 = vmatpush.msra.mxu0 0.0
    %1569 = vmatpush.msra.mxu0 0.0
    %1570 = vmatpush.msra.mxu0 0.0
    %1571 = vmatpush.msra.mxu0 0.0
    %1572 = vmatpush.msra.mxu0 %v126
    %1573 = vmatpush.msra.mxu0 %v125
    %1574 = vmatpush.msra.mxu0 %v124
    %1575 = vmatpush.msra.mxu0 %v123
    %1576 = vmatmul.f32.gmra.mxu0 %v1558
    %v1577 = vpop.f32.mrf.mxu0
    %v1578 = vadd.f32 %v312, %v1577
    %1579 = vdwg.mxu0
    %v1580 = vadd.f32 %v1578, %v1515
    %v1581 = vxor.u32 %v1580, 2147483648
    %v1582 = vmul.f32 %v1581, 1.442695
    %v1583 = vpow.pop %v1582
    %v1584 = vadd.f32 %v1583, 1.0
    %v1585 = vrcp.pop %v1584
    %v1586 = vmul.f32 %v1584, %v1585
    %v1587 = vsub.f32 1.0, %v1586
    %v1588 = vmul.f32 %v1585, %v1587
    %v1589 = vadd.f32 %v1585, %v1588
    %vm1590 = vweird.f32 %v1584
    %vm1591 = vweird.f32 %v1585
    %vm1592 = vmor %vm1590, %vm1591
    %v1593 = vsel %vm1592, %v1585, %v1589
    %v1594 = vand.u32 2147483647, %v1584
    %vm1595 = vcmp.eq.f32.partialorder %v1594, 8.507059e+37
    %v1596 = vand.u32 %v1584, 2147483648
    %v1597 = vor.u32 1.1754944e-38, %v1596
    %v1598 = vsel %vm1595, %v1597, %v1593
    %v1599 = vmul.f32 1.0, %v1598
    %v1600 = vtanh.pop %v1580
    %v1601 = vmul.f32 %v1599, %v1367
    %1603 = vrot.lane.b32.xlu0 %v1600, 64
    %v1604 = vpop.permute.xlu0 %1603
    %v1606 = vmul.f32 %v1599, %v1604
    %1608 = vrot.lane.b32.xlu0 %v1606, 32
    %v1609 = vpop.permute.xlu0 %1608
    %v1611 = vadd.f32 %v1601, %v1609
    %v1612 = vtanh.pop %v1611
    %1614 = vrot.lane.b32.xlu0 %v1612, 64
    %v1615 = vpop.permute.xlu0 %1614
    %v1617 = vmul.f32 %v1599, %v1615
    %1619 = vrot.lane.b32.xlu0 %v1617, 32
    %v1620 = vpop.permute.xlu0 %1619
    %v1621 = vsel %vm225, %v1620, 0
    %1623 = vmatpush.msra.mxu0 0.0
    %1624 = vmatpush.msra.mxu0 0.0
    %1625 = vmatpush.msra.mxu0 0.0
    %1626 = vmatpush.msra.mxu0 0.0
    %1627 = vmatpush.msra.mxu0 0.0
    %1628 = vmatpush.msra.mxu0 0.0
    %1629 = vmatpush.msra.mxu0 0.0
    %1630 = vmatpush.msra.mxu0 0.0
    %1631 = vmatpush.msra.mxu0 0.0
    %1632 = vmatpush.msra.mxu0 0.0
    %1633 = vmatpush.msra.mxu0 0.0
    %1634 = vmatpush.msra.mxu0 0.0
    %1635 = vmatpush.msra.mxu0 %v141
    %1636 = vmatpush.msra.mxu0 %v137
    %1637 = vmatpush.msra.mxu0 %v133
    %1638 = vmatpush.msra.mxu0 %v129
    %1639 = vmatmul.f32.gmra.mxu0 %v1621
    %v1640 = vpop.f32.mrf.mxu0
    %v1641 = vadd.f32 %v378, %v1640
    %1642 = vdwg.mxu0
    %1643 = vmatpush.msra.mxu0 0.0
    %1644 = vmatpush.msra.mxu0 0.0
    %1645 = vmatpush.msra.mxu0 0.0
    %1646 = vmatpush.msra.mxu0 0.0
    %1647 = vmatpush.msra.mxu0 0.0
    %1648 = vmatpush.msra.mxu0 0.0
    %1649 = vmatpush.msra.mxu0 0.0
    %1650 = vmatpush.msra.mxu0 0.0
    %1651 = vmatpush.msra.mxu0 0.0
    %1652 = vmatpush.msra.mxu0 0.0
    %1653 = vmatpush.msra.mxu0 0.0
    %1654 = vmatpush.msra.mxu0 0.0
    %1655 = vmatpush.msra.mxu0 %v142
    %1656 = vmatpush.msra.mxu0 %v138
    %1657 = vmatpush.msra.mxu0 %v134
    %1658 = vmatpush.msra.mxu0 %v130
    %1659 = vmatmul.f32.gmra.mxu0 %v1621
    %v1660 = vpop.f32.mrf.mxu0
    %v1661 = vadd.f32 %v379, %v1660
    %1662 = vdwg.mxu0
    %1663 = vmatpush.msra.mxu0 0.0
    %1664 = vmatpush.msra.mxu0 0.0
    %1665 = vmatpush.msra.mxu0 0.0
    %1666 = vmatpush.msra.mxu0 0.0
    %1667 = vmatpush.msra.mxu0 0.0
    %1668 = vmatpush.msra.mxu0 0.0
    %1669 = vmatpush.msra.mxu0 0.0
    %1670 = vmatpush.msra.mxu0 0.0
    %1671 = vmatpush.msra.mxu0 0.0
    %1672 = vmatpush.msra.mxu0 0.0
    %1673 = vmatpush.msra.mxu0 0.0
    %1674 = vmatpush.msra.mxu0 0.0
    %1675 = vmatpush.msra.mxu0 %v143
    %1676 = vmatpush.msra.mxu0 %v139
    %1677 = vmatpush.msra.mxu0 %v135
    %1678 = vmatpush.msra.mxu0 %v131
    %1679 = vmatmul.f32.gmra.mxu0 %v1621
    %v1680 = vpop.f32.mrf.mxu0
    %v1681 = vadd.f32 %v380, %v1680
    %1682 = vdwg.mxu0
    %1683 = vmatpush.msra.mxu0 0.0
    %1684 = vmatpush.msra.mxu0 0.0
    %1685 = vmatpush.msra.mxu0 0.0
    %1686 = vmatpush.msra.mxu0 0.0
    %1687 = vmatpush.msra.mxu0 0.0
    %1688 = vmatpush.msra.mxu0 0.0
    %1689 = vmatpush.msra.mxu0 0.0
    %1690 = vmatpush.msra.mxu0 0.0
    %1691 = vmatpush.msra.mxu0 0.0
    %1692 = vmatpush.msra.mxu0 0.0
    %1693 = vmatpush.msra.mxu0 0.0
    %1694 = vmatpush.msra.mxu0 0.0
    %1695 = vmatpush.msra.mxu0 %v144
    %1696 = vmatpush.msra.mxu0 %v140
    %1697 = vmatpush.msra.mxu0 %v136
    %1698 = vmatpush.msra.mxu0 %v132
    %1699 = vmatmul.f32.gmra.mxu0 %v1621
    %v1700 = vpop.f32.mrf.mxu0
    %v1701 = vadd.f32 %v381, %v1700
    %1702 = vdwg.mxu0
    %v1703 = vtanh.pop %v1641
    %v1704 = vtanh.pop %v1661
    %v1705 = vtanh.pop %v1681
    %v1706 = vtanh.pop %v1701
    %v1707 = vmul.f32 %v1703, %v476
    %v1708 = vmul.f32 %v1704, %v477
    %v1709 = vmul.f32 %v1705, %v478
    %v1710 = vmul.f32 %v1706, %v479
    %v1711 = vadd.f32 %v1707, %v1708
    %v1712 = vadd.f32 %v1711, %v1709
    %v1713 = vadd.f32 %v1712, %v1710
    %1714 = vadd.xlane.f32.xlu0 %v1713
    %v1715 = vpop.xlane.xlu0 %1714
    %v1716 = vadd.f32 %v1715, %v494
    %1717 = vmatpush.msra.mxu0 0.0
    %1718 = vmatpush.msra.mxu0 0.0
    %1719 = vmatpush.msra.mxu0 0.0
    %1720 = vmatpush.msra.mxu0 0.0
    %1721 = vmatpush.msra.mxu0 0.0
    %1722 = vmatpush.msra.mxu0 0.0
    %1723 = vmatpush.msra.mxu0 0.0
    %1724 = vmatpush.msra.mxu0 0.0
    %1725 = vmatpush.msra.mxu0 0.0
    %1726 = vmatpush.msra.mxu0 0.0
    %1727 = vmatpush.msra.mxu0 0.0
    %1728 = vmatpush.msra.mxu0 0.0
    %1729 = vmatpush.msra.mxu0 %v119
    %1730 = vmatpush.msra.mxu0 %v117
    %1731 = vmatpush.msra.mxu0 %v115
    %1732 = vmatpush.msra.mxu0 %v113
    %1733 = vmatmul.f32.gmra.mxu0 %v1558
    %v1734 = vpop.f32.mrf.mxu0
    %v1735 = vadd.f32 0.0, %v1734
    %1736 = vmatmul.f32.gmra.mxu0 %v1621
    %v1737 = vpop.f32.mrf.mxu0
    %1738 = vdwg.mxu0
    %1739 = vmatpush.msra.mxu0 0.0
    %1740 = vmatpush.msra.mxu0 0.0
    %1741 = vmatpush.msra.mxu0 0.0
    %1742 = vmatpush.msra.mxu0 0.0
    %1743 = vmatpush.msra.mxu0 0.0
    %1744 = vmatpush.msra.mxu0 0.0
    %1745 = vmatpush.msra.mxu0 0.0
    %1746 = vmatpush.msra.mxu0 0.0
    %1747 = vmatpush.msra.mxu0 0.0
    %1748 = vmatpush.msra.mxu0 0.0
    %1749 = vmatpush.msra.mxu0 0.0
    %1750 = vmatpush.msra.mxu0 0.0
    %1751 = vmatpush.msra.mxu0 %v120
    %1752 = vmatpush.msra.mxu0 %v118
    %1753 = vmatpush.msra.mxu0 %v116
    %1754 = vmatpush.msra.mxu0 %v114
    %1755 = vmatmul.f32.gmra.mxu0 %v1558
    %v1756 = vpop.f32.mrf.mxu0
    %1757 = vmatmul.f32.gmra.mxu0 %v1621
    %v1758 = vpop.f32.mrf.mxu0
    %v1759 = vadd.f32 0.0, %v1758
    %1760 = vdwg.mxu0
    %v1761 = vadd.f32 %v220, %v1735
    %v1762 = vxor.u32 %v1761, 2147483648
    %v1763 = vmul.f32 %v1762, 1.442695
    %v1764 = vpow.pop %v1763
    %v1765 = vadd.f32 %v1764, 1.0
    %v1766 = vrcp.pop %v1765
    %v1767 = vmul.f32 %v1765, %v1766
    %v1768 = vsub.f32 1.0, %v1767
    %v1769 = vmul.f32 %v1766, %v1768
    %v1770 = vadd.f32 %v1766, %v1769
    %vm1771 = vweird.f32 %v1765
    %vm1772 = vweird.f32 %v1766
    %vm1773 = vmor %vm1771, %vm1772
    %v1774 = vsel %vm1773, %v1766, %v1770
    %v1775 = vand.u32 2147483647, %v1765
    %vm1776 = vcmp.eq.f32.partialorder %v1775, 8.507059e+37
    %v1777 = vand.u32 %v1765, 2147483648
    %v1778 = vor.u32 1.1754944e-38, %v1777
    %v1779 = vsel %vm1776, %v1778, %v1774
    %v1780 = vmul.f32 1.0, %v1779
    %v1781 = vtanh.pop %v1761
    %v1782 = vmul.f32 %v1780, %v1548
    %1784 = vrot.lane.b32.xlu0 %v1781, 64
    %v1785 = vpop.permute.xlu0 %1784
    %v1787 = vmul.f32 %v1780, %v1785
    %1789 = vrot.lane.b32.xlu0 %v1787, 32
    %v1790 = vpop.permute.xlu0 %1789
    %v1792 = vadd.f32 %v1782, %v1790
    %v1793 = vtanh.pop %v1792
    %1795 = vrot.lane.b32.xlu0 %v1793, 64
    %v1796 = vpop.permute.xlu0 %1795
    %v1798 = vmul.f32 %v1780, %v1796
    %1800 = vrot.lane.b32.xlu0 %v1798, 32
    %v1801 = vpop.permute.xlu0 %1800
    %v1802 = vsel %vm225, %v1801, 0
    %1804 = vmatpush.msra.mxu0 0.0
    %1805 = vmatpush.msra.mxu0 0.0
    %1806 = vmatpush.msra.mxu0 0.0
    %1807 = vmatpush.msra.mxu0 0.0
    %1808 = vmatpush.msra.mxu0 0.0
    %1809 = vmatpush.msra.mxu0 0.0
    %1810 = vmatpush.msra.mxu0 0.0
    %1811 = vmatpush.msra.mxu0 0.0
    %1812 = vmatpush.msra.mxu0 0.0
    %1813 = vmatpush.msra.mxu0 0.0
    %1814 = vmatpush.msra.mxu0 0.0
    %1815 = vmatpush.msra.mxu0 0.0
    %1816 = vmatpush.msra.mxu0 %v126
    %1817 = vmatpush.msra.mxu0 %v125
    %1818 = vmatpush.msra.mxu0 %v124
    %1819 = vmatpush.msra.mxu0 %v123
    %1820 = vmatmul.f32.gmra.mxu0 %v1802
    %v1821 = vpop.f32.mrf.mxu0
    %v1822 = vadd.f32 %v312, %v1821
    %1823 = vdwg.mxu0
    %v1824 = vadd.f32 %v1822, %v1759
    %v1825 = vxor.u32 %v1824, 2147483648
    %v1826 = vmul.f32 %v1825, 1.442695
    %v1827 = vpow.pop %v1826
    %v1828 = vadd.f32 %v1827, 1.0
    %v1829 = vrcp.pop %v1828
    %v1830 = vmul.f32 %v1828, %v1829
    %v1831 = vsub.f32 1.0, %v1830
    %v1832 = vmul.f32 %v1829, %v1831
    %v1833 = vadd.f32 %v1829, %v1832
    %vm1834 = vweird.f32 %v1828
    %vm1835 = vweird.f32 %v1829
    %vm1836 = vmor %vm1834, %vm1835
    %v1837 = vsel %vm1836, %v1829, %v1833
    %v1838 = vand.u32 2147483647, %v1828
    %vm1839 = vcmp.eq.f32.partialorder %v1838, 8.507059e+37
    %v1840 = vand.u32 %v1828, 2147483648
    %v1841 = vor.u32 1.1754944e-38, %v1840
    %v1842 = vsel %vm1839, %v1841, %v1837
    %v1843 = vmul.f32 1.0, %v1842
    %v1844 = vtanh.pop %v1824
    %v1845 = vmul.f32 %v1843, %v1611
    %1847 = vrot.lane.b32.xlu0 %v1844, 64
    %v1848 = vpop.permute.xlu0 %1847
    %v1850 = vmul.f32 %v1843, %v1848
    %1852 = vrot.lane.b32.xlu0 %v1850, 32
    %v1853 = vpop.permute.xlu0 %1852
    %v1855 = vadd.f32 %v1845, %v1853
    %v1856 = vtanh.pop %v1855
    %1858 = vrot.lane.b32.xlu0 %v1856, 64
    %v1859 = vpop.permute.xlu0 %1858
    %v1861 = vmul.f32 %v1843, %v1859
    %1863 = vrot.lane.b32.xlu0 %v1861, 32
    %v1864 = vpop.permute.xlu0 %1863
    %v1865 = vsel %vm225, %v1864, 0
    %1867 = vmatpush.msra.mxu0 0.0
    %1868 = vmatpush.msra.mxu0 0.0
    %1869 = vmatpush.msra.mxu0 0.0
    %1870 = vmatpush.msra.mxu0 0.0
    %1871 = vmatpush.msra.mxu0 0.0
    %1872 = vmatpush.msra.mxu0 0.0
    %1873 = vmatpush.msra.mxu0 0.0
    %1874 = vmatpush.msra.mxu0 0.0
    %1875 = vmatpush.msra.mxu0 0.0
    %1876 = vmatpush.msra.mxu0 0.0
    %1877 = vmatpush.msra.mxu0 0.0
    %1878 = vmatpush.msra.mxu0 0.0
    %1879 = vmatpush.msra.mxu0 %v141
    %1880 = vmatpush.msra.mxu0 %v137
    %1881 = vmatpush.msra.mxu0 %v133
    %1882 = vmatpush.msra.mxu0 %v129
    %1883 = vmatmul.f32.gmra.mxu0 %v1865
    %v1884 = vpop.f32.mrf.mxu0
    %v1885 = vadd.f32 %v378, %v1884
    %1886 = vdwg.mxu0
    %1887 = vmatpush.msra.mxu0 0.0
    %1888 = vmatpush.msra.mxu0 0.0
    %1889 = vmatpush.msra.mxu0 0.0
    %1890 = vmatpush.msra.mxu0 0.0
    %1891 = vmatpush.msra.mxu0 0.0
    %1892 = vmatpush.msra.mxu0 0.0
    %1893 = vmatpush.msra.mxu0 0.0
    %1894 = vmatpush.msra.mxu0 0.0
    %1895 = vmatpush.msra.mxu0 0.0
    %1896 = vmatpush.msra.mxu0 0.0
    %1897 = vmatpush.msra.mxu0 0.0
    %1898 = vmatpush.msra.mxu0 0.0
    %1899 = vmatpush.msra.mxu0 %v142
    %1900 = vmatpush.msra.mxu0 %v138
    %1901 = vmatpush.msra.mxu0 %v134
    %1902 = vmatpush.msra.mxu0 %v130
    %1903 = vmatmul.f32.gmra.mxu0 %v1865
    %v1904 = vpop.f32.mrf.mxu0
    %v1905 = vadd.f32 %v379, %v1904
    %1906 = vdwg.mxu0
    %1907 = vmatpush.msra.mxu0 0.0
    %1908 = vmatpush.msra.mxu0 0.0
    %1909 = vmatpush.msra.mxu0 0.0
    %1910 = vmatpush.msra.mxu0 0.0
    %1911 = vmatpush.msra.mxu0 0.0
    %1912 = vmatpush.msra.mxu0 0.0
    %1913 = vmatpush.msra.mxu0 0.0
    %1914 = vmatpush.msra.mxu0 0.0
    %1915 = vmatpush.msra.mxu0 0.0
    %1916 = vmatpush.msra.mxu0 0.0
    %1917 = vmatpush.msra.mxu0 0.0
    %1918 = vmatpush.msra.mxu0 0.0
    %1919 = vmatpush.msra.mxu0 %v143
    %1920 = vmatpush.msra.mxu0 %v139
    %1921 = vmatpush.msra.mxu0 %v135
    %1922 = vmatpush.msra.mxu0 %v131
    %1923 = vmatmul.f32.gmra.mxu0 %v1865
    %v1924 = vpop.f32.mrf.mxu0
    %v1925 = vadd.f32 %v380, %v1924
    %1926 = vdwg.mxu0
    %1927 = vmatpush.msra.mxu0 0.0
    %1928 = vmatpush.msra.mxu0 0.0
    %1929 = vmatpush.msra.mxu0 0.0
    %1930 = vmatpush.msra.mxu0 0.0
    %1931 = vmatpush.msra.mxu0 0.0
    %1932 = vmatpush.msra.mxu0 0.0
    %1933 = vmatpush.msra.mxu0 0.0
    %1934 = vmatpush.msra.mxu0 0.0
    %1935 = vmatpush.msra.mxu0 0.0
    %1936 = vmatpush.msra.mxu0 0.0
    %1937 = vmatpush.msra.mxu0 0.0
    %1938 = vmatpush.msra.mxu0 0.0
    %1939 = vmatpush.msra.mxu0 %v144
    %1940 = vmatpush.msra.mxu0 %v140
    %1941 = vmatpush.msra.mxu0 %v136
    %1942 = vmatpush.msra.mxu0 %v132
    %1943 = vmatmul.f32.gmra.mxu0 %v1865
    %v1944 = vpop.f32.mrf.mxu0
    %v1945 = vadd.f32 %v381, %v1944
    %1946 = vdwg.mxu0
    %v1947 = vtanh.pop %v1885
    %v1948 = vtanh.pop %v1905
    %v1949 = vtanh.pop %v1925
    %v1950 = vtanh.pop %v1945
    %v1951 = vmul.f32 %v1947, %v476
    %v1952 = vmul.f32 %v1948, %v477
    %v1953 = vmul.f32 %v1949, %v478
    %v1954 = vmul.f32 %v1950, %v479
    %v1955 = vadd.f32 %v1951, %v1952
    %v1956 = vadd.f32 %v1955, %v1953
    %v1957 = vadd.f32 %v1956, %v1954
    %1958 = vadd.xlane.f32.xlu0 %v1957
    %v1959 = vpop.xlane.xlu0 %1958
    %v1960 = vadd.f32 %v1959, %v494
    %1961 = vmatpush.msra.mxu0 0.0
    %1962 = vmatpush.msra.mxu0 0.0
    %1963 = vmatpush.msra.mxu0 0.0
    %1964 = vmatpush.msra.mxu0 0.0
    %1965 = vmatpush.msra.mxu0 0.0
    %1966 = vmatpush.msra.mxu0 0.0
    %1967 = vmatpush.msra.mxu0 0.0
    %1968 = vmatpush.msra.mxu0 0.0
    %1969 = vmatpush.msra.mxu0 0.0
    %1970 = vmatpush.msra.mxu0 0.0
    %1971 = vmatpush.msra.mxu0 0.0
    %1972 = vmatpush.msra.mxu0 0.0
    %1973 = vmatpush.msra.mxu0 %v119
    %1974 = vmatpush.msra.mxu0 %v117
    %1975 = vmatpush.msra.mxu0 %v115
    %1976 = vmatpush.msra.mxu0 %v113
    %1977 = vmatmul.f32.gmra.mxu0 %v1802
    %v1978 = vpop.f32.mrf.mxu0
    %v1979 = vadd.f32 0.0, %v1978
    %1980 = vmatmul.f32.gmra.mxu0 %v1865
    %v1981 = vpop.f32.mrf.mxu0
    %1982 = vdwg.mxu0
    %1983 = vmatpush.msra.mxu0 0.0
    %1984 = vmatpush.msra.mxu0 0.0
    %1985 = vmatpush.msra.mxu0 0.0
    %1986 = vmatpush.msra.mxu0 0.0
    %1987 = vmatpush.msra.mxu0 0.0
    %1988 = vmatpush.msra.mxu0 0.0
    %1989 = vmatpush.msra.mxu0 0.0
    %1990 = vmatpush.msra.mxu0 0.0
    %1991 = vmatpush.msra.mxu0 0.0
    %1992 = vmatpush.msra.mxu0 0.0
    %1993 = vmatpush.msra.mxu0 0.0
    %1994 = vmatpush.msra.mxu0 0.0
    %1995 = vmatpush.msra.mxu0 %v120
    %1996 = vmatpush.msra.mxu0 %v118
    %1997 = vmatpush.msra.mxu0 %v116
    %1998 = vmatpush.msra.mxu0 %v114
    %1999 = vmatmul.f32.gmra.mxu0 %v1802
    %v2000 = vpop.f32.mrf.mxu0
    %2001 = vmatmul.f32.gmra.mxu0 %v1865
    %v2002 = vpop.f32.mrf.mxu0
    %v2003 = vadd.f32 0.0, %v2002
    %2004 = vdwg.mxu0
    %v2005 = vadd.f32 %v223, %v1979
    %v2006 = vxor.u32 %v2005, 2147483648
    %v2007 = vmul.f32 %v2006, 1.442695
    %v2008 = vpow.pop %v2007
    %v2009 = vadd.f32 %v2008, 1.0
    %v2010 = vrcp.pop %v2009
    %v2011 = vmul.f32 %v2009, %v2010
    %v2012 = vsub.f32 1.0, %v2011
    %v2013 = vmul.f32 %v2010, %v2012
    %v2014 = vadd.f32 %v2010, %v2013
    %vm2015 = vweird.f32 %v2009
    %vm2016 = vweird.f32 %v2010
    %vm2017 = vmor %vm2015, %vm2016
    %v2018 = vsel %vm2017, %v2010, %v2014
    %v2019 = vand.u32 2147483647, %v2009
    %vm2020 = vcmp.eq.f32.partialorder %v2019, 8.507059e+37
    %v2021 = vand.u32 %v2009, 2147483648
    %v2022 = vor.u32 1.1754944e-38, %v2021
    %v2023 = vsel %vm2020, %v2022, %v2018
    %v2024 = vmul.f32 1.0, %v2023
    %v2025 = vtanh.pop %v2005
    %v2026 = vmul.f32 %v2024, %v1792
    %2028 = vrot.lane.b32.xlu0 %v2025, 64
    %v2029 = vpop.permute.xlu0 %2028
    %v2031 = vmul.f32 %v2024, %v2029
    %2033 = vrot.lane.b32.xlu0 %v2031, 32
    %v2034 = vpop.permute.xlu0 %2033
    %v2036 = vadd.f32 %v2026, %v2034
    %v2037 = vtanh.pop %v2036
    %2039 = vrot.lane.b32.xlu0 %v2037, 64
    %v2040 = vpop.permute.xlu0 %2039
    %v2042 = vmul.f32 %v2024, %v2040
    %2044 = vrot.lane.b32.xlu0 %v2042, 32
    %v2045 = vpop.permute.xlu0 %2044
    %v2046 = vsel %vm225, %v2045, 0
    %2048 = vmatpush.msra.mxu0 0.0
    %2049 = vmatpush.msra.mxu0 0.0
    %2050 = vmatpush.msra.mxu0 0.0
    %2051 = vmatpush.msra.mxu0 0.0
    %2052 = vmatpush.msra.mxu0 0.0
    %2053 = vmatpush.msra.mxu0 0.0
    %2054 = vmatpush.msra.mxu0 0.0
    %2055 = vmatpush.msra.mxu0 0.0
    %2056 = vmatpush.msra.mxu0 0.0
    %2057 = vmatpush.msra.mxu0 0.0
    %2058 = vmatpush.msra.mxu0 0.0
    %2059 = vmatpush.msra.mxu0 0.0
    %2060 = vmatpush.msra.mxu0 %v126
    %2061 = vmatpush.msra.mxu0 %v125
    %2062 = vmatpush.msra.mxu0 %v124
    %2063 = vmatpush.msra.mxu0 %v123
    %2064 = vmatmul.f32.gmra.mxu0 %v2046
    %v2065 = vpop.f32.mrf.mxu0
    %v2066 = vadd.f32 %v312, %v2065
    %2067 = vdwg.mxu0
    %v2068 = vadd.f32 %v2066, %v2003
    %v2069 = vxor.u32 %v2068, 2147483648
    %v2070 = vmul.f32 %v2069, 1.442695
    %v2071 = vpow.pop %v2070
    %v2072 = vadd.f32 %v2071, 1.0
    %v2073 = vrcp.pop %v2072
    %v2074 = vmul.f32 %v2072, %v2073
    %v2075 = vsub.f32 1.0, %v2074
    %v2076 = vmul.f32 %v2073, %v2075
    %v2077 = vadd.f32 %v2073, %v2076
    %vm2078 = vweird.f32 %v2072
    %vm2079 = vweird.f32 %v2073
    %vm2080 = vmor %vm2078, %vm2079
    %v2081 = vsel %vm2080, %v2073, %v2077
    %v2082 = vand.u32 2147483647, %v2072
    %vm2083 = vcmp.eq.f32.partialorder %v2082, 8.507059e+37
    %v2084 = vand.u32 %v2072, 2147483648
    %v2085 = vor.u32 1.1754944e-38, %v2084
    %v2086 = vsel %vm2083, %v2085, %v2081
    %v2087 = vmul.f32 1.0, %v2086
    %v2088 = vtanh.pop %v2068
    %v2089 = vmul.f32 %v2087, %v1855
    %2091 = vrot.lane.b32.xlu0 %v2088, 64
    %v2092 = vpop.permute.xlu0 %2091
    %v2094 = vmul.f32 %v2087, %v2092
    %2096 = vrot.lane.b32.xlu0 %v2094, 32
    %v2097 = vpop.permute.xlu0 %2096
    %v2099 = vadd.f32 %v2089, %v2097
    %v2100 = vtanh.pop %v2099
    %2102 = vrot.lane.b32.xlu0 %v2100, 64
    %v2103 = vpop.permute.xlu0 %2102
    %v2105 = vmul.f32 %v2087, %v2103
    %2107 = vrot.lane.b32.xlu0 %v2105, 32
    %v2108 = vpop.permute.xlu0 %2107
    %v2109 = vsel %vm225, %v2108, 0
    %2111 = vmatpush.msra.mxu0 0.0
    %2112 = vmatpush.msra.mxu0 0.0
    %2113 = vmatpush.msra.mxu0 0.0
    %2114 = vmatpush.msra.mxu0 0.0
    %2115 = vmatpush.msra.mxu0 0.0
    %2116 = vmatpush.msra.mxu0 0.0
    %2117 = vmatpush.msra.mxu0 0.0
    %2118 = vmatpush.msra.mxu0 0.0
    %2119 = vmatpush.msra.mxu0 0.0
    %2120 = vmatpush.msra.mxu0 0.0
    %2121 = vmatpush.msra.mxu0 0.0
    %2122 = vmatpush.msra.mxu0 0.0
    %2123 = vmatpush.msra.mxu0 %v141
    %2124 = vmatpush.msra.mxu0 %v137
    %2125 = vmatpush.msra.mxu0 %v133
    %2126 = vmatpush.msra.mxu0 %v129
    %2127 = vmatmul.f32.gmra.mxu0 %v2109
    %v2128 = vpop.f32.mrf.mxu0
    %v2129 = vadd.f32 %v378, %v2128
    %2130 = vdwg.mxu0
    %2131 = vmatpush.msra.mxu0 0.0
    %2132 = vmatpush.msra.mxu0 0.0
    %2133 = vmatpush.msra.mxu0 0.0
    %2134 = vmatpush.msra.mxu0 0.0
    %2135 = vmatpush.msra.mxu0 0.0
    %2136 = vmatpush.msra.mxu0 0.0
    %2137 = vmatpush.msra.mxu0 0.0
    %2138 = vmatpush.msra.mxu0 0.0
    %2139 = vmatpush.msra.mxu0 0.0
    %2140 = vmatpush.msra.mxu0 0.0
    %2141 = vmatpush.msra.mxu0 0.0
    %2142 = vmatpush.msra.mxu0 0.0
    %2143 = vmatpush.msra.mxu0 %v142
    %2144 = vmatpush.msra.mxu0 %v138
    %2145 = vmatpush.msra.mxu0 %v134
    %2146 = vmatpush.msra.mxu0 %v130
    %2147 = vmatmul.f32.gmra.mxu0 %v2109
    %v2148 = vpop.f32.mrf.mxu0
    %v2149 = vadd.f32 %v379, %v2148
    %2150 = vdwg.mxu0
    %2151 = vmatpush.msra.mxu0 0.0
    %2152 = vmatpush.msra.mxu0 0.0
    %2153 = vmatpush.msra.mxu0 0.0
    %2154 = vmatpush.msra.mxu0 0.0
    %2155 = vmatpush.msra.mxu0 0.0
    %2156 = vmatpush.msra.mxu0 0.0
    %2157 = vmatpush.msra.mxu0 0.0
    %2158 = vmatpush.msra.mxu0 0.0
    %2159 = vmatpush.msra.mxu0 0.0
    %2160 = vmatpush.msra.mxu0 0.0
    %2161 = vmatpush.msra.mxu0 0.0
    %2162 = vmatpush.msra.mxu0 0.0
    %2163 = vmatpush.msra.mxu0 %v143
    %2164 = vmatpush.msra.mxu0 %v139
    %2165 = vmatpush.msra.mxu0 %v135
    %2166 = vmatpush.msra.mxu0 %v131
    %2167 = vmatmul.f32.gmra.mxu0 %v2109
    %v2168 = vpop.f32.mrf.mxu0
    %v2169 = vadd.f32 %v380, %v2168
    %2170 = vdwg.mxu0
    %2171 = vmatpush.msra.mxu0 0.0
    %2172 = vmatpush.msra.mxu0 0.0
    %2173 = vmatpush.msra.mxu0 0.0
    %2174 = vmatpush.msra.mxu0 0.0
    %2175 = vmatpush.msra.mxu0 0.0
    %2176 = vmatpush.msra.mxu0 0.0
    %2177 = vmatpush.msra.mxu0 0.0
    %2178 = vmatpush.msra.mxu0 0.0
    %2179 = vmatpush.msra.mxu0 0.0
    %2180 = vmatpush.msra.mxu0 0.0
    %2181 = vmatpush.msra.mxu0 0.0
    %2182 = vmatpush.msra.mxu0 0.0
    %2183 = vmatpush.msra.mxu0 %v144
    %2184 = vmatpush.msra.mxu0 %v140
    %2185 = vmatpush.msra.mxu0 %v136
    %2186 = vmatpush.msra.mxu0 %v132
    %2187 = vmatmul.f32.gmra.mxu0 %v2109
    %v2188 = vpop.f32.mrf.mxu0
    %v2189 = vadd.f32 %v381, %v2188
    %2190 = vdwg.mxu0
    %v2191 = vtanh.pop %v2129
    %v2192 = vtanh.pop %v2149
    %v2193 = vtanh.pop %v2169
    %v2194 = vtanh.pop %v2189
    %v2195 = vmul.f32 %v2191, %v476
    %v2196 = vmul.f32 %v2192, %v477
    %v2197 = vmul.f32 %v2193, %v478
    %v2198 = vmul.f32 %v2194, %v479
    %v2199 = vadd.f32 %v2195, %v2196
    %v2200 = vadd.f32 %v2199, %v2197
    %v2201 = vadd.f32 %v2200, %v2198
    %2202 = vadd.xlane.f32.xlu0 %v2201
    %v2203 = vpop.xlane.xlu0 %2202
    %v2204 = vadd.f32 %v2203, %v494
    %v2205 = vmax.f32 %v496, %v740
    %v2206 = vmax.f32 %v2205, %v984
    %v2207 = vmax.f32 %v2206, %v1228
    %v2208 = vmax.f32 %v2207, %v1472
    %v2209 = vmax.f32 %v2208, %v1716
    %v2210 = vmax.f32 %v2209, %v1960
    %v2211 = vmax.f32 %v2210, %v2204
    %v2212 = vsub.f32 %v496, %v2211
    %v2213 = vmul.f32 %v2212, 1.442695
    %v2214 = vpow.pop %v2213
    %v2215 = vadd.f32 %v2214, 0.0
    %2217 = vset.pattern.permute.xlu0 0
    %2218 = vperm.xlu0 %2217, %v2214
    %v2219 = vpop.permute.xlu0 %2218
    %v2221 = vmul.f32 %v2219, %v376
    %v2222 = vadd.f32 %v2221, 0.0
    %v2223 = vsub.f32 %v740, %v2211
    %v2224 = vmul.f32 %v2223, 1.442695
    %v2225 = vpow.pop %v2224
    %v2226 = vadd.f32 %v2215, %v2225
    %2228 = vset.pattern.permute.xlu0 0
    %2229 = vperm.xlu0 %2228, %v2225
    %v2230 = vpop.permute.xlu0 %2229
    %v2232 = vmul.f32 %v2230, %v641
    %v2233 = vadd.f32 %v2222, %v2232
    %v2234 = vsub.f32 %v984, %v2211
    %v2235 = vmul.f32 %v2234, 1.442695
    %v2236 = vpow.pop %v2235
    %v2237 = vadd.f32 %v2226, %v2236
    %2239 = vset.pattern.permute.xlu0 0
    %2240 = vperm.xlu0 %2239, %v2236
    %v2241 = vpop.permute.xlu0 %2240
    %v2243 = vmul.f32 %v2241, %v885
    %v2244 = vadd.f32 %v2233, %v2243
    %v2245 = vsub.f32 %v1228, %v2211
    %v2246 = vmul.f32 %v2245, 1.442695
    %v2247 = vpow.pop %v2246
    %v2248 = vadd.f32 %v2237, %v2247
    %2250 = vset.pattern.permute.xlu0 0
    %2251 = vperm.xlu0 %2250, %v2247
    %v2252 = vpop.permute.xlu0 %2251
    %v2254 = vmul.f32 %v2252, %v1129
    %v2255 = vadd.f32 %v2244, %v2254
    %v2256 = vsub.f32 %v1472, %v2211
    %v2257 = vmul.f32 %v2256, 1.442695
    %v2258 = vpow.pop %v2257
    %v2259 = vadd.f32 %v2248, %v2258
    %2261 = vset.pattern.permute.xlu0 0
    %2262 = vperm.xlu0 %2261, %v2258
    %v2263 = vpop.permute.xlu0 %2262
    %v2265 = vmul.f32 %v2263, %v1373
    %v2266 = vadd.f32 %v2255, %v2265
    %v2267 = vsub.f32 %v1716, %v2211
    %v2268 = vmul.f32 %v2267, 1.442695
    %v2269 = vpow.pop %v2268
    %v2270 = vadd.f32 %v2259, %v2269
    %2272 = vset.pattern.permute.xlu0 0
    %2273 = vperm.xlu0 %2272, %v2269
    %v2274 = vpop.permute.xlu0 %2273
    %v2276 = vmul.f32 %v2274, %v1617
    %v2277 = vadd.f32 %v2266, %v2276
    %v2278 = vsub.f32 %v1960, %v2211
    %v2279 = vmul.f32 %v2278, 1.442695
    %v2280 = vpow.pop %v2279
    %v2281 = vadd.f32 %v2270, %v2280
    %2283 = vset.pattern.permute.xlu0 0
    %2284 = vperm.xlu0 %2283, %v2280
    %v2285 = vpop.permute.xlu0 %2284
    %v2287 = vmul.f32 %v2285, %v1861
    %v2288 = vadd.f32 %v2277, %v2287
    %v2289 = vsub.f32 %v2204, %v2211
    %v2290 = vmul.f32 %v2289, 1.442695
    %v2291 = vpow.pop %v2290
    %v2292 = vadd.f32 %v2281, %v2291
    %2294 = vset.pattern.permute.xlu0 0
    %2295 = vperm.xlu0 %2294, %v2291
    %v2296 = vpop.permute.xlu0 %2295
    %v2298 = vmul.f32 %v2296, %v2105
    %v2299 = vadd.f32 %v2288, %v2298
    %2301 = vset.pattern.permute.xlu0 0
    %2302 = vperm.xlu0 %2301, %v2292
    %v2303 = vpop.permute.xlu0 %2302
    %v2305 = vrcp.pop %v2303
    %v2306 = vmul.f32 %v2303, %v2305
    %v2307 = vsub.f32 1.0, %v2306
    %v2308 = vmul.f32 %v2305, %v2307
    %v2309 = vadd.f32 %v2305, %v2308
    %vm2310 = vweird.f32 %v2303
    %vm2311 = vweird.f32 %v2305
    %vm2312 = vmor %vm2310, %vm2311
    %v2313 = vsel %vm2312, %v2305, %v2309
    %v2314 = vand.u32 2147483647, %v2303
    %vm2315 = vcmp.eq.f32.partialorder %v2314, 8.507059e+37
    %v2316 = vand.u32 %v2303, 2147483648
    %v2317 = vor.u32 1.1754944e-38, %v2316
    %v2318 = vsel %vm2315, %v2317, %v2313
    %v2319 = vmul.f32 %v2299, %v2318
    %v2320 = vld [vmem:[%s1] sm:$0xff]
    %v2321 = vld [vmem:[%s11] sm:$0xff]
    %v2322 = vld [vmem:[%s11 + $0x8] sm:$0xff]
    %v2323 = vld [vmem:[%s11 + $0x10] sm:$0xff]
    %v2324 = vld [vmem:[%s11 + $0x18] sm:$0xff]
    %v2325 = vld [vmem:[%s11 + $0x20] sm:$0xff]
    %v2326 = vld [vmem:[%s11 + $0x28] sm:$0xff]
    %v2327 = vld [vmem:[%s11 + $0x30] sm:$0xff]
    %v2328 = vld [vmem:[%s11 + $0x38] sm:$0xff]
    %v2329 = vld [vmem:[%s11 + $0x40] sm:$0xff]
    %v2330 = vld [vmem:[%s11 + $0x48] sm:$0xff]
    %v2331 = vld [vmem:[%s11 + $0x50] sm:$0xff]
    %v2332 = vld [vmem:[%s11 + $0x58] sm:$0xff]
    %v2333 = vld [vmem:[%s12] sm:$0xf]
    %v2335 = vperm.slane %v2333, 0
    %v2336 = vperm.slane %v2333, 1
    %v2337 = vperm.slane %v2333, 2
    %v2338 = vperm.slane %v2333, 3
    %vm2343 = vcmask 195584
    %v2345 = vsel %vm2343, %v2320, 0
    %2347 = vmatpush.msra.mxu0 0.0
    %2348 = vmatpush.msra.mxu0 0.0
    %2349 = vmatpush.msra.mxu0 0.0
    %2350 = vmatpush.msra.mxu0 0.0
    %2351 = vmatpush.msra.mxu0 0.0
    %2352 = vmatpush.msra.mxu0 0.0
    %2353 = vmatpush.msra.mxu0 0.0
    %2354 = vmatpush.msra.mxu0 0.0
    %2355 = vmatpush.msra.mxu0 0.0
    %2356 = vmatpush.msra.mxu0 0.0
    %2357 = vmatpush.msra.mxu0 0.0
    %2358 = vmatpush.msra.mxu0 0.0
    %2359 = vmatpush.msra.mxu0 0.0
    %2360 = vmatpush.msra.mxu0 %v2329
    %2361 = vmatpush.msra.mxu0 %v2325
    %2362 = vmatpush.msra.mxu0 %v2321
    %2363 = vmatmul.f32.gmra.mxu0 %v2345
    %v2364 = vpop.f32.mrf.mxu0
    %v2365 = vadd.f32 %v2335, %v2364
    %2366 = vdwg.mxu0
    %2367 = vmatpush.msra.mxu0 0.0
    %2368 = vmatpush.msra.mxu0 0.0
    %2369 = vmatpush.msra.mxu0 0.0
    %2370 = vmatpush.msra.mxu0 0.0
    %2371 = vmatpush.msra.mxu0 0.0
    %2372 = vmatpush.msra.mxu0 0.0
    %2373 = vmatpush.msra.mxu0 0.0
    %2374 = vmatpush.msra.mxu0 0.0
    %2375 = vmatpush.msra.mxu0 0.0
    %2376 = vmatpush.msra.mxu0 0.0
    %2377 = vmatpush.msra.mxu0 0.0
    %2378 = vmatpush.msra.mxu0 0.0
    %2379 = vmatpush.msra.mxu0 0.0
    %2380 = vmatpush.msra.mxu0 %v2330
    %2381 = vmatpush.msra.mxu0 %v2326
    %2382 = vmatpush.msra.mxu0 %v2322
    %2383 = vmatmul.f32.gmra.mxu0 %v2345
    %v2384 = vpop.f32.mrf.mxu0
    %v2385 = vadd.f32 %v2336, %v2384
    %2386 = vdwg.mxu0
    %2387 = vmatpush.msra.mxu0 0.0
    %2388 = vmatpush.msra.mxu0 0.0
    %2389 = vmatpush.msra.mxu0 0.0
    %2390 = vmatpush.msra.mxu0 0.0
    %2391 = vmatpush.msra.mxu0 0.0
    %2392 = vmatpush.msra.mxu0 0.0
    %2393 = vmatpush.msra.mxu0 0.0
    %2394 = vmatpush.msra.mxu0 0.0
    %2395 = vmatpush.msra.mxu0 0.0
    %2396 = vmatpush.msra.mxu0 0.0
    %2397 = vmatpush.msra.mxu0 0.0
    %2398 = vmatpush.msra.mxu0 0.0
    %2399 = vmatpush.msra.mxu0 0.0
    %2400 = vmatpush.msra.mxu0 %v2331
    %2401 = vmatpush.msra.mxu0 %v2327
    %2402 = vmatpush.msra.mxu0 %v2323
    %2403 = vmatmul.f32.gmra.mxu0 %v2345
    %v2404 = vpop.f32.mrf.mxu0
    %v2405 = vadd.f32 %v2337, %v2404
    %2406 = vdwg.mxu0
    %2407 = vmatpush.msra.mxu0 0.0
    %2408 = vmatpush.msra.mxu0 0.0
    %2409 = vmatpush.msra.mxu0 0.0
    %2410 = vmatpush.msra.mxu0 0.0
    %2411 = vmatpush.msra.mxu0 0.0
    %2412 = vmatpush.msra.mxu0 0.0
    %2413 = vmatpush.msra.mxu0 0.0
    %2414 = vmatpush.msra.mxu0 0.0
    %2415 = vmatpush.msra.mxu0 0.0
    %2416 = vmatpush.msra.mxu0 0.0
    %2417 = vmatpush.msra.mxu0 0.0
    %2418 = vmatpush.msra.mxu0 0.0
    %2419 = vmatpush.msra.mxu0 0.0
    %2420 = vmatpush.msra.mxu0 %v2332
    %2421 = vmatpush.msra.mxu0 %v2328
    %2422 = vmatpush.msra.mxu0 %v2324
    %2423 = vmatmul.f32.gmra.mxu0 %v2345
    %v2424 = vpop.f32.mrf.mxu0
    %v2425 = vadd.f32 %v2338, %v2424
    %2426 = vdwg.mxu0
    %v2427 = vmul.f32 %v2365, 0.5
    %v2428 = vmul.f32 %v2385, 0.5
    %v2429 = vmul.f32 %v2405, 0.5
    %v2430 = vmul.f32 %v2425, 0.5
    %v2431 = vmul.f32 %v2365, 0.70710677
    %v2432 = vmul.f32 %v2385, 0.70710677
    %v2433 = vmul.f32 %v2405, 0.70710677
    %v2434 = vmul.f32 %v2425, 0.70710677
    %v2435 = vand.u32 2147483647, %v2431
    %v2436 = vand.u32 2147483647, %v2432
    %v2437 = vand.u32 2147483647, %v2433
    %v2438 = vand.u32 2147483647, %v2434
    %v2439 = vmul.f32 %v2435, 0.3275911
    %v2440 = vmul.f32 %v2436, 0.3275911
    %v2441 = vmul.f32 %v2437, 0.3275911
    %v2442 = vmul.f32 %v2438, 0.3275911
    %v2443 = vadd.f32 %v2439, 1.0
    %v2444 = vadd.f32 %v2440, 1.0
    %v2445 = vadd.f32 %v2441, 1.0
    %v2446 = vadd.f32 %v2442, 1.0
    %v2447 = vrcp.pop %v2443
    %v2448 = vmul.f32 %v2443, %v2447
    %v2449 = vsub.f32 1.0, %v2448
    %v2450 = vmul.f32 %v2447, %v2449
    %v2451 = vadd.f32 %v2447, %v2450
    %vm2452 = vweird.f32 %v2443
    %vm2453 = vweird.f32 %v2447
    %vm2454 = vmor %vm2452, %vm2453
    %v2455 = vsel %vm2454, %v2447, %v2451
    %v2456 = vand.u32 2147483647, %v2443
    %vm2457 = vcmp.eq.f32.partialorder %v2456, 8.507059e+37
    %v2458 = vand.u32 %v2443, 2147483648
    %v2459 = vor.u32 1.1754944e-38, %v2458
    %v2460 = vsel %vm2457, %v2459, %v2455
    %v2461 = vmul.f32 1.0, %v2460
    %v2462 = vrcp.pop %v2444
    %v2463 = vmul.f32 %v2444, %v2462
    %v2464 = vsub.f32 1.0, %v2463
    %v2465 = vmul.f32 %v2462, %v2464
    %v2466 = vadd.f32 %v2462, %v2465
    %vm2467 = vweird.f32 %v2444
    %vm2468 = vweird.f32 %v2462
    %vm2469 = vmor %vm2467, %vm2468
    %v2470 = vsel %vm2469, %v2462, %v2466
    %v2471 = vand.u32 2147483647, %v2444
    %vm2472 = vcmp.eq.f32.partialorder %v2471, 8.507059e+37
    %v2473 = vand.u32 %v2444, 2147483648
    %v2474 = vor.u32 1.1754944e-38, %v2473
    %v2475 = vsel %vm2472, %v2474, %v2470
    %v2476 = vmul.f32 1.0, %v2475
    %v2477 = vrcp.pop %v2445
    %v2478 = vmul.f32 %v2445, %v2477
    %v2479 = vsub.f32 1.0, %v2478
    %v2480 = vmul.f32 %v2477, %v2479
    %v2481 = vadd.f32 %v2477, %v2480
    %vm2482 = vweird.f32 %v2445
    %vm2483 = vweird.f32 %v2477
    %vm2484 = vmor %vm2482, %vm2483
    %v2485 = vsel %vm2484, %v2477, %v2481
    %v2486 = vand.u32 2147483647, %v2445
    %vm2487 = vcmp.eq.f32.partialorder %v2486, 8.507059e+37
    %v2488 = vand.u32 %v2445, 2147483648
    %v2489 = vor.u32 1.1754944e-38, %v2488
    %v2490 = vsel %vm2487, %v2489, %v2485
    %v2491 = vmul.f32 1.0, %v2490
    %v2492 = vrcp.pop %v2446
    %v2493 = vmul.f32 %v2446, %v2492
    %v2494 = vsub.f32 1.0, %v2493
    %v2495 = vmul.f32 %v2492, %v2494
    %v2496 = vadd.f32 %v2492, %v2495
    %vm2497 = vweird.f32 %v2446
    %vm2498 = vweird.f32 %v2492
    %vm2499 = vmor %vm2497, %vm2498
    %v2500 = vsel %vm2499, %v2492, %v2496
    %v2501 = vand.u32 2147483647, %v2446
    %vm2502 = vcmp.eq.f32.partialorder %v2501, 8.507059e+37
    %v2503 = vand.u32 %v2446, 2147483648
    %v2504 = vor.u32 1.1754944e-38, %v2503
    %v2505 = vsel %vm2502, %v2504, %v2500
    %v2506 = vmul.f32 1.0, %v2505
    %v2507 = vmul.f32 %v2461, 1.0614054
    %v2508 = vmul.f32 %v2476, 1.0614054
    %v2509 = vmul.f32 %v2491, 1.0614054
    %v2510 = vmul.f32 %v2506, 1.0614054
    %v2511 = vadd.f32 %v2507, -1.4531521
    %v2512 = vadd.f32 %v2508, -1.4531521
    %v2513 = vadd.f32 %v2509, -1.4531521
    %v2514 = vadd.f32 %v2510, -1.4531521
    %v2515 = vmul.f32 %v2511, %v2461
    %v2516 = vmul.f32 %v2512, %v2476
    %v2517 = vmul.f32 %v2513, %v2491
    %v2518 = vmul.f32 %v2514, %v2506
    %v2519 = vadd.f32 %v2515, 1.4214138
    %v2520 = vadd.f32 %v2516, 1.4214138
    %v2521 = vadd.f32 %v2517, 1.4214138
    %v2522 = vadd.f32 %v2518, 1.4214138
    %v2523 = vmul.f32 %v2519, %v2461
    %v2524 = vmul.f32 %v2520, %v2476
    %v2525 = vmul.f32 %v2521, %v2491
    %v2526 = vmul.f32 %v2522, %v2506
    %v2527 = vadd.f32 %v2523, -0.28449672
    %v2528 = vadd.f32 %v2524, -0.28449672
    %v2529 = vadd.f32 %v2525, -0.28449672
    %v2530 = vadd.f32 %v2526, -0.28449672
    %v2531 = vmul.f32 %v2527, %v2461
    %v2532 = vmul.f32 %v2528, %v2476
    %v2533 = vmul.f32 %v2529, %v2491
    %v2534 = vmul.f32 %v2530, %v2506
    %v2535 = vadd.f32 %v2531, 0.2548296
    %v2536 = vadd.f32 %v2532, 0.2548296
    %v2537 = vadd.f32 %v2533, 0.2548296
    %v2538 = vadd.f32 %v2534, 0.2548296
    %v2539 = vmul.f32 %v2535, %v2461
    %v2540 = vmul.f32 %v2536, %v2476
    %v2541 = vmul.f32 %v2537, %v2491
    %v2542 = vmul.f32 %v2538, %v2506
    %v2543 = vsub.f32 0.0, %v2435
    %v2544 = vsub.f32 0.0, %v2436
    %v2545 = vsub.f32 0.0, %v2437
    %v2546 = vsub.f32 0.0, %v2438
    %v2547 = vmul.f32 %v2543, %v2435
    %v2548 = vmul.f32 %v2544, %v2436
    %v2549 = vmul.f32 %v2545, %v2437
    %v2550 = vmul.f32 %v2546, %v2438
    %v2551 = vmul.f32 %v2547, 1.442695
    %v2552 = vpow.pop %v2551
    %v2553 = vmul.f32 %v2548, 1.442695
    %v2554 = vpow.pop %v2553
    %v2555 = vmul.f32 %v2549, 1.442695
    %v2556 = vpow.pop %v2555
    %v2557 = vmul.f32 %v2550, 1.442695
    %v2558 = vpow.pop %v2557
    %v2559 = vmul.f32 %v2539, %v2552
    %v2560 = vmul.f32 %v2540, %v2554
    %v2561 = vmul.f32 %v2541, %v2556
    %v2562 = vmul.f32 %v2542, %v2558
    %v2563 = vsub.f32 1.0, %v2559
    %v2564 = vsub.f32 1.0, %v2560
    %v2565 = vsub.f32 1.0, %v2561
    %v2566 = vsub.f32 1.0, %v2562
    %vm2567 = vcmp.lt.f32.partialorder %v2431, 0.0
    %vm2568 = vcmp.lt.f32.partialorder %v2432, 0.0
    %vm2569 = vcmp.lt.f32.partialorder %v2433, 0.0
    %vm2570 = vcmp.lt.f32.partialorder %v2434, 0.0
    %v2571 = vsub.f32 0.0, %v2563
    %v2572 = vsub.f32 0.0, %v2564
    %v2573 = vsub.f32 0.0, %v2565
    %v2574 = vsub.f32 0.0, %v2566
    %v2575 = vsel %vm2567, %v2571, %v2563
    %v2576 = vsel %vm2568, %v2572, %v2564
    %v2577 = vsel %vm2569, %v2573, %v2565
    %v2578 = vsel %vm2570, %v2574, %v2566
    %v2579 = vadd.f32 %v2575, 1.0
    %v2580 = vadd.f32 %v2576, 1.0
    %v2581 = vadd.f32 %v2577, 1.0
    %v2582 = vadd.f32 %v2578, 1.0
    %v2583 = vmul.f32 %v2427, %v2579
    %v2584 = vmul.f32 %v2428, %v2580
    %v2585 = vmul.f32 %v2429, %v2581
    %v2586 = vmul.f32 %v2430, %v2582
    %v2587 = vld [vmem:[#allocation4] sm:$0xff]
    %v2588 = vld [vmem:[#allocation4 + $0x8] sm:$0xff]
    %v2589 = vld [vmem:[#allocation4 + $0x10] sm:$0xff]
    %v2590 = vld [vmem:[#allocation4 + $0x18] sm:$0xff]
    %v2591 = vld [vmem:[#allocation4 + $0x20] sm:$0xff]
    %v2592 = vld [vmem:[#allocation4 + $0x28] sm:$0xff]
    %v2593 = vld [vmem:[#allocation4 + $0x30] sm:$0xff]
    %v2594 = vld [vmem:[#allocation4 + $0x38] sm:$0xff]
    %v2595 = vld [vmem:[#allocation4 + $0x40] sm:$0xff]
    %v2596 = vld [vmem:[#allocation4 + $0x48] sm:$0xff]
    %v2597 = vld [vmem:[#allocation4 + $0x50] sm:$0xff]
    %v2598 = vld [vmem:[#allocation4 + $0x58] sm:$0xff]
    %v2599 = vld [vmem:[#allocation4 + $0x60] sm:$0xff]
    %v2600 = vld [vmem:[#allocation4 + $0x68] sm:$0xff]
    %v2601 = vld [vmem:[#allocation4 + $0x70] sm:$0xff]
    %v2602 = vld [vmem:[#allocation4 + $0x78] sm:$0xff]
    %v2603 = vld [vmem:[#allocation4 + $0x80] sm:$0xff]
    %v2604 = vld [vmem:[#allocation4 + $0x88] sm:$0xff]
    %v2605 = vld [vmem:[#allocation4 + $0x90] sm:$0xff]
    %v2606 = vld [vmem:[#allocation4 + $0x98] sm:$0xff]
    %v2607 = vld [vmem:[#allocation4 + $0xa0] sm:$0xff]
    %v2608 = vld [vmem:[#allocation4 + $0xa8] sm:$0xff]
    %v2609 = vld [vmem:[#allocation4 + $0xb0] sm:$0xff]
    %v2610 = vld [vmem:[#allocation4 + $0xb8] sm:$0xff]
    %v2611 = vld [vmem:[#allocation4 + $0xc0] sm:$0xff]
    %v2612 = vld [vmem:[#allocation4 + $0xc8] sm:$0xff]
    %v2613 = vld [vmem:[#allocation4 + $0xd0] sm:$0xff]
    %v2614 = vld [vmem:[#allocation4 + $0xd8] sm:$0xff]
    %v2615 = vld [vmem:[#allocation4 + $0xe0] sm:$0xff]
    %v2616 = vld [vmem:[#allocation4 + $0xe8] sm:$0xff]
    %v2617 = vld [vmem:[#allocation4 + $0xf0] sm:$0xff]
    %v2618 = vld [vmem:[#allocation4 + $0xf8] sm:$0xff]
    %v2619 = vld [vmem:[#allocation4 + $0x100] sm:$0xff]
    %v2620 = vld [vmem:[#allocation4 + $0x108] sm:$0xff]
    %v2621 = vld [vmem:[#allocation4 + $0x110] sm:$0xff]
    %v2622 = vld [vmem:[#allocation4 + $0x118] sm:$0xff]
    %v2623 = vld [vmem:[#allocation4 + $0x120] sm:$0xff]
    %v2624 = vld [vmem:[#allocation4 + $0x128] sm:$0xff]
    %v2625 = vld [vmem:[#allocation4 + $0x130] sm:$0xff]
    %v2626 = vld [vmem:[#allocation4 + $0x138] sm:$0xff]
    %v2627 = vld [vmem:[#allocation4 + $0x140] sm:$0xff]
    %v2628 = vld [vmem:[#allocation4 + $0x148] sm:$0xff]
    %v2629 = vld [vmem:[#allocation4 + $0x150] sm:$0xff]
    %v2630 = vld [vmem:[#allocation4 + $0x158] sm:$0xff]
    %v2631 = vld [vmem:[#allocation4 + $0x160] sm:$0xff]
    %v2632 = vld [vmem:[#allocation4 + $0x168] sm:$0xff]
    %v2633 = vld [vmem:[#allocation4 + $0x170] sm:$0xff]
    %v2634 = vld [vmem:[#allocation4 + $0x178] sm:$0xff]
    %v2635 = vld [vmem:[#allocation4 + $0x180] sm:$0xff]
    %v2636 = vld [vmem:[#allocation4 + $0x188] sm:$0xff]
    %v2637 = vld [vmem:[#allocation4 + $0x190] sm:$0xff]
    %v2638 = vld [vmem:[#allocation4 + $0x198] sm:$0xff]
    %v2639 = vld [vmem:[#allocation4 + $0x1a0] sm:$0xff]
    %v2640 = vld [vmem:[#allocation4 + $0x1a8] sm:$0xff]
    %v2641 = vld [vmem:[#allocation4 + $0x1b0] sm:$0xff]
    %v2642 = vld [vmem:[#allocation4 + $0x1b8] sm:$0xff]
    %v2643 = vld [vmem:[#allocation4 + $0x1c0] sm:$0xff]
    %v2644 = vld [vmem:[#allocation4 + $0x1c8] sm:$0xff]
    %v2645 = vld [vmem:[#allocation4 + $0x1d0] sm:$0xff]
    %v2646 = vld [vmem:[#allocation4 + $0x1d8] sm:$0xff]
    %v2647 = vld [vmem:[#allocation4 + $0x1e0] sm:$0xff]
    %v2648 = vld [vmem:[#allocation4 + $0x1e8] sm:$0xff]
    %v2649 = vld [vmem:[#allocation4 + $0x1f0] sm:$0xff]
    %v2650 = vld [vmem:[#allocation4 + $0x1f8] sm:$0xff]
    %v2651 = vld [vmem:[#allocation4 + $0x200] sm:$0xff]
    %v2652 = vld [vmem:[#allocation4 + $0x208] sm:$0xff]
    %v2653 = vld [vmem:[#allocation4 + $0x210] sm:$0xff]
    %v2654 = vld [vmem:[#allocation4 + $0x218] sm:$0xff]
    %v2655 = vld [vmem:[#allocation4 + $0x220] sm:$0xff]
    %v2656 = vld [vmem:[#allocation4 + $0x228] sm:$0xff]
    %v2657 = vld [vmem:[#allocation4 + $0x230] sm:$0xff]
    %v2658 = vld [vmem:[#allocation4 + $0x238] sm:$0xff]
    %v2659 = vld [vmem:[#allocation4 + $0x240] sm:$0xff]
    %v2660 = vld [vmem:[#allocation4 + $0x248] sm:$0xff]
    %v2661 = vld [vmem:[#allocation4 + $0x250] sm:$0xff]
    %v2662 = vld [vmem:[#allocation4 + $0x258] sm:$0xff]
    %v2663 = vld [vmem:[#allocation4 + $0x260] sm:$0xff]
    %v2664 = vld [vmem:[#allocation4 + $0x268] sm:$0xff]
    %v2665 = vld [vmem:[#allocation4 + $0x270] sm:$0xff]
    %v2666 = vld [vmem:[#allocation4 + $0x278] sm:$0xff]
    %v2667 = vld [vmem:[#allocation4 + $0x280] sm:$0xff]
    %v2668 = vld [vmem:[#allocation4 + $0x288] sm:$0xff]
    %v2669 = vld [vmem:[#allocation4 + $0x290] sm:$0xff]
    %v2670 = vld [vmem:[#allocation4 + $0x298] sm:$0xff]
    %v2671 = vld [vmem:[#allocation4 + $0x2a0] sm:$0xff]
    %v2672 = vld [vmem:[#allocation4 + $0x2a8] sm:$0xff]
    %v2673 = vld [vmem:[#allocation4 + $0x2b0] sm:$0xff]
    %v2674 = vld [vmem:[#allocation4 + $0x2b8] sm:$0xff]
    %v2675 = vld [vmem:[#allocation4 + $0x2c0] sm:$0xff]
    %v2676 = vld [vmem:[#allocation4 + $0x2c8] sm:$0xff]
    %v2677 = vld [vmem:[#allocation4 + $0x2d0] sm:$0xff]
    %v2678 = vld [vmem:[#allocation4 + $0x2d8] sm:$0xff]
    %v2679 = vld [vmem:[#allocation4 + $0x2e0] sm:$0xff]
    %v2680 = vld [vmem:[#allocation4 + $0x2e8] sm:$0xff]
    %v2681 = vld [vmem:[#allocation4 + $0x2f0] sm:$0xff]
    %v2682 = vld [vmem:[#allocation4 + $0x2f8] sm:$0xff]
    %v2683 = vld [vmem:[#allocation4 + $0x300] sm:$0xff]
    %v2684 = vld [vmem:[#allocation4 + $0x308] sm:$0xff]
    %v2685 = vld [vmem:[#allocation4 + $0x310] sm:$0xff]
    %v2686 = vld [vmem:[#allocation4 + $0x318] sm:$0xff]
    %v2687 = vld [vmem:[#allocation4 + $0x320] sm:$0xff]
    %v2688 = vld [vmem:[#allocation4 + $0x328] sm:$0xff]
    %v2689 = vld [vmem:[#allocation4 + $0x330] sm:$0xff]
    %v2690 = vld [vmem:[#allocation4 + $0x338] sm:$0xff]
    %v2691 = vld [vmem:[#allocation4 + $0x340] sm:$0xff]
    %v2692 = vld [vmem:[#allocation4 + $0x348] sm:$0xff]
    %v2693 = vld [vmem:[#allocation4 + $0x350] sm:$0xff]
    %v2694 = vld [vmem:[#allocation4 + $0x358] sm:$0xff]
    %v2695 = vld [vmem:[#allocation4 + $0x360] sm:$0xff]
    %v2696 = vld [vmem:[#allocation4 + $0x368] sm:$0xff]
    %v2697 = vld [vmem:[#allocation4 + $0x370] sm:$0xff]
    %v2698 = vld [vmem:[#allocation4 + $0x378] sm:$0xff]
    %v2699 = vld [vmem:[#allocation4 + $0x380] sm:$0xff]
    %v2700 = vld [vmem:[#allocation4 + $0x388] sm:$0xff]
    %v2701 = vld [vmem:[#allocation4 + $0x390] sm:$0xff]
    %v2702 = vld [vmem:[#allocation4 + $0x398] sm:$0xff]
    %v2703 = vld [vmem:[#allocation4 + $0x3a0] sm:$0xff]
    %v2704 = vld [vmem:[#allocation4 + $0x3a8] sm:$0xff]
    %v2705 = vld [vmem:[#allocation4 + $0x3b0] sm:$0xff]
    %v2706 = vld [vmem:[#allocation4 + $0x3b8] sm:$0xff]
    %v2707 = vld [vmem:[#allocation4 + $0x3c0] sm:$0xff]
    %v2708 = vld [vmem:[#allocation4 + $0x3c8] sm:$0xff]
    %v2709 = vld [vmem:[#allocation4 + $0x3d0] sm:$0xff]
    %v2710 = vld [vmem:[#allocation4 + $0x3d8] sm:$0xff]
    %v2711 = vld [vmem:[#allocation4 + $0x3e0] sm:$0xff]
    %v2712 = vld [vmem:[#allocation4 + $0x3e8] sm:$0xff]
    %v2713 = vld [vmem:[#allocation4 + $0x3f0] sm:$0xff]
    %v2714 = vld [vmem:[#allocation4 + $0x3f8] sm:$0xff]
    %v2715 = vld [vmem:[#allocation4 + $0x400] sm:$0xff]
    %v2716 = vld [vmem:[#allocation4 + $0x408] sm:$0xff]
    %v2717 = vld [vmem:[#allocation4 + $0x410] sm:$0xff]
    %v2718 = vld [vmem:[#allocation4 + $0x418] sm:$0xff]
    %v2719 = vld [vmem:[#allocation4 + $0x420] sm:$0xff]
    %v2720 = vld [vmem:[#allocation4 + $0x428] sm:$0xff]
    %v2721 = vld [vmem:[#allocation4 + $0x430] sm:$0xff]
    %v2722 = vld [vmem:[#allocation4 + $0x438] sm:$0xff]
    %v2723 = vld [vmem:[#allocation4 + $0x440] sm:$0xff]
    %v2724 = vld [vmem:[#allocation4 + $0x448] sm:$0xff]
    %v2725 = vld [vmem:[#allocation4 + $0x450] sm:$0xff]
    %v2726 = vld [vmem:[#allocation4 + $0x458] sm:$0xff]
    %v2727 = vld [vmem:[#allocation4 + $0x460] sm:$0xff]
    %v2728 = vld [vmem:[#allocation4 + $0x468] sm:$0xff]
    %v2729 = vld [vmem:[#allocation4 + $0x470] sm:$0xff]
    %v2730 = vld [vmem:[#allocation4 + $0x478] sm:$0xff]
    %v2731 = vld [vmem:[#allocation4 + $0x480] sm:$0xff]
    %v2732 = vld [vmem:[#allocation4 + $0x488] sm:$0xff]
    %v2733 = vld [vmem:[#allocation4 + $0x490] sm:$0xff]
    %v2734 = vld [vmem:[#allocation4 + $0x498] sm:$0xff]
    %v2735 = vld [vmem:[#allocation4 + $0x4a0] sm:$0xff]
    %v2736 = vld [vmem:[#allocation4 + $0x4a8] sm:$0xff]
    %v2737 = vld [vmem:[#allocation4 + $0x4b0] sm:$0xff]
    %v2738 = vld [vmem:[#allocation4 + $0x4b8] sm:$0xff]
    %v2739 = vld [vmem:[#allocation4 + $0x4c0] sm:$0xff]
    %v2740 = vld [vmem:[#allocation4 + $0x4c8] sm:$0xff]
    %v2741 = vld [vmem:[#allocation4 + $0x4d0] sm:$0xff]
    %v2742 = vld [vmem:[#allocation4 + $0x4d8] sm:$0xff]
    %v2743 = vld [vmem:[#allocation4 + $0x4e0] sm:$0xff]
    %v2744 = vld [vmem:[#allocation4 + $0x4e8] sm:$0xff]
    %v2745 = vld [vmem:[#allocation4 + $0x4f0] sm:$0xff]
    %v2746 = vld [vmem:[#allocation4 + $0x4f8] sm:$0xff]
    %v2747 = vld [vmem:[#allocation4 + $0x500] sm:$0xff]
    %v2748 = vld [vmem:[#allocation4 + $0x508] sm:$0xff]
    %v2749 = vld [vmem:[#allocation4 + $0x510] sm:$0xff]
    %v2750 = vld [vmem:[#allocation4 + $0x518] sm:$0xff]
    %v2751 = vld [vmem:[#allocation4 + $0x520] sm:$0xff]
    %v2752 = vld [vmem:[#allocation4 + $0x528] sm:$0xff]
    %v2753 = vld [vmem:[#allocation4 + $0x530] sm:$0xff]
    %v2754 = vld [vmem:[#allocation4 + $0x538] sm:$0xff]
    %v2755 = vld [vmem:[#allocation4 + $0x540] sm:$0xff]
    %v2756 = vld [vmem:[#allocation4 + $0x548] sm:$0xff]
    %v2757 = vld [vmem:[#allocation4 + $0x550] sm:$0xff]
    %v2758 = vld [vmem:[#allocation4 + $0x558] sm:$0xff]
    %v2759 = vld [vmem:[#allocation4 + $0x560] sm:$0xff]
    %v2760 = vld [vmem:[#allocation4 + $0x568] sm:$0xff]
    %v2761 = vld [vmem:[#allocation4 + $0x570] sm:$0xff]
    %v2762 = vld [vmem:[#allocation4 + $0x578] sm:$0xff]
    %v2763 = vld [vmem:[#allocation4 + $0x580] sm:$0xff]
    %v2764 = vld [vmem:[#allocation4 + $0x588] sm:$0xff]
    %v2765 = vld [vmem:[#allocation4 + $0x590] sm:$0xff]
    %v2766 = vld [vmem:[#allocation4 + $0x598] sm:$0xff]
    %v2767 = vld [vmem:[#allocation4 + $0x5a0] sm:$0xff]
    %v2768 = vld [vmem:[#allocation4 + $0x5a8] sm:$0xff]
    %v2769 = vld [vmem:[#allocation4 + $0x5b0] sm:$0xff]
    %v2770 = vld [vmem:[#allocation4 + $0x5b8] sm:$0xff]
    %v2771 = vld [vmem:[#allocation4 + $0x5c0] sm:$0xff]
    %v2772 = vld [vmem:[#allocation4 + $0x5c8] sm:$0xff]
    %v2773 = vld [vmem:[#allocation4 + $0x5d0] sm:$0xff]
    %v2774 = vld [vmem:[#allocation4 + $0x5d8] sm:$0xff]
    %v2775 = vld [vmem:[#allocation4 + $0x5e0] sm:$0xff]
    %v2776 = vld [vmem:[#allocation4 + $0x5e8] sm:$0xff]
    %v2777 = vld [vmem:[#allocation4 + $0x5f0] sm:$0xff]
    %v2778 = vld [vmem:[#allocation4 + $0x5f8] sm:$0xff]
    %v2779 = vld [vmem:[#allocation4 + $0x600] sm:$0xff]
    %v2780 = vld [vmem:[#allocation4 + $0x608] sm:$0xff]
    %v2781 = vld [vmem:[#allocation4 + $0x610] sm:$0xff]
    %v2782 = vld [vmem:[#allocation4 + $0x618] sm:$0xff]
    %v2783 = vld [vmem:[#allocation4 + $0x620] sm:$0xff]
    %v2784 = vld [vmem:[#allocation4 + $0x628] sm:$0xff]
    %v2785 = vld [vmem:[#allocation4 + $0x630] sm:$0xff]
    %v2786 = vld [vmem:[#allocation4 + $0x638] sm:$0xff]
    %v2787 = vld [vmem:[#allocation4 + $0x640] sm:$0xff]
    %v2788 = vld [vmem:[#allocation4 + $0x648] sm:$0xff]
    %v2789 = vld [vmem:[#allocation4 + $0x650] sm:$0xff]
    %v2790 = vld [vmem:[#allocation4 + $0x658] sm:$0xff]
    %v2791 = vld [vmem:[#allocation4 + $0x660] sm:$0xff]
    %v2792 = vld [vmem:[#allocation4 + $0x668] sm:$0xff]
    %v2793 = vld [vmem:[#allocation4 + $0x670] sm:$0xff]
    %v2794 = vld [vmem:[#allocation4 + $0x678] sm:$0xff]
    %v2795 = vld [vmem:[#allocation4 + $0x680] sm:$0xff]
    %v2796 = vld [vmem:[#allocation4 + $0x688] sm:$0xff]
    %v2797 = vld [vmem:[#allocation4 + $0x690] sm:$0xff]
    %v2798 = vld [vmem:[#allocation4 + $0x698] sm:$0xff]
    %v2799 = vld [vmem:[#allocation4 + $0x6a0] sm:$0xff]
    %v2800 = vld [vmem:[#allocation4 + $0x6a8] sm:$0xff]
    %v2801 = vld [vmem:[#allocation4 + $0x6b0] sm:$0xff]
    %v2802 = vld [vmem:[#allocation4 + $0x6b8] sm:$0xff]
    %v2803 = vld [vmem:[#allocation4 + $0x6c0] sm:$0xff]
    %v2804 = vld [vmem:[#allocation4 + $0x6c8] sm:$0xff]
    %v2805 = vld [vmem:[#allocation4 + $0x6d0] sm:$0xff]
    %v2806 = vld [vmem:[#allocation4 + $0x6d8] sm:$0xff]
    %v2807 = vld [vmem:[#allocation4 + $0x6e0] sm:$0xff]
    %v2808 = vld [vmem:[#allocation4 + $0x6e8] sm:$0xff]
    %v2809 = vld [vmem:[#allocation4 + $0x6f0] sm:$0xff]
    %v2810 = vld [vmem:[#allocation4 + $0x6f8] sm:$0xff]
    %v2811 = vld [vmem:[#allocation4 + $0x700] sm:$0xff]
    %v2812 = vld [vmem:[#allocation4 + $0x708] sm:$0xff]
    %v2813 = vld [vmem:[#allocation4 + $0x710] sm:$0xff]
    %v2814 = vld [vmem:[#allocation4 + $0x718] sm:$0xff]
    %v2815 = vld [vmem:[#allocation4 + $0x720] sm:$0xff]
    %v2816 = vld [vmem:[#allocation4 + $0x728] sm:$0xff]
    %v2817 = vld [vmem:[#allocation4 + $0x730] sm:$0xff]
    %v2818 = vld [vmem:[#allocation4 + $0x738] sm:$0xff]
    %v2819 = vld [vmem:[#allocation4 + $0x740] sm:$0xff]
    %v2820 = vld [vmem:[#allocation4 + $0x748] sm:$0xff]
    %v2821 = vld [vmem:[#allocation4 + $0x750] sm:$0xff]
    %v2822 = vld [vmem:[#allocation4 + $0x758] sm:$0xff]
    %v2823 = vld [vmem:[#allocation4 + $0x760] sm:$0xff]
    %v2824 = vld [vmem:[#allocation4 + $0x768] sm:$0xff]
    %v2825 = vld [vmem:[#allocation4 + $0x770] sm:$0xff]
    %v2826 = vld [vmem:[#allocation4 + $0x778] sm:$0xff]
    %v2827 = vld [vmem:[#allocation4 + $0x780] sm:$0xff]
    %v2828 = vld [vmem:[#allocation4 + $0x788] sm:$0xff]
    %v2829 = vld [vmem:[#allocation4 + $0x790] sm:$0xff]
    %v2830 = vld [vmem:[#allocation4 + $0x798] sm:$0xff]
    %v2831 = vld [vmem:[#allocation4 + $0x7a0] sm:$0xff]
    %v2832 = vld [vmem:[#allocation4 + $0x7a8] sm:$0xff]
    %v2833 = vld [vmem:[#allocation4 + $0x7b0] sm:$0xff]
    %v2834 = vld [vmem:[#allocation4 + $0x7b8] sm:$0xff]
    %v2835 = vld [vmem:[#allocation4 + $0x7c0] sm:$0xff]
    %v2836 = vld [vmem:[#allocation4 + $0x7c8] sm:$0xff]
    %v2837 = vld [vmem:[#allocation4 + $0x7d0] sm:$0xff]
    %v2838 = vld [vmem:[#allocation4 + $0x7d8] sm:$0xff]
    %v2839 = vld [vmem:[#allocation4 + $0x7e0] sm:$0xff]
    %v2840 = vld [vmem:[#allocation4 + $0x7e8] sm:$0xff]
    %v2841 = vld [vmem:[#allocation4 + $0x7f0] sm:$0xff]
    %v2842 = vld [vmem:[#allocation4 + $0x7f8] sm:$0xff]
    %v2843 = vld [vmem:[%s14] sm:$0xf]
    %v2845 = vperm.slane %v2843, 0
    %v2846 = vperm.slane %v2843, 1
    %v2847 = vperm.slane %v2843, 2
    %v2848 = vperm.slane %v2843, 3
    %2853 = vmatpush.msra.mxu0 %v2647
    %2854 = vmatpush.msra.mxu0 %v2643
    %2855 = vmatpush.msra.mxu0 %v2639
    %2856 = vmatpush.msra.mxu0 %v2635
    %2857 = vmatpush.msra.mxu0 %v2631
    %2858 = vmatpush.msra.mxu0 %v2627
    %2859 = vmatpush.msra.mxu0 %v2623
    %2860 = vmatpush.msra.mxu0 %v2619
    %2861 = vmatpush.msra.mxu0 %v2615
    %2862 = vmatpush.msra.mxu0 %v2611
    %2863 = vmatpush.msra.mxu0 %v2607
    %2864 = vmatpush.msra.mxu0 %v2603
    %2865 = vmatpush.msra.mxu0 %v2599
    %2866 = vmatpush.msra.mxu0 %v2595
    %2867 = vmatpush.msra.mxu0 %v2591
    %2868 = vmatpush.msra.mxu0 %v2587
    %2869 = vmatmul.f32.gmra.mxu0 %v2583
    %v2870 = vpop.f32.mrf.mxu0
    %v2871 = vadd.f32 %v2845, %v2870
    %2872 = vdwg.mxu0
    %2873 = vmatpush.msra.mxu0 %v2711
    %2874 = vmatpush.msra.mxu0 %v2707
    %2875 = vmatpush.msra.mxu0 %v2703
    %2876 = vmatpush.msra.mxu0 %v2699
    %2877 = vmatpush.msra.mxu0 %v2695
    %2878 = vmatpush.msra.mxu0 %v2691
    %2879 = vmatpush.msra.mxu0 %v2687
    %2880 = vmatpush.msra.mxu0 %v2683
    %2881 = vmatpush.msra.mxu0 %v2679
    %2882 = vmatpush.msra.mxu0 %v2675
    %2883 = vmatpush.msra.mxu0 %v2671
    %2884 = vmatpush.msra.mxu0 %v2667
    %2885 = vmatpush.msra.mxu0 %v2663
    %2886 = vmatpush.msra.mxu0 %v2659
    %2887 = vmatpush.msra.mxu0 %v2655
    %2888 = vmatpush.msra.mxu0 %v2651
    %2889 = vmatmul.f32.gmra.mxu0 %v2584
    %v2890 = vpop.f32.mrf.mxu0
    %v2891 = vadd.f32 %v2871, %v2890
    %2892 = vdwg.mxu0
    %2893 = vmatpush.msra.mxu0 %v2775
    %2894 = vmatpush.msra.mxu0 %v2771
    %2895 = vmatpush.msra.mxu0 %v2767
    %2896 = vmatpush.msra.mxu0 %v2763
    %2897 = vmatpush.msra.mxu0 %v2759
    %2898 = vmatpush.msra.mxu0 %v2755
    %2899 = vmatpush.msra.mxu0 %v2751
    %2900 = vmatpush.msra.mxu0 %v2747
    %2901 = vmatpush.msra.mxu0 %v2743
    %2902 = vmatpush.msra.mxu0 %v2739
    %2903 = vmatpush.msra.mxu0 %v2735
    %2904 = vmatpush.msra.mxu0 %v2731
    %2905 = vmatpush.msra.mxu0 %v2727
    %2906 = vmatpush.msra.mxu0 %v2723
    %2907 = vmatpush.msra.mxu0 %v2719
    %2908 = vmatpush.msra.mxu0 %v2715
    %2909 = vmatmul.f32.gmra.mxu0 %v2585
    %v2910 = vpop.f32.mrf.mxu0
    %v2911 = vadd.f32 %v2891, %v2910
    %2912 = vdwg.mxu0
    %2913 = vmatpush.msra.mxu0 %v2839
    %2914 = vmatpush.msra.mxu0 %v2835
    %2915 = vmatpush.msra.mxu0 %v2831
    %2916 = vmatpush.msra.mxu0 %v2827
    %2917 = vmatpush.msra.mxu0 %v2823
    %2918 = vmatpush.msra.mxu0 %v2819
    %2919 = vmatpush.msra.mxu0 %v2815
    %2920 = vmatpush.msra.mxu0 %v2811
    %2921 = vmatpush.msra.mxu0 %v2807
    %2922 = vmatpush.msra.mxu0 %v2803
    %2923 = vmatpush.msra.mxu0 %v2799
    %2924 = vmatpush.msra.mxu0 %v2795
    %2925 = vmatpush.msra.mxu0 %v2791
    %2926 = vmatpush.msra.mxu0 %v2787
    %2927 = vmatpush.msra.mxu0 %v2783
    %2928 = vmatpush.msra.mxu0 %v2779
    %2929 = vmatmul.f32.gmra.mxu0 %v2586
    %v2930 = vpop.f32.mrf.mxu0
    %v2931 = vadd.f32 %v2911, %v2930
    %2932 = vdwg.mxu0
    %2933 = vmatpush.msra.mxu0 %v2648
    %2934 = vmatpush.msra.mxu0 %v2644
    %2935 = vmatpush.msra.mxu0 %v2640
    %2936 = vmatpush.msra.mxu0 %v2636
    %2937 = vmatpush.msra.mxu0 %v2632
    %2938 = vmatpush.msra.mxu0 %v2628
    %2939 = vmatpush.msra.mxu0 %v2624
    %2940 = vmatpush.msra.mxu0 %v2620
    %2941 = vmatpush.msra.mxu0 %v2616
    %2942 = vmatpush.msra.mxu0 %v2612
    %2943 = vmatpush.msra.mxu0 %v2608
    %2944 = vmatpush.msra.mxu0 %v2604
    %2945 = vmatpush.msra.mxu0 %v2600
    %2946 = vmatpush.msra.mxu0 %v2596
    %2947 = vmatpush.msra.mxu0 %v2592
    %2948 = vmatpush.msra.mxu0 %v2588
    %2949 = vmatmul.f32.gmra.mxu0 %v2583
    %v2950 = vpop.f32.mrf.mxu0
    %v2951 = vadd.f32 %v2846, %v2950
    %2952 = vdwg.mxu0
    %2953 = vmatpush.msra.mxu0 %v2712
    %2954 = vmatpush.msra.mxu0 %v2708
    %2955 = vmatpush.msra.mxu0 %v2704
    %2956 = vmatpush.msra.mxu0 %v2700
    %2957 = vmatpush.msra.mxu0 %v2696
    %2958 = vmatpush.msra.mxu0 %v2692
    %2959 = vmatpush.msra.mxu0 %v2688
    %2960 = vmatpush.msra.mxu0 %v2684
    %2961 = vmatpush.msra.mxu0 %v2680
    %2962 = vmatpush.msra.mxu0 %v2676
    %2963 = vmatpush.msra.mxu0 %v2672
    %2964 = vmatpush.msra.mxu0 %v2668
    %2965 = vmatpush.msra.mxu0 %v2664
    %2966 = vmatpush.msra.mxu0 %v2660
    %2967 = vmatpush.msra.mxu0 %v2656
    %2968 = vmatpush.msra.mxu0 %v2652
    %2969 = vmatmul.f32.gmra.mxu0 %v2584
    %v2970 = vpop.f32.mrf.mxu0
    %v2971 = vadd.f32 %v2951, %v2970
    %2972 = vdwg.mxu0
    %2973 = vmatpush.msra.mxu0 %v2776
    %2974 = vmatpush.msra.mxu0 %v2772
    %2975 = vmatpush.msra.mxu0 %v2768
    %2976 = vmatpush.msra.mxu0 %v2764
    %2977 = vmatpush.msra.mxu0 %v2760
    %2978 = vmatpush.msra.mxu0 %v2756
    %2979 = vmatpush.msra.mxu0 %v2752
    %2980 = vmatpush.msra.mxu0 %v2748
    %2981 = vmatpush.msra.mxu0 %v2744
    %2982 = vmatpush.msra.mxu0 %v2740
    %2983 = vmatpush.msra.mxu0 %v2736
    %2984 = vmatpush.msra.mxu0 %v2732
    %2985 = vmatpush.msra.mxu0 %v2728
    %2986 = vmatpush.msra.mxu0 %v2724
    %2987 = vmatpush.msra.mxu0 %v2720
    %2988 = vmatpush.msra.mxu0 %v2716
    %2989 = vmatmul.f32.gmra.mxu0 %v2585
    %v2990 = vpop.f32.mrf.mxu0
    %v2991 = vadd.f32 %v2971, %v2990
    %2992 = vdwg.mxu0
    %2993 = vmatpush.msra.mxu0 %v2840
    %2994 = vmatpush.msra.mxu0 %v2836
    %2995 = vmatpush.msra.mxu0 %v2832
    %2996 = vmatpush.msra.mxu0 %v2828
    %2997 = vmatpush.msra.mxu0 %v2824
    %2998 = vmatpush.msra.mxu0 %v2820
    %2999 = vmatpush.msra.mxu0 %v2816
    %3000 = vmatpush.msra.mxu0 %v2812
    %3001 = vmatpush.msra.mxu0 %v2808
    %3002 = vmatpush.msra.mxu0 %v2804
    %3003 = vmatpush.msra.mxu0 %v2800
    %3004 = vmatpush.msra.mxu0 %v2796
    %3005 = vmatpush.msra.mxu0 %v2792
    %3006 = vmatpush.msra.mxu0 %v2788
    %3007 = vmatpush.msra.mxu0 %v2784
    %3008 = vmatpush.msra.mxu0 %v2780
    %3009 = vmatmul.f32.gmra.mxu0 %v2586
    %v3010 = vpop.f32.mrf.mxu0
    %v3011 = vadd.f32 %v2991, %v3010
    %3012 = vdwg.mxu0
    %3013 = vmatpush.msra.mxu0 %v2649
    %3014 = vmatpush.msra.mxu0 %v2645
    %3015 = vmatpush.msra.mxu0 %v2641
    %3016 = vmatpush.msra.mxu0 %v2637
    %3017 = vmatpush.msra.mxu0 %v2633
    %3018 = vmatpush.msra.mxu0 %v2629
    %3019 = vmatpush.msra.mxu0 %v2625
    %3020 = vmatpush.msra.mxu0 %v2621
    %3021 = vmatpush.msra.mxu0 %v2617
    %3022 = vmatpush.msra.mxu0 %v2613
    %3023 = vmatpush.msra.mxu0 %v2609
    %3024 = vmatpush.msra.mxu0 %v2605
    %3025 = vmatpush.msra.mxu0 %v2601
    %3026 = vmatpush.msra.mxu0 %v2597
    %3027 = vmatpush.msra.mxu0 %v2593
    %3028 = vmatpush.msra.mxu0 %v2589
    %3029 = vmatmul.f32.gmra.mxu0 %v2583
    %v3030 = vpop.f32.mrf.mxu0
    %v3031 = vadd.f32 %v2847, %v3030
    %3032 = vdwg.mxu0
    %3033 = vmatpush.msra.mxu0 %v2713
    %3034 = vmatpush.msra.mxu0 %v2709
    %3035 = vmatpush.msra.mxu0 %v2705
    %3036 = vmatpush.msra.mxu0 %v2701
    %3037 = vmatpush.msra.mxu0 %v2697
    %3038 = vmatpush.msra.mxu0 %v2693
    %3039 = vmatpush.msra.mxu0 %v2689
    %3040 = vmatpush.msra.mxu0 %v2685
    %3041 = vmatpush.msra.mxu0 %v2681
    %3042 = vmatpush.msra.mxu0 %v2677
    %3043 = vmatpush.msra.mxu0 %v2673
    %3044 = vmatpush.msra.mxu0 %v2669
    %3045 = vmatpush.msra.mxu0 %v2665
    %3046 = vmatpush.msra.mxu0 %v2661
    %3047 = vmatpush.msra.mxu0 %v2657
    %3048 = vmatpush.msra.mxu0 %v2653
    %3049 = vmatmul.f32.gmra.mxu0 %v2584
    %v3050 = vpop.f32.mrf.mxu0
    %v3051 = vadd.f32 %v3031, %v3050
    %3052 = vdwg.mxu0
    %3053 = vmatpush.msra.mxu0 %v2777
    %3054 = vmatpush.msra.mxu0 %v2773
    %3055 = vmatpush.msra.mxu0 %v2769
    %3056 = vmatpush.msra.mxu0 %v2765
    %3057 = vmatpush.msra.mxu0 %v2761
    %3058 = vmatpush.msra.mxu0 %v2757
    %3059 = vmatpush.msra.mxu0 %v2753
    %3060 = vmatpush.msra.mxu0 %v2749
    %3061 = vmatpush.msra.mxu0 %v2745
    %3062 = vmatpush.msra.mxu0 %v2741
    %3063 = vmatpush.msra.mxu0 %v2737
    %3064 = vmatpush.msra.mxu0 %v2733
    %3065 = vmatpush.msra.mxu0 %v2729
    %3066 = vmatpush.msra.mxu0 %v2725
    %3067 = vmatpush.msra.mxu0 %v2721
    %3068 = vmatpush.msra.mxu0 %v2717
    %3069 = vmatmul.f32.gmra.mxu0 %v2585
    %v3070 = vpop.f32.mrf.mxu0
    %v3071 = vadd.f32 %v3051, %v3070
    %3072 = vdwg.mxu0
    %3073 = vmatpush.msra.mxu0 %v2841
    %3074 = vmatpush.msra.mxu0 %v2837
    %3075 = vmatpush.msra.mxu0 %v2833
    %3076 = vmatpush.msra.mxu0 %v2829
    %3077 = vmatpush.msra.mxu0 %v2825
    %3078 = vmatpush.msra.mxu0 %v2821
    %3079 = vmatpush.msra.mxu0 %v2817
    %3080 = vmatpush.msra.mxu0 %v2813
    %3081 = vmatpush.msra.mxu0 %v2809
    %3082 = vmatpush.msra.mxu0 %v2805
    %3083 = vmatpush.msra.mxu0 %v2801
    %3084 = vmatpush.msra.mxu0 %v2797
    %3085 = vmatpush.msra.mxu0 %v2793
    %3086 = vmatpush.msra.mxu0 %v2789
    %3087 = vmatpush.msra.mxu0 %v2785
    %3088 = vmatpush.msra.mxu0 %v2781
    %3089 = vmatmul.f32.gmra.mxu0 %v2586
    %v3090 = vpop.f32.mrf.mxu0
    %v3091 = vadd.f32 %v3071, %v3090
    %3092 = vdwg.mxu0
    %3093 = vmatpush.msra.mxu0 %v2650
    %3094 = vmatpush.msra.mxu0 %v2646
    %3095 = vmatpush.msra.mxu0 %v2642
    %3096 = vmatpush.msra.mxu0 %v2638
    %3097 = vmatpush.msra.mxu0 %v2634
    %3098 = vmatpush.msra.mxu0 %v2630
    %3099 = vmatpush.msra.mxu0 %v2626
    %3100 = vmatpush.msra.mxu0 %v2622
    %3101 = vmatpush.msra.mxu0 %v2618
    %3102 = vmatpush.msra.mxu0 %v2614
    %3103 = vmatpush.msra.mxu0 %v2610
    %3104 = vmatpush.msra.mxu0 %v2606
    %3105 = vmatpush.msra.mxu0 %v2602
    %3106 = vmatpush.msra.mxu0 %v2598
    %3107 = vmatpush.msra.mxu0 %v2594
    %3108 = vmatpush.msra.mxu0 %v2590
    %3109 = vmatmul.f32.gmra.mxu0 %v2583
    %v3110 = vpop.f32.mrf.mxu0
    %v3111 = vadd.f32 %v2848, %v3110
    %3112 = vdwg.mxu0
    %3113 = vmatpush.msra.mxu0 %v2714
    %3114 = vmatpush.msra.mxu0 %v2710
    %3115 = vmatpush.msra.mxu0 %v2706
    %3116 = vmatpush.msra.mxu0 %v2702
    %3117 = vmatpush.msra.mxu0 %v2698
    %3118 = vmatpush.msra.mxu0 %v2694
    %3119 = vmatpush.msra.mxu0 %v2690
    %3120 = vmatpush.msra.mxu0 %v2686
    %3121 = vmatpush.msra.mxu0 %v2682
    %3122 = vmatpush.msra.mxu0 %v2678
    %3123 = vmatpush.msra.mxu0 %v2674
    %3124 = vmatpush.msra.mxu0 %v2670
    %3125 = vmatpush.msra.mxu0 %v2666
    %3126 = vmatpush.msra.mxu0 %v2662
    %3127 = vmatpush.msra.mxu0 %v2658
    %3128 = vmatpush.msra.mxu0 %v2654
    %3129 = vmatmul.f32.gmra.mxu0 %v2584
    %v3130 = vpop.f32.mrf.mxu0
    %v3131 = vadd.f32 %v3111, %v3130
    %3132 = vdwg.mxu0
    %3133 = vmatpush.msra.mxu0 %v2778
    %3134 = vmatpush.msra.mxu0 %v2774
    %3135 = vmatpush.msra.mxu0 %v2770
    %3136 = vmatpush.msra.mxu0 %v2766
    %3137 = vmatpush.msra.mxu0 %v2762
    %3138 = vmatpush.msra.mxu0 %v2758
    %3139 = vmatpush.msra.mxu0 %v2754
    %3140 = vmatpush.msra.mxu0 %v2750
    %3141 = vmatpush.msra.mxu0 %v2746
    %3142 = vmatpush.msra.mxu0 %v2742
    %3143 = vmatpush.msra.mxu0 %v2738
    %3144 = vmatpush.msra.mxu0 %v2734
    %3145 = vmatpush.msra.mxu0 %v2730
    %3146 = vmatpush.msra.mxu0 %v2726
    %3147 = vmatpush.msra.mxu0 %v2722
    %3148 = vmatpush.msra.mxu0 %v2718
    %3149 = vmatmul.f32.gmra.mxu0 %v2585
    %v3150 = vpop.f32.mrf.mxu0
    %v3151 = vadd.f32 %v3131, %v3150
    %3152 = vdwg.mxu0
    %3153 = vmatpush.msra.mxu0 %v2842
    %3154 = vmatpush.msra.mxu0 %v2838
    %3155 = vmatpush.msra.mxu0 %v2834
    %3156 = vmatpush.msra.mxu0 %v2830
    %3157 = vmatpush.msra.mxu0 %v2826
    %3158 = vmatpush.msra.mxu0 %v2822
    %3159 = vmatpush.msra.mxu0 %v2818
    %3160 = vmatpush.msra.mxu0 %v2814
    %3161 = vmatpush.msra.mxu0 %v2810
    %3162 = vmatpush.msra.mxu0 %v2806
    %3163 = vmatpush.msra.mxu0 %v2802
    %3164 = vmatpush.msra.mxu0 %v2798
    %3165 = vmatpush.msra.mxu0 %v2794
    %3166 = vmatpush.msra.mxu0 %v2790
    %3167 = vmatpush.msra.mxu0 %v2786
    %3168 = vmatpush.msra.mxu0 %v2782
    %3169 = vmatmul.f32.gmra.mxu0 %v2586
    %v3170 = vpop.f32.mrf.mxu0
    %v3171 = vadd.f32 %v3151, %v3170
    %3172 = vdwg.mxu0
    %v3173 = vmul.f32 %v2931, 0.5
    %v3174 = vmul.f32 %v3011, 0.5
    %v3175 = vmul.f32 %v3091, 0.5
    %v3176 = vmul.f32 %v3171, 0.5
    %v3177 = vmul.f32 %v2931, 0.70710677
    %v3178 = vmul.f32 %v3011, 0.70710677
    %v3179 = vmul.f32 %v3091, 0.70710677
    %v3180 = vmul.f32 %v3171, 0.70710677
    %v3181 = vand.u32 2147483647, %v3177
    %v3182 = vand.u32 2147483647, %v3178
    %v3183 = vand.u32 2147483647, %v3179
    %v3184 = vand.u32 2147483647, %v3180
    %v3185 = vmul.f32 %v3181, 0.3275911
    %v3186 = vmul.f32 %v3182, 0.3275911
    %v3187 = vmul.f32 %v3183, 0.3275911
    %v3188 = vmul.f32 %v3184, 0.3275911
    %v3189 = vadd.f32 %v3185, 1.0
    %v3190 = vadd.f32 %v3186, 1.0
    %v3191 = vadd.f32 %v3187, 1.0
    %v3192 = vadd.f32 %v3188, 1.0
    %v3193 = vrcp.pop %v3189
    %v3194 = vmul.f32 %v3189, %v3193
    %v3195 = vsub.f32 1.0, %v3194
    %v3196 = vmul.f32 %v3193, %v3195
    %v3197 = vadd.f32 %v3193, %v3196
    %vm3198 = vweird.f32 %v3189
    %vm3199 = vweird.f32 %v3193
    %vm3200 = vmor %vm3198, %vm3199
    %v3201 = vsel %vm3200, %v3193, %v3197
    %v3202 = vand.u32 2147483647, %v3189
    %vm3203 = vcmp.eq.f32.partialorder %v3202, 8.507059e+37
    %v3204 = vand.u32 %v3189, 2147483648
    %v3205 = vor.u32 1.1754944e-38, %v3204
    %v3206 = vsel %vm3203, %v3205, %v3201
    %v3207 = vmul.f32 1.0, %v3206
    %v3208 = vrcp.pop %v3190
    %v3209 = vmul.f32 %v3190, %v3208
    %v3210 = vsub.f32 1.0, %v3209
    %v3211 = vmul.f32 %v3208, %v3210
    %v3212 = vadd.f32 %v3208, %v3211
    %vm3213 = vweird.f32 %v3190
    %vm3214 = vweird.f32 %v3208
    %vm3215 = vmor %vm3213, %vm3214
    %v3216 = vsel %vm3215, %v3208, %v3212
    %v3217 = vand.u32 2147483647, %v3190
    %vm3218 = vcmp.eq.f32.partialorder %v3217, 8.507059e+37
    %v3219 = vand.u32 %v3190, 2147483648
    %v3220 = vor.u32 1.1754944e-38, %v3219
    %v3221 = vsel %vm3218, %v3220, %v3216
    %v3222 = vmul.f32 1.0, %v3221
    %v3223 = vrcp.pop %v3191
    %v3224 = vmul.f32 %v3191, %v3223
    %v3225 = vsub.f32 1.0, %v3224
    %v3226 = vmul.f32 %v3223, %v3225
    %v3227 = vadd.f32 %v3223, %v3226
    %vm3228 = vweird.f32 %v3191
    %vm3229 = vweird.f32 %v3223
    %vm3230 = vmor %vm3228, %vm3229
    %v3231 = vsel %vm3230, %v3223, %v3227
    %v3232 = vand.u32 2147483647, %v3191
    %vm3233 = vcmp.eq.f32.partialorder %v3232, 8.507059e+37
    %v3234 = vand.u32 %v3191, 2147483648
    %v3235 = vor.u32 1.1754944e-38, %v3234
    %v3236 = vsel %vm3233, %v3235, %v3231
    %v3237 = vmul.f32 1.0, %v3236
    %v3238 = vrcp.pop %v3192
    %v3239 = vmul.f32 %v3192, %v3238
    %v3240 = vsub.f32 1.0, %v3239
    %v3241 = vmul.f32 %v3238, %v3240
    %v3242 = vadd.f32 %v3238, %v3241
    %vm3243 = vweird.f32 %v3192
    %vm3244 = vweird.f32 %v3238
    %vm3245 = vmor %vm3243, %vm3244
    %v3246 = vsel %vm3245, %v3238, %v3242
    %v3247 = vand.u32 2147483647, %v3192
    %vm3248 = vcmp.eq.f32.partialorder %v3247, 8.507059e+37
    %v3249 = vand.u32 %v3192, 2147483648
    %v3250 = vor.u32 1.1754944e-38, %v3249
    %v3251 = vsel %vm3248, %v3250, %v3246
    %v3252 = vmul.f32 1.0, %v3251
    %v3253 = vmul.f32 %v3207, 1.0614054
    %v3254 = vmul.f32 %v3222, 1.0614054
    %v3255 = vmul.f32 %v3237, 1.0614054
    %v3256 = vmul.f32 %v3252, 1.0614054
    %v3257 = vadd.f32 %v3253, -1.4531521
    %v3258 = vadd.f32 %v3254, -1.4531521
    %v3259 = vadd.f32 %v3255, -1.4531521
    %v3260 = vadd.f32 %v3256, -1.4531521
    %v3261 = vmul.f32 %v3257, %v3207
    %v3262 = vmul.f32 %v3258, %v3222
    %v3263 = vmul.f32 %v3259, %v3237
    %v3264 = vmul.f32 %v3260, %v3252
    %v3265 = vadd.f32 %v3261, 1.4214138
    %v3266 = vadd.f32 %v3262, 1.4214138
    %v3267 = vadd.f32 %v3263, 1.4214138
    %v3268 = vadd.f32 %v3264, 1.4214138
    %v3269 = vmul.f32 %v3265, %v3207
    %v3270 = vmul.f32 %v3266, %v3222
    %v3271 = vmul.f32 %v3267, %v3237
    %v3272 = vmul.f32 %v3268, %v3252
    %v3273 = vadd.f32 %v3269, -0.28449672
    %v3274 = vadd.f32 %v3270, -0.28449672
    %v3275 = vadd.f32 %v3271, -0.28449672
    %v3276 = vadd.f32 %v3272, -0.28449672
    %v3277 = vmul.f32 %v3273, %v3207
    %v3278 = vmul.f32 %v3274, %v3222
    %v3279 = vmul.f32 %v3275, %v3237
    %v3280 = vmul.f32 %v3276, %v3252
    %v3281 = vadd.f32 %v3277, 0.2548296
    %v3282 = vadd.f32 %v3278, 0.2548296
    %v3283 = vadd.f32 %v3279, 0.2548296
    %v3284 = vadd.f32 %v3280, 0.2548296
    %v3285 = vmul.f32 %v3281, %v3207
    %v3286 = vmul.f32 %v3282, %v3222
    %v3287 = vmul.f32 %v3283, %v3237
    %v3288 = vmul.f32 %v3284, %v3252
    %v3289 = vsub.f32 0.0, %v3181
    %v3290 = vsub.f32 0.0, %v3182
    %v3291 = vsub.f32 0.0, %v3183
    %v3292 = vsub.f32 0.0, %v3184
    %v3293 = vmul.f32 %v3289, %v3181
    %v3294 = vmul.f32 %v3290, %v3182
    %v3295 = vmul.f32 %v3291, %v3183
    %v3296 = vmul.f32 %v3292, %v3184
    %v3297 = vmul.f32 %v3293, 1.442695
    %v3298 = vpow.pop %v3297
    %v3299 = vmul.f32 %v3294, 1.442695
    %v3300 = vpow.pop %v3299
    %v3301 = vmul.f32 %v3295, 1.442695
    %v3302 = vpow.pop %v3301
    %v3303 = vmul.f32 %v3296, 1.442695
    %v3304 = vpow.pop %v3303
    %v3305 = vmul.f32 %v3285, %v3298
    %v3306 = vmul.f32 %v3286, %v3300
    %v3307 = vmul.f32 %v3287, %v3302
    %v3308 = vmul.f32 %v3288, %v3304
    %v3309 = vsub.f32 1.0, %v3305
    %v3310 = vsub.f32 1.0, %v3306
    %v3311 = vsub.f32 1.0, %v3307
    %v3312 = vsub.f32 1.0, %v3308
    %vm3313 = vcmp.lt.f32.partialorder %v3177, 0.0
    %vm3314 = vcmp.lt.f32.partialorder %v3178, 0.0
    %vm3315 = vcmp.lt.f32.partialorder %v3179, 0.0
    %vm3316 = vcmp.lt.f32.partialorder %v3180, 0.0
    %v3317 = vsub.f32 0.0, %v3309
    %v3318 = vsub.f32 0.0, %v3310
    %v3319 = vsub.f32 0.0, %v3311
    %v3320 = vsub.f32 0.0, %v3312
    %v3321 = vsel %vm3313, %v3317, %v3309
    %v3322 = vsel %vm3314, %v3318, %v3310
    %v3323 = vsel %vm3315, %v3319, %v3311
    %v3324 = vsel %vm3316, %v3320, %v3312
    %v3325 = vadd.f32 %v3321, 1.0
    %v3326 = vadd.f32 %v3322, 1.0
    %v3327 = vadd.f32 %v3323, 1.0
    %v3328 = vadd.f32 %v3324, 1.0
    %v3329 = vmul.f32 %v3173, %v3325
    %v3330 = vmul.f32 %v3174, %v3326
    %v3331 = vmul.f32 %v3175, %v3327
    %v3332 = vmul.f32 %v3176, %v3328
    %v3333 = vld [vmem:[%s15] sm:$0xff]
    %v3334 = vld [vmem:[%s15 + $0x8] sm:$0xff]
    %v3335 = vld [vmem:[%s15 + $0x10] sm:$0xff]
    %v3336 = vld [vmem:[%s15 + $0x18] sm:$0xff]
    %v3337 = vld [vmem:[%s15 + $0x20] sm:$0xff]
    %v3338 = vld [vmem:[%s15 + $0x28] sm:$0xff]
    %v3339 = vld [vmem:[%s15 + $0x30] sm:$0xff]
    %v3340 = vld [vmem:[%s15 + $0x38] sm:$0xff]
    %v3341 = vld [vmem:[%s15 + $0x40] sm:$0xff]
    %v3342 = vld [vmem:[%s15 + $0x48] sm:$0xff]
    %v3343 = vld [vmem:[%s15 + $0x50] sm:$0xff]
    %v3344 = vld [vmem:[%s15 + $0x58] sm:$0xff]
    %v3345 = vld [vmem:[%s15 + $0x60] sm:$0xff]
    %v3346 = vld [vmem:[%s15 + $0x68] sm:$0xff]
    %v3347 = vld [vmem:[%s15 + $0x70] sm:$0xff]
    %v3348 = vld [vmem:[%s15 + $0x78] sm:$0xff]
    %v3349 = vld [vmem:[%s15 + $0x80] sm:$0xff]
    %v3350 = vld [vmem:[%s15 + $0x88] sm:$0xff]
    %v3351 = vld [vmem:[%s15 + $0x90] sm:$0xff]
    %v3352 = vld [vmem:[%s15 + $0x98] sm:$0xff]
    %v3353 = vld [vmem:[%s15 + $0xa0] sm:$0xff]
    %v3354 = vld [vmem:[%s15 + $0xa8] sm:$0xff]
    %v3355 = vld [vmem:[%s15 + $0xb0] sm:$0xff]
    %v3356 = vld [vmem:[%s15 + $0xb8] sm:$0xff]
    %v3357 = vld [vmem:[%s15 + $0xc0] sm:$0xff]
    %v3358 = vld [vmem:[%s15 + $0xc8] sm:$0xff]
    %v3359 = vld [vmem:[%s15 + $0xd0] sm:$0xff]
    %v3360 = vld [vmem:[%s15 + $0xd8] sm:$0xff]
    %v3361 = vld [vmem:[%s15 + $0xe0] sm:$0xff]
    %v3362 = vld [vmem:[%s15 + $0xe8] sm:$0xff]
    %v3363 = vld [vmem:[%s15 + $0xf0] sm:$0xff]
    %v3364 = vld [vmem:[%s15 + $0xf8] sm:$0xff]
    %v3365 = vld [vmem:[%s15 + $0x100] sm:$0xff]
    %v3366 = vld [vmem:[%s15 + $0x108] sm:$0xff]
    %v3367 = vld [vmem:[%s15 + $0x110] sm:$0xff]
    %v3368 = vld [vmem:[%s15 + $0x118] sm:$0xff]
    %v3369 = vld [vmem:[%s15 + $0x120] sm:$0xff]
    %v3370 = vld [vmem:[%s15 + $0x128] sm:$0xff]
    %v3371 = vld [vmem:[%s15 + $0x130] sm:$0xff]
    %v3372 = vld [vmem:[%s15 + $0x138] sm:$0xff]
    %v3373 = vld [vmem:[%s15 + $0x140] sm:$0xff]
    %v3374 = vld [vmem:[%s15 + $0x148] sm:$0xff]
    %v3375 = vld [vmem:[%s15 + $0x150] sm:$0xff]
    %v3376 = vld [vmem:[%s15 + $0x158] sm:$0xff]
    %v3377 = vld [vmem:[%s15 + $0x160] sm:$0xff]
    %v3378 = vld [vmem:[%s15 + $0x168] sm:$0xff]
    %v3379 = vld [vmem:[%s15 + $0x170] sm:$0xff]
    %v3380 = vld [vmem:[%s15 + $0x178] sm:$0xff]
    %v3381 = vld [vmem:[%s15 + $0x180] sm:$0xff]
    %v3382 = vld [vmem:[%s15 + $0x188] sm:$0xff]
    %v3383 = vld [vmem:[%s15 + $0x190] sm:$0xff]
    %v3384 = vld [vmem:[%s15 + $0x198] sm:$0xff]
    %v3385 = vld [vmem:[%s15 + $0x1a0] sm:$0xff]
    %v3386 = vld [vmem:[%s15 + $0x1a8] sm:$0xff]
    %v3387 = vld [vmem:[%s15 + $0x1b0] sm:$0xff]
    %v3388 = vld [vmem:[%s15 + $0x1b8] sm:$0xff]
    %v3389 = vld [vmem:[%s15 + $0x1c0] sm:$0xff]
    %v3390 = vld [vmem:[%s15 + $0x1c8] sm:$0xff]
    %v3391 = vld [vmem:[%s15 + $0x1d0] sm:$0xff]
    %v3392 = vld [vmem:[%s15 + $0x1d8] sm:$0xff]
    %v3393 = vld [vmem:[%s15 + $0x1e0] sm:$0xff]
    %v3394 = vld [vmem:[%s15 + $0x1e8] sm:$0xff]
    %v3395 = vld [vmem:[%s15 + $0x1f0] sm:$0xff]
    %v3396 = vld [vmem:[%s15 + $0x1f8] sm:$0xff]
    %v3397 = vld [vmem:[%s15 + $0x200] sm:$0xff]
    %v3398 = vld [vmem:[%s15 + $0x208] sm:$0xff]
    %v3399 = vld [vmem:[%s15 + $0x210] sm:$0xff]
    %v3400 = vld [vmem:[%s15 + $0x218] sm:$0xff]
    %v3401 = vld [vmem:[%s15 + $0x220] sm:$0xff]
    %v3402 = vld [vmem:[%s15 + $0x228] sm:$0xff]
    %v3403 = vld [vmem:[%s15 + $0x230] sm:$0xff]
    %v3404 = vld [vmem:[%s15 + $0x238] sm:$0xff]
    %v3405 = vld [vmem:[%s15 + $0x240] sm:$0xff]
    %v3406 = vld [vmem:[%s15 + $0x248] sm:$0xff]
    %v3407 = vld [vmem:[%s15 + $0x250] sm:$0xff]
    %v3408 = vld [vmem:[%s15 + $0x258] sm:$0xff]
    %v3409 = vld [vmem:[%s15 + $0x260] sm:$0xff]
    %v3410 = vld [vmem:[%s15 + $0x268] sm:$0xff]
    %v3411 = vld [vmem:[%s15 + $0x270] sm:$0xff]
    %v3412 = vld [vmem:[%s15 + $0x278] sm:$0xff]
    %v3413 = vld [vmem:[%s15 + $0x280] sm:$0xff]
    %v3414 = vld [vmem:[%s15 + $0x288] sm:$0xff]
    %v3415 = vld [vmem:[%s15 + $0x290] sm:$0xff]
    %v3416 = vld [vmem:[%s15 + $0x298] sm:$0xff]
    %v3417 = vld [vmem:[%s15 + $0x2a0] sm:$0xff]
    %v3418 = vld [vmem:[%s15 + $0x2a8] sm:$0xff]
    %v3419 = vld [vmem:[%s15 + $0x2b0] sm:$0xff]
    %v3420 = vld [vmem:[%s15 + $0x2b8] sm:$0xff]
    %v3421 = vld [vmem:[%s15 + $0x2c0] sm:$0xff]
    %v3422 = vld [vmem:[%s15 + $0x2c8] sm:$0xff]
    %v3423 = vld [vmem:[%s15 + $0x2d0] sm:$0xff]
    %v3424 = vld [vmem:[%s15 + $0x2d8] sm:$0xff]
    %v3425 = vld [vmem:[%s15 + $0x2e0] sm:$0xff]
    %v3426 = vld [vmem:[%s15 + $0x2e8] sm:$0xff]
    %v3427 = vld [vmem:[%s15 + $0x2f0] sm:$0xff]
    %v3428 = vld [vmem:[%s15 + $0x2f8] sm:$0xff]
    %v3429 = vld [vmem:[%s15 + $0x300] sm:$0xff]
    %v3430 = vld [vmem:[%s15 + $0x308] sm:$0xff]
    %v3431 = vld [vmem:[%s15 + $0x310] sm:$0xff]
    %v3432 = vld [vmem:[%s15 + $0x318] sm:$0xff]
    %v3433 = vld [vmem:[%s15 + $0x320] sm:$0xff]
    %v3434 = vld [vmem:[%s15 + $0x328] sm:$0xff]
    %v3435 = vld [vmem:[%s15 + $0x330] sm:$0xff]
    %v3436 = vld [vmem:[%s15 + $0x338] sm:$0xff]
    %v3437 = vld [vmem:[%s15 + $0x340] sm:$0xff]
    %v3438 = vld [vmem:[%s15 + $0x348] sm:$0xff]
    %v3439 = vld [vmem:[%s15 + $0x350] sm:$0xff]
    %v3440 = vld [vmem:[%s15 + $0x358] sm:$0xff]
    %v3441 = vld [vmem:[%s15 + $0x360] sm:$0xff]
    %v3442 = vld [vmem:[%s15 + $0x368] sm:$0xff]
    %v3443 = vld [vmem:[%s15 + $0x370] sm:$0xff]
    %v3444 = vld [vmem:[%s15 + $0x378] sm:$0xff]
    %v3445 = vld [vmem:[%s15 + $0x380] sm:$0xff]
    %v3446 = vld [vmem:[%s15 + $0x388] sm:$0xff]
    %v3447 = vld [vmem:[%s15 + $0x390] sm:$0xff]
    %v3448 = vld [vmem:[%s15 + $0x398] sm:$0xff]
    %v3449 = vld [vmem:[%s15 + $0x3a0] sm:$0xff]
    %v3450 = vld [vmem:[%s15 + $0x3a8] sm:$0xff]
    %v3451 = vld [vmem:[%s15 + $0x3b0] sm:$0xff]
    %v3452 = vld [vmem:[%s15 + $0x3b8] sm:$0xff]
    %v3453 = vld [vmem:[%s15 + $0x3c0] sm:$0xff]
    %v3454 = vld [vmem:[%s15 + $0x3c8] sm:$0xff]
    %v3455 = vld [vmem:[%s15 + $0x3d0] sm:$0xff]
    %v3456 = vld [vmem:[%s15 + $0x3d8] sm:$0xff]
    %v3457 = vld [vmem:[%s15 + $0x3e0] sm:$0xff]
    %v3458 = vld [vmem:[%s15 + $0x3e8] sm:$0xff]
    %v3459 = vld [vmem:[%s15 + $0x3f0] sm:$0xff]
    %v3460 = vld [vmem:[%s15 + $0x3f8] sm:$0xff]
    %v3461 = vld [vmem:[%s16] sm:$0x3]
    %v3463 = vperm.slane %v3461, 0
    %v3464 = vperm.slane %v3461, 1
    %3467 = vmatpush.msra.mxu0 %v3363
    %3468 = vmatpush.msra.mxu0 %v3361
    %3469 = vmatpush.msra.mxu0 %v3359
    %3470 = vmatpush.msra.mxu0 %v3357
    %3471 = vmatpush.msra.mxu0 %v3355
    %3472 = vmatpush.msra.mxu0 %v3353
    %3473 = vmatpush.msra.mxu0 %v3351
    %3474 = vmatpush.msra.mxu0 %v3349
    %3475 = vmatpush.msra.mxu0 %v3347
    %3476 = vmatpush.msra.mxu0 %v3345
    %3477 = vmatpush.msra.mxu0 %v3343
    %3478 = vmatpush.msra.mxu0 %v3341
    %3479 = vmatpush.msra.mxu0 %v3339
    %3480 = vmatpush.msra.mxu0 %v3337
    %3481 = vmatpush.msra.mxu0 %v3335
    %3482 = vmatpush.msra.mxu0 %v3333
    %3483 = vmatmul.f32.gmra.mxu0 %v3329
    %v3484 = vpop.f32.mrf.mxu0
    %v3485 = vadd.f32 %v3463, %v3484
    %3486 = vdwg.mxu0
    %3487 = vmatpush.msra.mxu0 %v3395
    %3488 = vmatpush.msra.mxu0 %v3393
    %3489 = vmatpush.msra.mxu0 %v3391
    %3490 = vmatpush.msra.mxu0 %v3389
    %3491 = vmatpush.msra.mxu0 %v3387
    %3492 = vmatpush.msra.mxu0 %v3385
    %3493 = vmatpush.msra.mxu0 %v3383
    %3494 = vmatpush.msra.mxu0 %v3381
    %3495 = vmatpush.msra.mxu0 %v3379
    %3496 = vmatpush.msra.mxu0 %v3377
    %3497 = vmatpush.msra.mxu0 %v3375
    %3498 = vmatpush.msra.mxu0 %v3373
    %3499 = vmatpush.msra.mxu0 %v3371
    %3500 = vmatpush.msra.mxu0 %v3369
    %3501 = vmatpush.msra.mxu0 %v3367
    %3502 = vmatpush.msra.mxu0 %v3365
    %3503 = vmatmul.f32.gmra.mxu0 %v3330
    %v3504 = vpop.f32.mrf.mxu0
    %v3505 = vadd.f32 %v3485, %v3504
    %3506 = vdwg.mxu0
    %3507 = vmatpush.msra.mxu0 %v3427
    %3508 = vmatpush.msra.mxu0 %v3425
    %3509 = vmatpush.msra.mxu0 %v3423
    %3510 = vmatpush.msra.mxu0 %v3421
    %3511 = vmatpush.msra.mxu0 %v3419
    %3512 = vmatpush.msra.mxu0 %v3417
    %3513 = vmatpush.msra.mxu0 %v3415
    %3514 = vmatpush.msra.mxu0 %v3413
    %3515 = vmatpush.msra.mxu0 %v3411
    %3516 = vmatpush.msra.mxu0 %v3409
    %3517 = vmatpush.msra.mxu0 %v3407
    %3518 = vmatpush.msra.mxu0 %v3405
    %3519 = vmatpush.msra.mxu0 %v3403
    %3520 = vmatpush.msra.mxu0 %v3401
    %3521 = vmatpush.msra.mxu0 %v3399
    %3522 = vmatpush.msra.mxu0 %v3397
    %3523 = vmatmul.f32.gmra.mxu0 %v3331
    %v3524 = vpop.f32.mrf.mxu0
    %v3525 = vadd.f32 %v3505, %v3524
    %3526 = vdwg.mxu0
    %3527 = vmatpush.msra.mxu0 %v3459
    %3528 = vmatpush.msra.mxu0 %v3457
    %3529 = vmatpush.msra.mxu0 %v3455
    %3530 = vmatpush.msra.mxu0 %v3453
    %3531 = vmatpush.msra.mxu0 %v3451
    %3532 = vmatpush.msra.mxu0 %v3449
    %3533 = vmatpush.msra.mxu0 %v3447
    %3534 = vmatpush.msra.mxu0 %v3445
    %3535 = vmatpush.msra.mxu0 %v3443
    %3536 = vmatpush.msra.mxu0 %v3441
    %3537 = vmatpush.msra.mxu0 %v3439
    %3538 = vmatpush.msra.mxu0 %v3437
    %3539 = vmatpush.msra.mxu0 %v3435
    %3540 = vmatpush.msra.mxu0 %v3433
    %3541 = vmatpush.msra.mxu0 %v3431
    %3542 = vmatpush.msra.mxu0 %v3429
    %3543 = vmatmul.f32.gmra.mxu0 %v3332
    %v3544 = vpop.f32.mrf.mxu0
    %v3545 = vadd.f32 %v3525, %v3544
    %3546 = vdwg.mxu0
    %3547 = vmatpush.msra.mxu0 %v3364
    %3548 = vmatpush.msra.mxu0 %v3362
    %3549 = vmatpush.msra.mxu0 %v3360
    %3550 = vmatpush.msra.mxu0 %v3358
    %3551 = vmatpush.msra.mxu0 %v3356
    %3552 = vmatpush.msra.mxu0 %v3354
    %3553 = vmatpush.msra.mxu0 %v3352
    %3554 = vmatpush.msra.mxu0 %v3350
    %3555 = vmatpush.msra.mxu0 %v3348
    %3556 = vmatpush.msra.mxu0 %v3346
    %3557 = vmatpush.msra.mxu0 %v3344
    %3558 = vmatpush.msra.mxu0 %v3342
    %3559 = vmatpush.msra.mxu0 %v3340
    %3560 = vmatpush.msra.mxu0 %v3338
    %3561 = vmatpush.msra.mxu0 %v3336
    %3562 = vmatpush.msra.mxu0 %v3334
    %3563 = vmatmul.f32.gmra.mxu0 %v3329
    %v3564 = vpop.f32.mrf.mxu0
    %v3565 = vadd.f32 %v3464, %v3564
    %3566 = vdwg.mxu0
    %3567 = vmatpush.msra.mxu0 %v3396
    %3568 = vmatpush.msra.mxu0 %v3394
    %3569 = vmatpush.msra.mxu0 %v3392
    %3570 = vmatpush.msra.mxu0 %v3390
    %3571 = vmatpush.msra.mxu0 %v3388
    %3572 = vmatpush.msra.mxu0 %v3386
    %3573 = vmatpush.msra.mxu0 %v3384
    %3574 = vmatpush.msra.mxu0 %v3382
    %3575 = vmatpush.msra.mxu0 %v3380
    %3576 = vmatpush.msra.mxu0 %v3378
    %3577 = vmatpush.msra.mxu0 %v3376
    %3578 = vmatpush.msra.mxu0 %v3374
    %3579 = vmatpush.msra.mxu0 %v3372
    %3580 = vmatpush.msra.mxu0 %v3370
    %3581 = vmatpush.msra.mxu0 %v3368
    %3582 = vmatpush.msra.mxu0 %v3366
    %3583 = vmatmul.f32.gmra.mxu0 %v3330
    %v3584 = vpop.f32.mrf.mxu0
    %v3585 = vadd.f32 %v3565, %v3584
    %3586 = vdwg.mxu0
    %3587 = vmatpush.msra.mxu0 %v3428
    %3588 = vmatpush.msra.mxu0 %v3426
    %3589 = vmatpush.msra.mxu0 %v3424
    %3590 = vmatpush.msra.mxu0 %v3422
    %3591 = vmatpush.msra.mxu0 %v3420
    %3592 = vmatpush.msra.mxu0 %v3418
    %3593 = vmatpush.msra.mxu0 %v3416
    %3594 = vmatpush.msra.mxu0 %v3414
    %3595 = vmatpush.msra.mxu0 %v3412
    %3596 = vmatpush.msra.mxu0 %v3410
    %3597 = vmatpush.msra.mxu0 %v3408
    %3598 = vmatpush.msra.mxu0 %v3406
    %3599 = vmatpush.msra.mxu0 %v3404
    %3600 = vmatpush.msra.mxu0 %v3402
    %3601 = vmatpush.msra.mxu0 %v3400
    %3602 = vmatpush.msra.mxu0 %v3398
    %3603 = vmatmul.f32.gmra.mxu0 %v3331
    %v3604 = vpop.f32.mrf.mxu0
    %v3605 = vadd.f32 %v3585, %v3604
    %3606 = vdwg.mxu0
    %3607 = vmatpush.msra.mxu0 %v3460
    %3608 = vmatpush.msra.mxu0 %v3458
    %3609 = vmatpush.msra.mxu0 %v3456
    %3610 = vmatpush.msra.mxu0 %v3454
    %3611 = vmatpush.msra.mxu0 %v3452
    %3612 = vmatpush.msra.mxu0 %v3450
    %3613 = vmatpush.msra.mxu0 %v3448
    %3614 = vmatpush.msra.mxu0 %v3446
    %3615 = vmatpush.msra.mxu0 %v3444
    %3616 = vmatpush.msra.mxu0 %v3442
    %3617 = vmatpush.msra.mxu0 %v3440
    %3618 = vmatpush.msra.mxu0 %v3438
    %3619 = vmatpush.msra.mxu0 %v3436
    %3620 = vmatpush.msra.mxu0 %v3434
    %3621 = vmatpush.msra.mxu0 %v3432
    %3622 = vmatpush.msra.mxu0 %v3430
    %3623 = vmatmul.f32.gmra.mxu0 %v3332
    %v3624 = vpop.f32.mrf.mxu0
    %v3625 = vadd.f32 %v3605, %v3624
    %3626 = vdwg.mxu0
    %v3627 = vld [vmem:[%s17] sm:$0xff]
    %v3628 = vld [vmem:[%s17 + $0x8] sm:$0xff]
    %v3629 = vld [vmem:[%s17 + $0x10] sm:$0xff]
    %v3630 = vld [vmem:[%s17 + $0x18] sm:$0xff]
    %v3631 = vld [vmem:[%s17 + $0x20] sm:$0xff]
    %v3632 = vld [vmem:[%s17 + $0x28] sm:$0xff]
    %v3633 = vld [vmem:[%s17 + $0x30] sm:$0xff]
    %v3634 = vld [vmem:[%s17 + $0x38] sm:$0xff]
    %v3635 = vld [vmem:[%s17 + $0x40] sm:$0xff]
    %v3636 = vld [vmem:[%s17 + $0x48] sm:$0xff]
    %v3637 = vld [vmem:[%s17 + $0x50] sm:$0xff]
    %v3638 = vld [vmem:[%s17 + $0x58] sm:$0xff]
    %v3639 = vld [vmem:[%s17 + $0x60] sm:$0xff]
    %v3640 = vld [vmem:[%s17 + $0x68] sm:$0xff]
    %v3641 = vld [vmem:[%s17 + $0x70] sm:$0xff]
    %v3642 = vld [vmem:[%s17 + $0x78] sm:$0xff]
    %v3643 = vld [vmem:[%s18] sm:$0xff]
    %v3644 = vld [vmem:[%s18 + $0x8] sm:$0xff]
    %v3645 = vld [vmem:[%s18 + $0x10] sm:$0xff]
    %v3646 = vld [vmem:[%s18 + $0x18] sm:$0xff]
    %v3647 = vld [vmem:[%s18 + $0x20] sm:$0xff]
    %v3648 = vld [vmem:[%s18 + $0x28] sm:$0xff]
    %v3649 = vld [vmem:[%s18 + $0x30] sm:$0xff]
    %v3650 = vld [vmem:[%s18 + $0x38] sm:$0xff]
    %v3651 = vld [vmem:[%s18 + $0x40] sm:$0xff]
    %v3652 = vld [vmem:[%s18 + $0x48] sm:$0xff]
    %v3653 = vld [vmem:[%s18 + $0x50] sm:$0xff]
    %v3654 = vld [vmem:[%s18 + $0x58] sm:$0xff]
    %v3655 = vld [vmem:[%s18 + $0x60] sm:$0xff]
    %v3656 = vld [vmem:[%s18 + $0x68] sm:$0xff]
    %v3657 = vld [vmem:[%s18 + $0x70] sm:$0xff]
    %v3658 = vld [vmem:[%s18 + $0x78] sm:$0xff]
    %v3659 = vld [vmem:[%s18 + $0x80] sm:$0xff]
    %v3660 = vld [vmem:[%s18 + $0x88] sm:$0xff]
    %v3661 = vld [vmem:[%s18 + $0x90] sm:$0xff]
    %v3662 = vld [vmem:[%s18 + $0x98] sm:$0xff]
    %v3663 = vld [vmem:[%s18 + $0xa0] sm:$0xff]
    %v3664 = vld [vmem:[%s18 + $0xa8] sm:$0xff]
    %v3665 = vld [vmem:[%s18 + $0xb0] sm:$0xff]
    %v3666 = vld [vmem:[%s18 + $0xb8] sm:$0xff]
    %v3667 = vld [vmem:[%s18 + $0xc0] sm:$0xff]
    %v3668 = vld [vmem:[%s18 + $0xc8] sm:$0xff]
    %v3669 = vld [vmem:[%s18 + $0xd0] sm:$0xff]
    %v3670 = vld [vmem:[%s18 + $0xd8] sm:$0xff]
    %v3671 = vld [vmem:[%s18 + $0xe0] sm:$0xff]
    %v3672 = vld [vmem:[%s18 + $0xe8] sm:$0xff]
    %v3673 = vld [vmem:[%s18 + $0xf0] sm:$0xff]
    %v3674 = vld [vmem:[%s18 + $0xf8] sm:$0xff]
    %v3675 = vld [vmem:[%s18 + $0x100] sm:$0xff]
    %v3676 = vld [vmem:[%s18 + $0x108] sm:$0xff]
    %v3677 = vld [vmem:[%s18 + $0x110] sm:$0xff]
    %v3678 = vld [vmem:[%s18 + $0x118] sm:$0xff]
    %v3679 = vld [vmem:[%s18 + $0x120] sm:$0xff]
    %v3680 = vld [vmem:[%s18 + $0x128] sm:$0xff]
    %v3681 = vld [vmem:[%s18 + $0x130] sm:$0xff]
    %v3682 = vld [vmem:[%s18 + $0x138] sm:$0xff]
    %v3683 = vld [vmem:[%s18 + $0x140] sm:$0xff]
    %v3684 = vld [vmem:[%s18 + $0x148] sm:$0xff]
    %v3685 = vld [vmem:[%s18 + $0x150] sm:$0xff]
    %v3686 = vld [vmem:[%s18 + $0x158] sm:$0xff]
    %v3687 = vld [vmem:[%s18 + $0x160] sm:$0xff]
    %v3688 = vld [vmem:[%s18 + $0x168] sm:$0xff]
    %v3689 = vld [vmem:[%s18 + $0x170] sm:$0xff]
    %v3690 = vld [vmem:[%s18 + $0x178] sm:$0xff]
    %v3691 = vld [vmem:[%s18 + $0x180] sm:$0xff]
    %v3692 = vld [vmem:[%s18 + $0x188] sm:$0xff]
    %v3693 = vld [vmem:[%s18 + $0x190] sm:$0xff]
    %v3694 = vld [vmem:[%s18 + $0x198] sm:$0xff]
    %v3695 = vld [vmem:[%s18 + $0x1a0] sm:$0xff]
    %v3696 = vld [vmem:[%s18 + $0x1a8] sm:$0xff]
    %v3697 = vld [vmem:[%s18 + $0x1b0] sm:$0xff]
    %v3698 = vld [vmem:[%s18 + $0x1b8] sm:$0xff]
    %v3699 = vld [vmem:[%s18 + $0x1c0] sm:$0xff]
    %v3700 = vld [vmem:[%s18 + $0x1c8] sm:$0xff]
    %v3701 = vld [vmem:[%s18 + $0x1d0] sm:$0xff]
    %v3702 = vld [vmem:[%s18 + $0x1d8] sm:$0xff]
    %v3703 = vld [vmem:[%s18 + $0x1e0] sm:$0xff]
    %v3704 = vld [vmem:[%s18 + $0x1e8] sm:$0xff]
    %v3705 = vld [vmem:[%s18 + $0x1f0] sm:$0xff]
    %v3706 = vld [vmem:[%s18 + $0x1f8] sm:$0xff]
    %v3707 = vld [vmem:[%s18 + $0x200] sm:$0xff]
    %v3708 = vld [vmem:[%s18 + $0x208] sm:$0xff]
    %v3709 = vld [vmem:[%s18 + $0x210] sm:$0xff]
    %v3710 = vld [vmem:[%s18 + $0x218] sm:$0xff]
    %v3711 = vld [vmem:[%s18 + $0x220] sm:$0xff]
    %v3712 = vld [vmem:[%s18 + $0x228] sm:$0xff]
    %v3713 = vld [vmem:[%s18 + $0x230] sm:$0xff]
    %v3714 = vld [vmem:[%s18 + $0x238] sm:$0xff]
    %v3715 = vld [vmem:[%s18 + $0x240] sm:$0xff]
    %v3716 = vld [vmem:[%s18 + $0x248] sm:$0xff]
    %v3717 = vld [vmem:[%s18 + $0x250] sm:$0xff]
    %v3718 = vld [vmem:[%s18 + $0x258] sm:$0xff]
    %v3719 = vld [vmem:[%s18 + $0x260] sm:$0xff]
    %v3720 = vld [vmem:[%s18 + $0x268] sm:$0xff]
    %v3721 = vld [vmem:[%s18 + $0x270] sm:$0xff]
    %v3722 = vld [vmem:[%s18 + $0x278] sm:$0xff]
    %v3723 = vld [vmem:[%s18 + $0x280] sm:$0xff]
    %v3724 = vld [vmem:[%s18 + $0x288] sm:$0xff]
    %v3725 = vld [vmem:[%s18 + $0x290] sm:$0xff]
    %v3726 = vld [vmem:[%s18 + $0x298] sm:$0xff]
    %v3727 = vld [vmem:[%s18 + $0x2a0] sm:$0xff]
    %v3728 = vld [vmem:[%s18 + $0x2a8] sm:$0xff]
    %v3729 = vld [vmem:[%s18 + $0x2b0] sm:$0xff]
    %v3730 = vld [vmem:[%s18 + $0x2b8] sm:$0xff]
    %v3731 = vld [vmem:[%s18 + $0x2c0] sm:$0xff]
    %v3732 = vld [vmem:[%s18 + $0x2c8] sm:$0xff]
    %v3733 = vld [vmem:[%s18 + $0x2d0] sm:$0xff]
    %v3734 = vld [vmem:[%s18 + $0x2d8] sm:$0xff]
    %v3735 = vld [vmem:[%s18 + $0x2e0] sm:$0xff]
    %v3736 = vld [vmem:[%s18 + $0x2e8] sm:$0xff]
    %v3737 = vld [vmem:[%s18 + $0x2f0] sm:$0xff]
    %v3738 = vld [vmem:[%s18 + $0x2f8] sm:$0xff]
    %v3739 = vld [vmem:[%s18 + $0x300] sm:$0xff]
    %v3740 = vld [vmem:[%s18 + $0x308] sm:$0xff]
    %v3741 = vld [vmem:[%s18 + $0x310] sm:$0xff]
    %v3742 = vld [vmem:[%s18 + $0x318] sm:$0xff]
    %v3743 = vld [vmem:[%s18 + $0x320] sm:$0xff]
    %v3744 = vld [vmem:[%s18 + $0x328] sm:$0xff]
    %v3745 = vld [vmem:[%s18 + $0x330] sm:$0xff]
    %v3746 = vld [vmem:[%s18 + $0x338] sm:$0xff]
    %v3747 = vld [vmem:[%s18 + $0x340] sm:$0xff]
    %v3748 = vld [vmem:[%s18 + $0x348] sm:$0xff]
    %v3749 = vld [vmem:[%s18 + $0x350] sm:$0xff]
    %v3750 = vld [vmem:[%s18 + $0x358] sm:$0xff]
    %v3751 = vld [vmem:[%s18 + $0x360] sm:$0xff]
    %v3752 = vld [vmem:[%s18 + $0x368] sm:$0xff]
    %v3753 = vld [vmem:[%s18 + $0x370] sm:$0xff]
    %v3754 = vld [vmem:[%s18 + $0x378] sm:$0xff]
    %v3755 = vld [vmem:[%s18 + $0x380] sm:$0xff]
    %v3756 = vld [vmem:[%s18 + $0x388] sm:$0xff]
    %v3757 = vld [vmem:[%s18 + $0x390] sm:$0xff]
    %v3758 = vld [vmem:[%s18 + $0x398] sm:$0xff]
    %v3759 = vld [vmem:[%s18 + $0x3a0] sm:$0xff]
    %v3760 = vld [vmem:[%s18 + $0x3a8] sm:$0xff]
    %v3761 = vld [vmem:[%s18 + $0x3b0] sm:$0xff]
    %v3762 = vld [vmem:[%s18 + $0x3b8] sm:$0xff]
    %v3763 = vld [vmem:[%s18 + $0x3c0] sm:$0xff]
    %v3764 = vld [vmem:[%s18 + $0x3c8] sm:$0xff]
    %v3765 = vld [vmem:[%s18 + $0x3d0] sm:$0xff]
    %v3766 = vld [vmem:[%s18 + $0x3d8] sm:$0xff]
    %v3767 = vld [vmem:[%s18 + $0x3e0] sm:$0xff]
    %v3768 = vld [vmem:[%s18 + $0x3e8] sm:$0xff]
    %v3769 = vld [vmem:[%s18 + $0x3f0] sm:$0xff]
    %v3770 = vld [vmem:[%s18 + $0x3f8] sm:$0xff]
    %3771 = vmatpush.msra.mxu0 %v3703
    %3772 = vmatpush.msra.mxu0 %v3699
    %3773 = vmatpush.msra.mxu0 %v3695
    %3774 = vmatpush.msra.mxu0 %v3691
    %3775 = vmatpush.msra.mxu0 %v3687
    %3776 = vmatpush.msra.mxu0 %v3683
    %3777 = vmatpush.msra.mxu0 %v3679
    %3778 = vmatpush.msra.mxu0 %v3675
    %3779 = vmatpush.msra.mxu0 %v3671
    %3780 = vmatpush.msra.mxu0 %v3667
    %3781 = vmatpush.msra.mxu0 %v3663
    %3782 = vmatpush.msra.mxu0 %v3659
    %3783 = vmatpush.msra.mxu0 %v3655
    %3784 = vmatpush.msra.mxu0 %v3651
    %3785 = vmatpush.msra.mxu0 %v3647
    %3786 = vmatpush.msra.mxu0 %v3643
    %3787 = vmatmul.f32.gmra.mxu0 %v3545
    %v3788 = vpop.f32.mrf.mxu0
    %v3789 = vadd.f32 0.0, %v3788
    %3790 = vdwg.mxu0
    %3791 = vmatpush.msra.mxu0 %v3767
    %3792 = vmatpush.msra.mxu0 %v3763
    %3793 = vmatpush.msra.mxu0 %v3759
    %3794 = vmatpush.msra.mxu0 %v3755
    %3795 = vmatpush.msra.mxu0 %v3751
    %3796 = vmatpush.msra.mxu0 %v3747
    %3797 = vmatpush.msra.mxu0 %v3743
    %3798 = vmatpush.msra.mxu0 %v3739
    %3799 = vmatpush.msra.mxu0 %v3735
    %3800 = vmatpush.msra.mxu0 %v3731
    %3801 = vmatpush.msra.mxu0 %v3727
    %3802 = vmatpush.msra.mxu0 %v3723
    %3803 = vmatpush.msra.mxu0 %v3719
    %3804 = vmatpush.msra.mxu0 %v3715
    %3805 = vmatpush.msra.mxu0 %v3711
    %3806 = vmatpush.msra.mxu0 %v3707
    %3807 = vmatmul.f32.gmra.mxu0 %v3625
    %v3808 = vpop.f32.mrf.mxu0
    %v3809 = vadd.f32 %v3789, %v3808
    %3810 = vdwg.mxu0
    %3811 = vmatpush.msra.mxu0 %v3704
    %3812 = vmatpush.msra.mxu0 %v3700
    %3813 = vmatpush.msra.mxu0 %v3696
    %3814 = vmatpush.msra.mxu0 %v3692
    %3815 = vmatpush.msra.mxu0 %v3688
    %3816 = vmatpush.msra.mxu0 %v3684
    %3817 = vmatpush.msra.mxu0 %v3680
    %3818 = vmatpush.msra.mxu0 %v3676
    %3819 = vmatpush.msra.mxu0 %v3672
    %3820 = vmatpush.msra.mxu0 %v3668
    %3821 = vmatpush.msra.mxu0 %v3664
    %3822 = vmatpush.msra.mxu0 %v3660
    %3823 = vmatpush.msra.mxu0 %v3656
    %3824 = vmatpush.msra.mxu0 %v3652
    %3825 = vmatpush.msra.mxu0 %v3648
    %3826 = vmatpush.msra.mxu0 %v3644
    %3827 = vmatmul.f32.gmra.mxu0 %v3545
    %v3828 = vpop.f32.mrf.mxu0
    %v3829 = vadd.f32 0.0, %v3828
    %3830 = vdwg.mxu0
    %3831 = vmatpush.msra.mxu0 %v3768
    %3832 = vmatpush.msra.mxu0 %v3764
    %3833 = vmatpush.msra.mxu0 %v3760
    %3834 = vmatpush.msra.mxu0 %v3756
    %3835 = vmatpush.msra.mxu0 %v3752
    %3836 = vmatpush.msra.mxu0 %v3748
    %3837 = vmatpush.msra.mxu0 %v3744
    %3838 = vmatpush.msra.mxu0 %v3740
    %3839 = vmatpush.msra.mxu0 %v3736
    %3840 = vmatpush.msra.mxu0 %v3732
    %3841 = vmatpush.msra.mxu0 %v3728
    %3842 = vmatpush.msra.mxu0 %v3724
    %3843 = vmatpush.msra.mxu0 %v3720
    %3844 = vmatpush.msra.mxu0 %v3716
    %3845 = vmatpush.msra.mxu0 %v3712
    %3846 = vmatpush.msra.mxu0 %v3708
    %3847 = vmatmul.f32.gmra.mxu0 %v3625
    %v3848 = vpop.f32.mrf.mxu0
    %v3849 = vadd.f32 %v3829, %v3848
    %3850 = vdwg.mxu0
    %3851 = vmatpush.msra.mxu0 %v3705
    %3852 = vmatpush.msra.mxu0 %v3701
    %3853 = vmatpush.msra.mxu0 %v3697
    %3854 = vmatpush.msra.mxu0 %v3693
    %3855 = vmatpush.msra.mxu0 %v3689
    %3856 = vmatpush.msra.mxu0 %v3685
    %3857 = vmatpush.msra.mxu0 %v3681
    %3858 = vmatpush.msra.mxu0 %v3677
    %3859 = vmatpush.msra.mxu0 %v3673
    %3860 = vmatpush.msra.mxu0 %v3669
    %3861 = vmatpush.msra.mxu0 %v3665
    %3862 = vmatpush.msra.mxu0 %v3661
    %3863 = vmatpush.msra.mxu0 %v3657
    %3864 = vmatpush.msra.mxu0 %v3653
    %3865 = vmatpush.msra.mxu0 %v3649
    %3866 = vmatpush.msra.mxu0 %v3645
    %3867 = vmatmul.f32.gmra.mxu0 %v3545
    %v3868 = vpop.f32.mrf.mxu0
    %v3869 = vadd.f32 0.0, %v3868
    %3870 = vdwg.mxu0
    %3871 = vmatpush.msra.mxu0 %v3769
    %3872 = vmatpush.msra.mxu0 %v3765
    %3873 = vmatpush.msra.mxu0 %v3761
    %3874 = vmatpush.msra.mxu0 %v3757
    %3875 = vmatpush.msra.mxu0 %v3753
    %3876 = vmatpush.msra.mxu0 %v3749
    %3877 = vmatpush.msra.mxu0 %v3745
    %3878 = vmatpush.msra.mxu0 %v3741
    %3879 = vmatpush.msra.mxu0 %v3737
    %3880 = vmatpush.msra.mxu0 %v3733
    %3881 = vmatpush.msra.mxu0 %v3729
    %3882 = vmatpush.msra.mxu0 %v3725
    %3883 = vmatpush.msra.mxu0 %v3721
    %3884 = vmatpush.msra.mxu0 %v3717
    %3885 = vmatpush.msra.mxu0 %v3713
    %3886 = vmatpush.msra.mxu0 %v3709
    %3887 = vmatmul.f32.gmra.mxu0 %v3625
    %v3888 = vpop.f32.mrf.mxu0
    %v3889 = vadd.f32 %v3869, %v3888
    %3890 = vdwg.mxu0
    %3891 = vmatpush.msra.mxu0 %v3706
    %3892 = vmatpush.msra.mxu0 %v3702
    %3893 = vmatpush.msra.mxu0 %v3698
    %3894 = vmatpush.msra.mxu0 %v3694
    %3895 = vmatpush.msra.mxu0 %v3690
    %3896 = vmatpush.msra.mxu0 %v3686
    %3897 = vmatpush.msra.mxu0 %v3682
    %3898 = vmatpush.msra.mxu0 %v3678
    %3899 = vmatpush.msra.mxu0 %v3674
    %3900 = vmatpush.msra.mxu0 %v3670
    %3901 = vmatpush.msra.mxu0 %v3666
    %3902 = vmatpush.msra.mxu0 %v3662
    %3903 = vmatpush.msra.mxu0 %v3658
    %3904 = vmatpush.msra.mxu0 %v3654
    %3905 = vmatpush.msra.mxu0 %v3650
    %3906 = vmatpush.msra.mxu0 %v3646
    %3907 = vmatmul.f32.gmra.mxu0 %v3545
    %v3908 = vpop.f32.mrf.mxu0
    %v3909 = vadd.f32 0.0, %v3908
    %3910 = vdwg.mxu0
    %3911 = vmatpush.msra.mxu0 %v3770
    %3912 = vmatpush.msra.mxu0 %v3766
    %3913 = vmatpush.msra.mxu0 %v3762
    %3914 = vmatpush.msra.mxu0 %v3758
    %3915 = vmatpush.msra.mxu0 %v3754
    %3916 = vmatpush.msra.mxu0 %v3750
    %3917 = vmatpush.msra.mxu0 %v3746
    %3918 = vmatpush.msra.mxu0 %v3742
    %3919 = vmatpush.msra.mxu0 %v3738
    %3920 = vmatpush.msra.mxu0 %v3734
    %3921 = vmatpush.msra.mxu0 %v3730
    %3922 = vmatpush.msra.mxu0 %v3726
    %3923 = vmatpush.msra.mxu0 %v3722
    %3924 = vmatpush.msra.mxu0 %v3718
    %3925 = vmatpush.msra.mxu0 %v3714
    %3926 = vmatpush.msra.mxu0 %v3710
    %3927 = vmatmul.f32.gmra.mxu0 %v3625
    %v3928 = vpop.f32.mrf.mxu0
    %v3929 = vadd.f32 %v3909, %v3928
    %3930 = vdwg.mxu0
    %3932 = vrot.lane.b32.xlu0 %v2319, 32
    %v3933 = vpop.permute.xlu0 %3932
    %v3934 = vsel %vm225, %v3933, 0
    %3936 = vmatpush.msra.mxu0 0.0
    %3937 = vmatpush.msra.mxu0 0.0
    %3938 = vmatpush.msra.mxu0 0.0
    %3939 = vmatpush.msra.mxu0 0.0
    %3940 = vmatpush.msra.mxu0 0.0
    %3941 = vmatpush.msra.mxu0 0.0
    %3942 = vmatpush.msra.mxu0 0.0
    %3943 = vmatpush.msra.mxu0 0.0
    %3944 = vmatpush.msra.mxu0 0.0
    %3945 = vmatpush.msra.mxu0 0.0
    %3946 = vmatpush.msra.mxu0 0.0
    %3947 = vmatpush.msra.mxu0 0.0
    %3948 = vmatpush.msra.mxu0 %v3639
    %3949 = vmatpush.msra.mxu0 %v3635
    %3950 = vmatpush.msra.mxu0 %v3631
    %3951 = vmatpush.msra.mxu0 %v3627
    %3952 = vmatmul.f32.gmra.mxu0 %v3934
    %v3953 = vpop.f32.mrf.mxu0
    %v3954 = vadd.f32 %v3809, %v3953
    %3955 = vdwg.mxu0
    %3956 = vmatpush.msra.mxu0 0.0
    %3957 = vmatpush.msra.mxu0 0.0
    %3958 = vmatpush.msra.mxu0 0.0
    %3959 = vmatpush.msra.mxu0 0.0
    %3960 = vmatpush.msra.mxu0 0.0
    %3961 = vmatpush.msra.mxu0 0.0
    %3962 = vmatpush.msra.mxu0 0.0
    %3963 = vmatpush.msra.mxu0 0.0
    %3964 = vmatpush.msra.mxu0 0.0
    %3965 = vmatpush.msra.mxu0 0.0
    %3966 = vmatpush.msra.mxu0 0.0
    %3967 = vmatpush.msra.mxu0 0.0
    %3968 = vmatpush.msra.mxu0 %v3640
    %3969 = vmatpush.msra.mxu0 %v3636
    %3970 = vmatpush.msra.mxu0 %v3632
    %3971 = vmatpush.msra.mxu0 %v3628
    %3972 = vmatmul.f32.gmra.mxu0 %v3934
    %v3973 = vpop.f32.mrf.mxu0
    %v3974 = vadd.f32 %v3849, %v3973
    %3975 = vdwg.mxu0
    %3976 = vmatpush.msra.mxu0 0.0
    %3977 = vmatpush.msra.mxu0 0.0
    %3978 = vmatpush.msra.mxu0 0.0
    %3979 = vmatpush.msra.mxu0 0.0
    %3980 = vmatpush.msra.mxu0 0.0
    %3981 = vmatpush.msra.mxu0 0.0
    %3982 = vmatpush.msra.mxu0 0.0
    %3983 = vmatpush.msra.mxu0 0.0
    %3984 = vmatpush.msra.mxu0 0.0
    %3985 = vmatpush.msra.mxu0 0.0
    %3986 = vmatpush.msra.mxu0 0.0
    %3987 = vmatpush.msra.mxu0 0.0
    %3988 = vmatpush.msra.mxu0 %v3641
    %3989 = vmatpush.msra.mxu0 %v3637
    %3990 = vmatpush.msra.mxu0 %v3633
    %3991 = vmatpush.msra.mxu0 %v3629
    %3992 = vmatmul.f32.gmra.mxu0 %v3934
    %v3993 = vpop.f32.mrf.mxu0
    %v3994 = vadd.f32 %v3889, %v3993
    %3995 = vdwg.mxu0
    %3996 = vmatpush.msra.mxu0 0.0
    %3997 = vmatpush.msra.mxu0 0.0
    %3998 = vmatpush.msra.mxu0 0.0
    %3999 = vmatpush.msra.mxu0 0.0
    %4000 = vmatpush.msra.mxu0 0.0
    %4001 = vmatpush.msra.mxu0 0.0
    %4002 = vmatpush.msra.mxu0 0.0
    %4003 = vmatpush.msra.mxu0 0.0
    %4004 = vmatpush.msra.mxu0 0.0
    %4005 = vmatpush.msra.mxu0 0.0
    %4006 = vmatpush.msra.mxu0 0.0
    %4007 = vmatpush.msra.mxu0 0.0
    %4008 = vmatpush.msra.mxu0 %v3642
    %4009 = vmatpush.msra.mxu0 %v3638
    %4010 = vmatpush.msra.mxu0 %v3634
    %4011 = vmatpush.msra.mxu0 %v3630
    %4012 = vmatmul.f32.gmra.mxu0 %v3934
    %v4013 = vpop.f32.mrf.mxu0
    %v4014 = vadd.f32 %v3929, %v4013
    %4015 = vdwg.mxu0
    %v4016 = vld [vmem:[%s19] sm:$0xf]
    %v4018 = vperm.slane %v4016, 0
    %v4019 = vperm.slane %v4016, 1
    %v4020 = vperm.slane %v4016, 2
    %v4021 = vperm.slane %v4016, 3
    %v4026 = vadd.f32 %v3954, %v4018
    %v4027 = vadd.f32 %v3974, %v4019
    %v4028 = vadd.f32 %v3994, %v4020
    %v4029 = vadd.f32 %v4014, %v4021
    %v4030 = vmul.f32 %v4026, 0.5
    %v4031 = vmul.f32 %v4027, 0.5
    %v4032 = vmul.f32 %v4028, 0.5
    %v4033 = vmul.f32 %v4029, 0.5
    %v4034 = vmul.f32 %v4026, 0.70710677
    %v4035 = vmul.f32 %v4027, 0.70710677
    %v4036 = vmul.f32 %v4028, 0.70710677
    %v4037 = vmul.f32 %v4029, 0.70710677
    %v4038 = vand.u32 2147483647, %v4034
    %v4039 = vand.u32 2147483647, %v4035
    %v4040 = vand.u32 2147483647, %v4036
    %v4041 = vand.u32 2147483647, %v4037
    %v4042 = vmul.f32 %v4038, 0.3275911
    %v4043 = vmul.f32 %v4039, 0.3275911
    %v4044 = vmul.f32 %v4040, 0.3275911
    %v4045 = vmul.f32 %v4041, 0.3275911
    %v4046 = vadd.f32 %v4042, 1.0
    %v4047 = vadd.f32 %v4043, 1.0
    %v4048 = vadd.f32 %v4044, 1.0
    %v4049 = vadd.f32 %v4045, 1.0
    %v4050 = vrcp.pop %v4046
    %v4051 = vmul.f32 %v4046, %v4050
    %v4052 = vsub.f32 1.0, %v4051
    %v4053 = vmul.f32 %v4050, %v4052
    %v4054 = vadd.f32 %v4050, %v4053
    %vm4055 = vweird.f32 %v4046
    %vm4056 = vweird.f32 %v4050
    %vm4057 = vmor %vm4055, %vm4056
    %v4058 = vsel %vm4057, %v4050, %v4054
    %v4059 = vand.u32 2147483647, %v4046
    %vm4060 = vcmp.eq.f32.partialorder %v4059, 8.507059e+37
    %v4061 = vand.u32 %v4046, 2147483648
    %v4062 = vor.u32 1.1754944e-38, %v4061
    %v4063 = vsel %vm4060, %v4062, %v4058
    %v4064 = vmul.f32 1.0, %v4063
    %v4065 = vrcp.pop %v4047
    %v4066 = vmul.f32 %v4047, %v4065
    %v4067 = vsub.f32 1.0, %v4066
    %v4068 = vmul.f32 %v4065, %v4067
    %v4069 = vadd.f32 %v4065, %v4068
    %vm4070 = vweird.f32 %v4047
    %vm4071 = vweird.f32 %v4065
    %vm4072 = vmor %vm4070, %vm4071
    %v4073 = vsel %vm4072, %v4065, %v4069
    %v4074 = vand.u32 2147483647, %v4047
    %vm4075 = vcmp.eq.f32.partialorder %v4074, 8.507059e+37
    %v4076 = vand.u32 %v4047, 2147483648
    %v4077 = vor.u32 1.1754944e-38, %v4076
    %v4078 = vsel %vm4075, %v4077, %v4073
    %v4079 = vmul.f32 1.0, %v4078
    %v4080 = vrcp.pop %v4048
    %v4081 = vmul.f32 %v4048, %v4080
    %v4082 = vsub.f32 1.0, %v4081
    %v4083 = vmul.f32 %v4080, %v4082
    %v4084 = vadd.f32 %v4080, %v4083
    %vm4085 = vweird.f32 %v4048
    %vm4086 = vweird.f32 %v4080
    %vm4087 = vmor %vm4085, %vm4086
    %v4088 = vsel %vm4087, %v4080, %v4084
    %v4089 = vand.u32 2147483647, %v4048
    %vm4090 = vcmp.eq.f32.partialorder %v4089, 8.507059e+37
    %v4091 = vand.u32 %v4048, 2147483648
    %v4092 = vor.u32 1.1754944e-38, %v4091
    %v4093 = vsel %vm4090, %v4092, %v4088
    %v4094 = vmul.f32 1.0, %v4093
    %v4095 = vrcp.pop %v4049
    %v4096 = vmul.f32 %v4049, %v4095
    %v4097 = vsub.f32 1.0, %v4096
    %v4098 = vmul.f32 %v4095, %v4097
    %v4099 = vadd.f32 %v4095, %v4098
    %vm4100 = vweird.f32 %v4049
    %vm4101 = vweird.f32 %v4095
    %vm4102 = vmor %vm4100, %vm4101
    %v4103 = vsel %vm4102, %v4095, %v4099
    %v4104 = vand.u32 2147483647, %v4049
    %vm4105 = vcmp.eq.f32.partialorder %v4104, 8.507059e+37
    %v4106 = vand.u32 %v4049, 2147483648
    %v4107 = vor.u32 1.1754944e-38, %v4106
    %v4108 = vsel %vm4105, %v4107, %v4103
    %v4109 = vmul.f32 1.0, %v4108
    %v4110 = vmul.f32 %v4064, 1.0614054
    %v4111 = vmul.f32 %v4079, 1.0614054
    %v4112 = vmul.f32 %v4094, 1.0614054
    %v4113 = vmul.f32 %v4109, 1.0614054
    %v4114 = vadd.f32 %v4110, -1.4531521
    %v4115 = vadd.f32 %v4111, -1.4531521
    %v4116 = vadd.f32 %v4112, -1.4531521
    %v4117 = vadd.f32 %v4113, -1.4531521
    %v4118 = vmul.f32 %v4114, %v4064
    %v4119 = vmul.f32 %v4115, %v4079
    %v4120 = vmul.f32 %v4116, %v4094
    %v4121 = vmul.f32 %v4117, %v4109
    %v4122 = vadd.f32 %v4118, 1.4214138
    %v4123 = vadd.f32 %v4119, 1.4214138
    %v4124 = vadd.f32 %v4120, 1.4214138
    %v4125 = vadd.f32 %v4121, 1.4214138
    %v4126 = vmul.f32 %v4122, %v4064
    %v4127 = vmul.f32 %v4123, %v4079
    %v4128 = vmul.f32 %v4124, %v4094
    %v4129 = vmul.f32 %v4125, %v4109
    %v4130 = vadd.f32 %v4126, -0.28449672
    %v4131 = vadd.f32 %v4127, -0.28449672
    %v4132 = vadd.f32 %v4128, -0.28449672
    %v4133 = vadd.f32 %v4129, -0.28449672
    %v4134 = vmul.f32 %v4130, %v4064
    %v4135 = vmul.f32 %v4131, %v4079
    %v4136 = vmul.f32 %v4132, %v4094
    %v4137 = vmul.f32 %v4133, %v4109
    %v4138 = vadd.f32 %v4134, 0.2548296
    %v4139 = vadd.f32 %v4135, 0.2548296
    %v4140 = vadd.f32 %v4136, 0.2548296
    %v4141 = vadd.f32 %v4137, 0.2548296
    %v4142 = vmul.f32 %v4138, %v4064
    %v4143 = vmul.f32 %v4139, %v4079
    %v4144 = vmul.f32 %v4140, %v4094
    %v4145 = vmul.f32 %v4141, %v4109
    %v4146 = vsub.f32 0.0, %v4038
    %v4147 = vsub.f32 0.0, %v4039
    %v4148 = vsub.f32 0.0, %v4040
    %v4149 = vsub.f32 0.0, %v4041
    %v4150 = vmul.f32 %v4146, %v4038
    %v4151 = vmul.f32 %v4147, %v4039
    %v4152 = vmul.f32 %v4148, %v4040
    %v4153 = vmul.f32 %v4149, %v4041
    %v4154 = vmul.f32 %v4150, 1.442695
    %v4155 = vpow.pop %v4154
    %v4156 = vmul.f32 %v4151, 1.442695
    %v4157 = vpow.pop %v4156
    %v4158 = vmul.f32 %v4152, 1.442695
    %v4159 = vpow.pop %v4158
    %v4160 = vmul.f32 %v4153, 1.442695
    %v4161 = vpow.pop %v4160
    %v4162 = vmul.f32 %v4142, %v4155
    %v4163 = vmul.f32 %v4143, %v4157
    %v4164 = vmul.f32 %v4144, %v4159
    %v4165 = vmul.f32 %v4145, %v4161
    %v4166 = vsub.f32 1.0, %v4162
    %v4167 = vsub.f32 1.0, %v4163
    %v4168 = vsub.f32 1.0, %v4164
    %v4169 = vsub.f32 1.0, %v4165
    %vm4170 = vcmp.lt.f32.partialorder %v4034, 0.0
    %vm4171 = vcmp.lt.f32.partialorder %v4035, 0.0
    %vm4172 = vcmp.lt.f32.partialorder %v4036, 0.0
    %vm4173 = vcmp.lt.f32.partialorder %v4037, 0.0
    %v4174 = vsub.f32 0.0, %v4166
    %v4175 = vsub.f32 0.0, %v4167
    %v4176 = vsub.f32 0.0, %v4168
    %v4177 = vsub.f32 0.0, %v4169
    %v4178 = vsel %vm4170, %v4174, %v4166
    %v4179 = vsel %vm4171, %v4175, %v4167
    %v4180 = vsel %vm4172, %v4176, %v4168
    %v4181 = vsel %vm4173, %v4177, %v4169
    %v4182 = vadd.f32 %v4178, 1.0
    %v4183 = vadd.f32 %v4179, 1.0
    %v4184 = vadd.f32 %v4180, 1.0
    %v4185 = vadd.f32 %v4181, 1.0
    %v4186 = vmul.f32 %v4030, %v4182
    %v4187 = vmul.f32 %v4031, %v4183
    %v4188 = vmul.f32 %v4032, %v4184
    %v4189 = vmul.f32 %v4033, %v4185
    %v4190 = vld [vmem:[#allocation6] sm:$0xff]
    %v4191 = vld [vmem:[#allocation6 + $0x8] sm:$0xff]
    %v4192 = vld [vmem:[#allocation6 + $0x10] sm:$0xff]
    %v4193 = vld [vmem:[#allocation6 + $0x18] sm:$0xff]
    %v4194 = vld [vmem:[#allocation6 + $0x20] sm:$0xff]
    %v4195 = vld [vmem:[#allocation6 + $0x28] sm:$0xff]
    %v4196 = vld [vmem:[#allocation6 + $0x30] sm:$0xff]
    %v4197 = vld [vmem:[#allocation6 + $0x38] sm:$0xff]
    %v4198 = vld [vmem:[#allocation6 + $0x40] sm:$0xff]
    %v4199 = vld [vmem:[#allocation6 + $0x48] sm:$0xff]
    %v4200 = vld [vmem:[#allocation6 + $0x50] sm:$0xff]
    %v4201 = vld [vmem:[#allocation6 + $0x58] sm:$0xff]
    %v4202 = vld [vmem:[#allocation6 + $0x60] sm:$0xff]
    %v4203 = vld [vmem:[#allocation6 + $0x68] sm:$0xff]
    %v4204 = vld [vmem:[#allocation6 + $0x70] sm:$0xff]
    %v4205 = vld [vmem:[#allocation6 + $0x78] sm:$0xff]
    %v4206 = vld [vmem:[#allocation6 + $0x80] sm:$0xff]
    %v4207 = vld [vmem:[#allocation6 + $0x88] sm:$0xff]
    %v4208 = vld [vmem:[#allocation6 + $0x90] sm:$0xff]
    %v4209 = vld [vmem:[#allocation6 + $0x98] sm:$0xff]
    %v4210 = vld [vmem:[#allocation6 + $0xa0] sm:$0xff]
    %v4211 = vld [vmem:[#allocation6 + $0xa8] sm:$0xff]
    %v4212 = vld [vmem:[#allocation6 + $0xb0] sm:$0xff]
    %v4213 = vld [vmem:[#allocation6 + $0xb8] sm:$0xff]
    %v4214 = vld [vmem:[#allocation6 + $0xc0] sm:$0xff]
    %v4215 = vld [vmem:[#allocation6 + $0xc8] sm:$0xff]
    %v4216 = vld [vmem:[#allocation6 + $0xd0] sm:$0xff]
    %v4217 = vld [vmem:[#allocation6 + $0xd8] sm:$0xff]
    %v4218 = vld [vmem:[#allocation6 + $0xe0] sm:$0xff]
    %v4219 = vld [vmem:[#allocation6 + $0xe8] sm:$0xff]
    %v4220 = vld [vmem:[#allocation6 + $0xf0] sm:$0xff]
    %v4221 = vld [vmem:[#allocation6 + $0xf8] sm:$0xff]
    %v4222 = vld [vmem:[#allocation6 + $0x100] sm:$0xff]
    %v4223 = vld [vmem:[#allocation6 + $0x108] sm:$0xff]
    %v4224 = vld [vmem:[#allocation6 + $0x110] sm:$0xff]
    %v4225 = vld [vmem:[#allocation6 + $0x118] sm:$0xff]
    %v4226 = vld [vmem:[#allocation6 + $0x120] sm:$0xff]
    %v4227 = vld [vmem:[#allocation6 + $0x128] sm:$0xff]
    %v4228 = vld [vmem:[#allocation6 + $0x130] sm:$0xff]
    %v4229 = vld [vmem:[#allocation6 + $0x138] sm:$0xff]
    %v4230 = vld [vmem:[#allocation6 + $0x140] sm:$0xff]
    %v4231 = vld [vmem:[#allocation6 + $0x148] sm:$0xff]
    %v4232 = vld [vmem:[#allocation6 + $0x150] sm:$0xff]
    %v4233 = vld [vmem:[#allocation6 + $0x158] sm:$0xff]
    %v4234 = vld [vmem:[#allocation6 + $0x160] sm:$0xff]
    %v4235 = vld [vmem:[#allocation6 + $0x168] sm:$0xff]
    %v4236 = vld [vmem:[#allocation6 + $0x170] sm:$0xff]
    %v4237 = vld [vmem:[#allocation6 + $0x178] sm:$0xff]
    %v4238 = vld [vmem:[#allocation6 + $0x180] sm:$0xff]
    %v4239 = vld [vmem:[#allocation6 + $0x188] sm:$0xff]
    %v4240 = vld [vmem:[#allocation6 + $0x190] sm:$0xff]
    %v4241 = vld [vmem:[#allocation6 + $0x198] sm:$0xff]
    %v4242 = vld [vmem:[#allocation6 + $0x1a0] sm:$0xff]
    %v4243 = vld [vmem:[#allocation6 + $0x1a8] sm:$0xff]
    %v4244 = vld [vmem:[#allocation6 + $0x1b0] sm:$0xff]
    %v4245 = vld [vmem:[#allocation6 + $0x1b8] sm:$0xff]
    %v4246 = vld [vmem:[#allocation6 + $0x1c0] sm:$0xff]
    %v4247 = vld [vmem:[#allocation6 + $0x1c8] sm:$0xff]
    %v4248 = vld [vmem:[#allocation6 + $0x1d0] sm:$0xff]
    %v4249 = vld [vmem:[#allocation6 + $0x1d8] sm:$0xff]
    %v4250 = vld [vmem:[#allocation6 + $0x1e0] sm:$0xff]
    %v4251 = vld [vmem:[#allocation6 + $0x1e8] sm:$0xff]
    %v4252 = vld [vmem:[#allocation6 + $0x1f0] sm:$0xff]
    %v4253 = vld [vmem:[#allocation6 + $0x1f8] sm:$0xff]
    %v4254 = vld [vmem:[#allocation6 + $0x200] sm:$0xff]
    %v4255 = vld [vmem:[#allocation6 + $0x208] sm:$0xff]
    %v4256 = vld [vmem:[#allocation6 + $0x210] sm:$0xff]
    %v4257 = vld [vmem:[#allocation6 + $0x218] sm:$0xff]
    %v4258 = vld [vmem:[#allocation6 + $0x220] sm:$0xff]
    %v4259 = vld [vmem:[#allocation6 + $0x228] sm:$0xff]
    %v4260 = vld [vmem:[#allocation6 + $0x230] sm:$0xff]
    %v4261 = vld [vmem:[#allocation6 + $0x238] sm:$0xff]
    %v4262 = vld [vmem:[#allocation6 + $0x240] sm:$0xff]
    %v4263 = vld [vmem:[#allocation6 + $0x248] sm:$0xff]
    %v4264 = vld [vmem:[#allocation6 + $0x250] sm:$0xff]
    %v4265 = vld [vmem:[#allocation6 + $0x258] sm:$0xff]
    %v4266 = vld [vmem:[#allocation6 + $0x260] sm:$0xff]
    %v4267 = vld [vmem:[#allocation6 + $0x268] sm:$0xff]
    %v4268 = vld [vmem:[#allocation6 + $0x270] sm:$0xff]
    %v4269 = vld [vmem:[#allocation6 + $0x278] sm:$0xff]
    %v4270 = vld [vmem:[#allocation6 + $0x280] sm:$0xff]
    %v4271 = vld [vmem:[#allocation6 + $0x288] sm:$0xff]
    %v4272 = vld [vmem:[#allocation6 + $0x290] sm:$0xff]
    %v4273 = vld [vmem:[#allocation6 + $0x298] sm:$0xff]
    %v4274 = vld [vmem:[#allocation6 + $0x2a0] sm:$0xff]
    %v4275 = vld [vmem:[#allocation6 + $0x2a8] sm:$0xff]
    %v4276 = vld [vmem:[#allocation6 + $0x2b0] sm:$0xff]
    %v4277 = vld [vmem:[#allocation6 + $0x2b8] sm:$0xff]
    %v4278 = vld [vmem:[#allocation6 + $0x2c0] sm:$0xff]
    %v4279 = vld [vmem:[#allocation6 + $0x2c8] sm:$0xff]
    %v4280 = vld [vmem:[#allocation6 + $0x2d0] sm:$0xff]
    %v4281 = vld [vmem:[#allocation6 + $0x2d8] sm:$0xff]
    %v4282 = vld [vmem:[#allocation6 + $0x2e0] sm:$0xff]
    %v4283 = vld [vmem:[#allocation6 + $0x2e8] sm:$0xff]
    %v4284 = vld [vmem:[#allocation6 + $0x2f0] sm:$0xff]
    %v4285 = vld [vmem:[#allocation6 + $0x2f8] sm:$0xff]
    %v4286 = vld [vmem:[#allocation6 + $0x300] sm:$0xff]
    %v4287 = vld [vmem:[#allocation6 + $0x308] sm:$0xff]
    %v4288 = vld [vmem:[#allocation6 + $0x310] sm:$0xff]
    %v4289 = vld [vmem:[#allocation6 + $0x318] sm:$0xff]
    %v4290 = vld [vmem:[#allocation6 + $0x320] sm:$0xff]
    %v4291 = vld [vmem:[#allocation6 + $0x328] sm:$0xff]
    %v4292 = vld [vmem:[#allocation6 + $0x330] sm:$0xff]
    %v4293 = vld [vmem:[#allocation6 + $0x338] sm:$0xff]
    %v4294 = vld [vmem:[#allocation6 + $0x340] sm:$0xff]
    %v4295 = vld [vmem:[#allocation6 + $0x348] sm:$0xff]
    %v4296 = vld [vmem:[#allocation6 + $0x350] sm:$0xff]
    %v4297 = vld [vmem:[#allocation6 + $0x358] sm:$0xff]
    %v4298 = vld [vmem:[#allocation6 + $0x360] sm:$0xff]
    %v4299 = vld [vmem:[#allocation6 + $0x368] sm:$0xff]
    %v4300 = vld [vmem:[#allocation6 + $0x370] sm:$0xff]
    %v4301 = vld [vmem:[#allocation6 + $0x378] sm:$0xff]
    %v4302 = vld [vmem:[#allocation6 + $0x380] sm:$0xff]
    %v4303 = vld [vmem:[#allocation6 + $0x388] sm:$0xff]
    %v4304 = vld [vmem:[#allocation6 + $0x390] sm:$0xff]
    %v4305 = vld [vmem:[#allocation6 + $0x398] sm:$0xff]
    %v4306 = vld [vmem:[#allocation6 + $0x3a0] sm:$0xff]
    %v4307 = vld [vmem:[#allocation6 + $0x3a8] sm:$0xff]
    %v4308 = vld [vmem:[#allocation6 + $0x3b0] sm:$0xff]
    %v4309 = vld [vmem:[#allocation6 + $0x3b8] sm:$0xff]
    %v4310 = vld [vmem:[#allocation6 + $0x3c0] sm:$0xff]
    %v4311 = vld [vmem:[#allocation6 + $0x3c8] sm:$0xff]
    %v4312 = vld [vmem:[#allocation6 + $0x3d0] sm:$0xff]
    %v4313 = vld [vmem:[#allocation6 + $0x3d8] sm:$0xff]
    %v4314 = vld [vmem:[#allocation6 + $0x3e0] sm:$0xff]
    %v4315 = vld [vmem:[#allocation6 + $0x3e8] sm:$0xff]
    %v4316 = vld [vmem:[#allocation6 + $0x3f0] sm:$0xff]
    %v4317 = vld [vmem:[#allocation6 + $0x3f8] sm:$0xff]
    %v4318 = vld [vmem:[%s21] sm:$0x3]
    %v4320 = vperm.slane %v4318, 0
    %v4321 = vperm.slane %v4318, 1
    %4324 = vmatpush.msra.mxu0 %v4220
    %4325 = vmatpush.msra.mxu0 %v4218
    %4326 = vmatpush.msra.mxu0 %v4216
    %4327 = vmatpush.msra.mxu0 %v4214
    %4328 = vmatpush.msra.mxu0 %v4212
    %4329 = vmatpush.msra.mxu0 %v4210
    %4330 = vmatpush.msra.mxu0 %v4208
    %4331 = vmatpush.msra.mxu0 %v4206
    %4332 = vmatpush.msra.mxu0 %v4204
    %4333 = vmatpush.msra.mxu0 %v4202
    %4334 = vmatpush.msra.mxu0 %v4200
    %4335 = vmatpush.msra.mxu0 %v4198
    %4336 = vmatpush.msra.mxu0 %v4196
    %4337 = vmatpush.msra.mxu0 %v4194
    %4338 = vmatpush.msra.mxu0 %v4192
    %4339 = vmatpush.msra.mxu0 %v4190
    %4340 = vmatmul.f32.gmra.mxu0 %v4186
    %v4341 = vpop.f32.mrf.mxu0
    %v4342 = vadd.f32 %v4320, %v4341
    %4343 = vdwg.mxu0
    %4344 = vmatpush.msra.mxu0 %v4252
    %4345 = vmatpush.msra.mxu0 %v4250
    %4346 = vmatpush.msra.mxu0 %v4248
    %4347 = vmatpush.msra.mxu0 %v4246
    %4348 = vmatpush.msra.mxu0 %v4244
    %4349 = vmatpush.msra.mxu0 %v4242
    %4350 = vmatpush.msra.mxu0 %v4240
    %4351 = vmatpush.msra.mxu0 %v4238
    %4352 = vmatpush.msra.mxu0 %v4236
    %4353 = vmatpush.msra.mxu0 %v4234
    %4354 = vmatpush.msra.mxu0 %v4232
    %4355 = vmatpush.msra.mxu0 %v4230
    %4356 = vmatpush.msra.mxu0 %v4228
    %4357 = vmatpush.msra.mxu0 %v4226
    %4358 = vmatpush.msra.mxu0 %v4224
    %4359 = vmatpush.msra.mxu0 %v4222
    %4360 = vmatmul.f32.gmra.mxu0 %v4187
    %v4361 = vpop.f32.mrf.mxu0
    %v4362 = vadd.f32 %v4342, %v4361
    %4363 = vdwg.mxu0
    %4364 = vmatpush.msra.mxu0 %v4284
    %4365 = vmatpush.msra.mxu0 %v4282
    %4366 = vmatpush.msra.mxu0 %v4280
    %4367 = vmatpush.msra.mxu0 %v4278
    %4368 = vmatpush.msra.mxu0 %v4276
    %4369 = vmatpush.msra.mxu0 %v4274
    %4370 = vmatpush.msra.mxu0 %v4272
    %4371 = vmatpush.msra.mxu0 %v4270
    %4372 = vmatpush.msra.mxu0 %v4268
    %4373 = vmatpush.msra.mxu0 %v4266
    %4374 = vmatpush.msra.mxu0 %v4264
    %4375 = vmatpush.msra.mxu0 %v4262
    %4376 = vmatpush.msra.mxu0 %v4260
    %4377 = vmatpush.msra.mxu0 %v4258
    %4378 = vmatpush.msra.mxu0 %v4256
    %4379 = vmatpush.msra.mxu0 %v4254
    %4380 = vmatmul.f32.gmra.mxu0 %v4188
    %v4381 = vpop.f32.mrf.mxu0
    %v4382 = vadd.f32 %v4362, %v4381
    %4383 = vdwg.mxu0
    %4384 = vmatpush.msra.mxu0 %v4316
    %4385 = vmatpush.msra.mxu0 %v4314
    %4386 = vmatpush.msra.mxu0 %v4312
    %4387 = vmatpush.msra.mxu0 %v4310
    %4388 = vmatpush.msra.mxu0 %v4308
    %4389 = vmatpush.msra.mxu0 %v4306
    %4390 = vmatpush.msra.mxu0 %v4304
    %4391 = vmatpush.msra.mxu0 %v4302
    %4392 = vmatpush.msra.mxu0 %v4300
    %4393 = vmatpush.msra.mxu0 %v4298
    %4394 = vmatpush.msra.mxu0 %v4296
    %4395 = vmatpush.msra.mxu0 %v4294
    %4396 = vmatpush.msra.mxu0 %v4292
    %4397 = vmatpush.msra.mxu0 %v4290
    %4398 = vmatpush.msra.mxu0 %v4288
    %4399 = vmatpush.msra.mxu0 %v4286
    %4400 = vmatmul.f32.gmra.mxu0 %v4189
    %v4401 = vpop.f32.mrf.mxu0
    %v4402 = vadd.f32 %v4382, %v4401
    %4403 = vdwg.mxu0
    %4404 = vmatpush.msra.mxu0 %v4221
    %4405 = vmatpush.msra.mxu0 %v4219
    %4406 = vmatpush.msra.mxu0 %v4217
    %4407 = vmatpush.msra.mxu0 %v4215
    %4408 = vmatpush.msra.mxu0 %v4213
    %4409 = vmatpush.msra.mxu0 %v4211
    %4410 = vmatpush.msra.mxu0 %v4209
    %4411 = vmatpush.msra.mxu0 %v4207
    %4412 = vmatpush.msra.mxu0 %v4205
    %4413 = vmatpush.msra.mxu0 %v4203
    %4414 = vmatpush.msra.mxu0 %v4201
    %4415 = vmatpush.msra.mxu0 %v4199
    %4416 = vmatpush.msra.mxu0 %v4197
    %4417 = vmatpush.msra.mxu0 %v4195
    %4418 = vmatpush.msra.mxu0 %v4193
    %4419 = vmatpush.msra.mxu0 %v4191
    %4420 = vmatmul.f32.gmra.mxu0 %v4186
    %v4421 = vpop.f32.mrf.mxu0
    %v4422 = vadd.f32 %v4321, %v4421
    %4423 = vdwg.mxu0
    %4424 = vmatpush.msra.mxu0 %v4253
    %4425 = vmatpush.msra.mxu0 %v4251
    %4426 = vmatpush.msra.mxu0 %v4249
    %4427 = vmatpush.msra.mxu0 %v4247
    %4428 = vmatpush.msra.mxu0 %v4245
    %4429 = vmatpush.msra.mxu0 %v4243
    %4430 = vmatpush.msra.mxu0 %v4241
    %4431 = vmatpush.msra.mxu0 %v4239
    %4432 = vmatpush.msra.mxu0 %v4237
    %4433 = vmatpush.msra.mxu0 %v4235
    %4434 = vmatpush.msra.mxu0 %v4233
    %4435 = vmatpush.msra.mxu0 %v4231
    %4436 = vmatpush.msra.mxu0 %v4229
    %4437 = vmatpush.msra.mxu0 %v4227
    %4438 = vmatpush.msra.mxu0 %v4225
    %4439 = vmatpush.msra.mxu0 %v4223
    %4440 = vmatmul.f32.gmra.mxu0 %v4187
    %v4441 = vpop.f32.mrf.mxu0
    %v4442 = vadd.f32 %v4422, %v4441
    %4443 = vdwg.mxu0
    %4444 = vmatpush.msra.mxu0 %v4285
    %4445 = vmatpush.msra.mxu0 %v4283
    %4446 = vmatpush.msra.mxu0 %v4281
    %4447 = vmatpush.msra.mxu0 %v4279
    %4448 = vmatpush.msra.mxu0 %v4277
    %4449 = vmatpush.msra.mxu0 %v4275
    %4450 = vmatpush.msra.mxu0 %v4273
    %4451 = vmatpush.msra.mxu0 %v4271
    %4452 = vmatpush.msra.mxu0 %v4269
    %4453 = vmatpush.msra.mxu0 %v4267
    %4454 = vmatpush.msra.mxu0 %v4265
    %4455 = vmatpush.msra.mxu0 %v4263
    %4456 = vmatpush.msra.mxu0 %v4261
    %4457 = vmatpush.msra.mxu0 %v4259
    %4458 = vmatpush.msra.mxu0 %v4257
    %4459 = vmatpush.msra.mxu0 %v4255
    %4460 = vmatmul.f32.gmra.mxu0 %v4188
    %v4461 = vpop.f32.mrf.mxu0
    %v4462 = vadd.f32 %v4442, %v4461
    %4463 = vdwg.mxu0
    %4464 = vmatpush.msra.mxu0 %v4317
    %4465 = vmatpush.msra.mxu0 %v4315
    %4466 = vmatpush.msra.mxu0 %v4313
    %4467 = vmatpush.msra.mxu0 %v4311
    %4468 = vmatpush.msra.mxu0 %v4309
    %4469 = vmatpush.msra.mxu0 %v4307
    %4470 = vmatpush.msra.mxu0 %v4305
    %4471 = vmatpush.msra.mxu0 %v4303
    %4472 = vmatpush.msra.mxu0 %v4301
    %4473 = vmatpush.msra.mxu0 %v4299
    %4474 = vmatpush.msra.mxu0 %v4297
    %4475 = vmatpush.msra.mxu0 %v4295
    %4476 = vmatpush.msra.mxu0 %v4293
    %4477 = vmatpush.msra.mxu0 %v4291
    %4478 = vmatpush.msra.mxu0 %v4289
    %4479 = vmatpush.msra.mxu0 %v4287
    %4480 = vmatmul.f32.gmra.mxu0 %v4189
    %v4481 = vpop.f32.mrf.mxu0
    %v4482 = vadd.f32 %v4462, %v4481
    %4483 = vdwg.mxu0
    %v4484 = vmul.f32 %v4402, 0.5
    %v4485 = vmul.f32 %v4482, 0.5
    %v4486 = vmul.f32 %v4402, 0.70710677
    %v4487 = vmul.f32 %v4482, 0.70710677
    %v4488 = vand.u32 2147483647, %v4486
    %v4489 = vand.u32 2147483647, %v4487
    %v4490 = vmul.f32 %v4488, 0.3275911
    %v4491 = vmul.f32 %v4489, 0.3275911
    %v4492 = vadd.f32 %v4490, 1.0
    %v4493 = vadd.f32 %v4491, 1.0
    %v4494 = vrcp.pop %v4492
    %v4495 = vmul.f32 %v4492, %v4494
    %v4496 = vsub.f32 1.0, %v4495
    %v4497 = vmul.f32 %v4494, %v4496
    %v4498 = vadd.f32 %v4494, %v4497
    %vm4499 = vweird.f32 %v4492
    %vm4500 = vweird.f32 %v4494
    %vm4501 = vmor %vm4499, %vm4500
    %v4502 = vsel %vm4501, %v4494, %v4498
    %v4503 = vand.u32 2147483647, %v4492
    %vm4504 = vcmp.eq.f32.partialorder %v4503, 8.507059e+37
    %v4505 = vand.u32 %v4492, 2147483648
    %v4506 = vor.u32 1.1754944e-38, %v4505
    %v4507 = vsel %vm4504, %v4506, %v4502
    %v4508 = vmul.f32 1.0, %v4507
    %v4509 = vrcp.pop %v4493
    %v4510 = vmul.f32 %v4493, %v4509
    %v4511 = vsub.f32 1.0, %v4510
    %v4512 = vmul.f32 %v4509, %v4511
    %v4513 = vadd.f32 %v4509, %v4512
    %vm4514 = vweird.f32 %v4493
    %vm4515 = vweird.f32 %v4509
    %vm4516 = vmor %vm4514, %vm4515
    %v4517 = vsel %vm4516, %v4509, %v4513
    %v4518 = vand.u32 2147483647, %v4493
    %vm4519 = vcmp.eq.f32.partialorder %v4518, 8.507059e+37
    %v4520 = vand.u32 %v4493, 2147483648
    %v4521 = vor.u32 1.1754944e-38, %v4520
    %v4522 = vsel %vm4519, %v4521, %v4517
    %v4523 = vmul.f32 1.0, %v4522
    %v4524 = vmul.f32 %v4508, 1.0614054
    %v4525 = vmul.f32 %v4523, 1.0614054
    %v4526 = vadd.f32 %v4524, -1.4531521
    %v4527 = vadd.f32 %v4525, -1.4531521
    %v4528 = vmul.f32 %v4526, %v4508
    %v4529 = vmul.f32 %v4527, %v4523
    %v4530 = vadd.f32 %v4528, 1.4214138
    %v4531 = vadd.f32 %v4529, 1.4214138
    %v4532 = vmul.f32 %v4530, %v4508
    %v4533 = vmul.f32 %v4531, %v4523
    %v4534 = vadd.f32 %v4532, -0.28449672
    %v4535 = vadd.f32 %v4533, -0.28449672
    %v4536 = vmul.f32 %v4534, %v4508
    %v4537 = vmul.f32 %v4535, %v4523
    %v4538 = vadd.f32 %v4536, 0.2548296
    %v4539 = vadd.f32 %v4537, 0.2548296
    %v4540 = vmul.f32 %v4538, %v4508
    %v4541 = vmul.f32 %v4539, %v4523
    %v4542 = vsub.f32 0.0, %v4488
    %v4543 = vsub.f32 0.0, %v4489
    %v4544 = vmul.f32 %v4542, %v4488
    %v4545 = vmul.f32 %v4543, %v4489
    %v4546 = vmul.f32 %v4544, 1.442695
    %v4547 = vpow.pop %v4546
    %v4548 = vmul.f32 %v4545, 1.442695
    %v4549 = vpow.pop %v4548
    %v4550 = vmul.f32 %v4540, %v4547
    %v4551 = vmul.f32 %v4541, %v4549
    %v4552 = vsub.f32 1.0, %v4550
    %v4553 = vsub.f32 1.0, %v4551
    %vm4554 = vcmp.lt.f32.partialorder %v4486, 0.0
    %vm4555 = vcmp.lt.f32.partialorder %v4487, 0.0
    %v4556 = vsub.f32 0.0, %v4552
    %v4557 = vsub.f32 0.0, %v4553
    %v4558 = vsel %vm4554, %v4556, %v4552
    %v4559 = vsel %vm4555, %v4557, %v4553
    %v4560 = vadd.f32 %v4558, 1.0
    %v4561 = vadd.f32 %v4559, 1.0
    %v4562 = vmul.f32 %v4484, %v4560
    %v4563 = vmul.f32 %v4485, %v4561
    %v4564 = vld [vmem:[%s22] sm:$0x3]
    %v4566 = vperm.slane %v4564, 0
    %v4567 = vperm.slane %v4564, 1
    %v4570 = vmul.f32 %v4562, %v4566
    %v4571 = vmul.f32 %v4563, %v4567
    %v4572 = vadd.f32 %v4570, %v4571
    %4573 = vadd.xlane.f32.xlu0 %v4572
    %v4574 = vpop.xlane.xlu0 %4573
    %v4575 = vld [vmem:[#allocation3] sm:$0x1]
    %v4577 = vperm.slane %v4575, 0
    %v4579 = vadd.f32 %v4574, %v4577
    %vm4580 = vcmask 7168
    %4581 = vst.msk [vmem:[%s24] sm:$0xff] %vm4580, %v4579
    // Predicated region
    $region106: #{lstm_amex_forward.1} parent=1 // pred_check
      _
    $region107: #{lstm_amex_forward.1} parent=1 // pred_check_branch
      %4583 = sbr.rel (0) target = $region109
    $region108: #{lstm_amex_forward.1} parent=1 // pred_region
      _
    $region109: #{lstm_amex_forward.1} parent=1 // pred_fallthru
      _
    // Predicated region
    $region110: #{lstm_amex_forward.1} parent=1 // pred_check
      _
    $region111: #{lstm_amex_forward.1} parent=1 // pred_check_branch
      %4585 = sbr.rel (0) target = $region113
    $region112: #{lstm_amex_forward.1} parent=1 // pred_region
      _
    $region113: #{lstm_amex_forward.1} parent=1 // pred_fallthru
      _
    %4586 = vsyncpa [#allocation5], 1
    %4587 = vsyncpa [#allocation7], 1

</llo_original>
